<compile_context>
chip_gen: v7x
topology: tpu7x:2x2x1
jax: 0.10.0
libtpu: 0.0.40
codegen_flags: <defaults>
</compile_context>

<pallas_src>
import functools

import jax
import jax.numpy as jnp
from jax.experimental import pallas as pl
from jax.experimental.pallas import tpu as pltpu

# ----------------------------- config constants -----------------------------
MIN_TIMESCALE = 0.1
MAX_TIMESCALE = 10.0
STABILITY_EPS = 1e-6
USAGE_DECAY = 0.99
AGE_DECAY = 0.98
WRITE_THRESHOLD = 0.01
LN_EPS = 1e-5
NORMALIZE_EPS = 1e-12  # F.normalize default


def _gelu_exact(x):
    # PyTorch nn.GELU() default (erf form).  Optionally switch to the tanh
    # approximation (single EUP op) if ~1e-3 fidelity drift is acceptable.
    return 0.5 * x * (1.0 + jax.lax.erf(x * jnp.float32(0.7071067811865476)))


def liquid_memory_kernel(
    # streamed per-chunk inputs (x-side precompute) + per-group initial state
    qp_ref,       # [chunk*Bt, M]    query @ Wk rows, time-major / batch-minor
    xg_ref,       # [chunk*Bt, 4M]   x-side gate pre-acts [decay | update | l1]
    mem0_ref,     # [Bt*N, M]
    usage0_ref,   # [Bt*N, 1]
    age0_ref,     # [Bt*N, 1]
    # weights (full-extent blocks)
    wmem_ref,     # [M, 4M]  fused memory-side gate weights [wd | wu | w1]
    gamma_ref,    # [1, 2M]
    beta_ref,     # [1, 2M]
    w2_ref,       # [2M, M]
    b2_ref,       # [1, M]
    # output
    mem_out_ref,  # [Bt*N, M]
    # VMEM scratch carry across the seq-chunk grid axis
    mem_sc, usage_sc, age_sc,
    *, batch_tile, num_slots, seq_chunk, unroll, bcast_rows_ok,
):
    chunk_idx = pl.program_id(1)

    @pl.when(chunk_idx == 0)
    def _init():
        mem_sc[...] = mem0_ref[...]
        usage_sc[...] = usage0_ref[...]
        age_sc[...] = age0_ref[...]

    Bt, N = batch_tile, num_slots
    R, M = mem_sc.shape          # R = Bt * N
    M2 = 2 * M

    wmem = wmem_ref[...]
    w2 = w2_ref[...]
    # Hoisted broadcasts (JAX does not CSE broadcast_in_dim in the unrolled body).
    gamma_b = jnp.broadcast_to(gamma_ref[...], (R, M2))
    beta_b = jnp.broadcast_to(beta_ref[...], (R, M2))
    b2_b = jnp.broadcast_to(b2_ref[...], (R, M))

    def load_rows(ref, t):
        # Per-step row of each batch in this block, replicated N times along
        # sublanes via a stride-0 load (no per-step broadcast_in_dim).
        cols = ref.shape[-1]
        if bcast_rows_ok:
            rows = [ref[pl.ds(t * Bt + b, N, stride=0), :] for b in range(Bt)]
        else:
            rows = [jnp.broadcast_to(ref[pl.ds(t * Bt + b, 1), :], (N, cols))
                    for b in range(Bt)]
        return rows[0] if Bt == 1 else jnp.concatenate(rows, axis=0)

    def slot_softmax(a):                               # a: [N, 1]
        amax = jnp.max(a, axis=0, keepdims=True)
        e = jnp.exp(a - amax)
        denom = jnp.sum(e, axis=0, keepdims=True)
        return e * pl.reciprocal(denom, approx=True)

    def step(t, carry):
        memory, usage, age = carry                     # [R,M], [R,1], [R,1]

        qp_t = load_rows(qp_ref, t)                    # [R, M]
        xg_t = load_rows(xg_ref, t)                    # [R, 4M]

        # ---------- content-based addressing (keys matmul eliminated) -------
        sim = jnp.sum(memory * qp_t, axis=-1, keepdims=True)          # [R, 1]
        adj = sim - 0.1 * age - 0.2 * usage

        # per-batch softmax over the N slots (slot groups align to 8-sublane tiles)
        if Bt == 1:
            write_w = slot_softmax(adj)
        else:
            write_w = jnp.concatenate(
                [slot_softmax(adj[b * N:(b + 1) * N, :]) for b in range(Bt)],
                axis=0)                                                # [R, 1]

        # ---------- liquid memory cell: one fused carry-side matmul ---------
        pre = jnp.dot(memory, wmem, preferred_element_type=jnp.float32) + xg_t
        gates = jax.nn.sigmoid(pre[:, :M2])     # contiguous [decay|update] slab
        decay = gates[:, :M]
        update = gates[:, M:M2]
        pre1 = pre[:, M2:]                      # memory_target layer-1 pre-act

        # LayerNorm with two independent lane reductions (E[x^2] - mu^2).
        s1 = jnp.sum(pre1, axis=-1, keepdims=True)
        s2 = jnp.sum(pre1 * pre1, axis=-1, keepdims=True)
        mu = s1 * (1.0 / M2)
        var = jnp.maximum(s2 * (1.0 / M2) - mu * mu, 0.0)
        h1n = (pre1 - mu) * jax.lax.rsqrt(var + LN_EPS) * gamma_b + beta_b
        h1g = _gelu_exact(h1n)
        h_cand = jnp.tanh(
            jnp.dot(h1g, w2, preferred_element_type=jnp.float32) + b2_b)  # [R, M]

        decay = MIN_TIMESCALE + (MAX_TIMESCALE - MIN_TIMESCALE) * decay + STABILITY_EPS
        new_h = (1.0 - update) * (memory * pl.reciprocal(decay, approx=True)) \
            + update * h_cand

        ss_new = jnp.sum(new_h * new_h, axis=-1, keepdims=True)       # [R, 1]
        ss_old = jnp.sum(memory * memory, axis=-1, keepdims=True)     # [R, 1]
        # TODO(synk): the sum-of-squares NaN/Inf bailout diverges from the
        # reference's elementwise any(isnan|isinf) only if finite values
        # square-overflow to inf.
        bad = jnp.isnan(ss_new) | jnp.isinf(ss_new)
        h_norm = jnp.sqrt(jnp.maximum(ss_old, STABILITY_EPS * STABILITY_EPS))
        inv_new = jax.lax.rsqrt(jnp.maximum(ss_new, NORMALIZE_EPS * NORMALIZE_EPS))
        cell_out = jnp.where(bad, memory, new_h * (inv_new * h_norm))

        # ---------- masked slot write + bookkeeping ----------
        sig = write_w > WRITE_THRESHOLD
        mem_new = jnp.where(sig,
                            memory * (1.0 - write_w) + cell_out * write_w,
                            memory)
        usage_new = (usage + jnp.where(sig, write_w, 0.0)) * USAGE_DECAY
        age_new = age * AGE_DECAY + 1.0
        return mem_new, usage_new, age_new

    memory, usage, age = jax.lax.fori_loop(
        0, seq_chunk, step,
        (mem_sc[...], usage_sc[...], age_sc[...]),
        unroll=unroll)

    mem_sc[...] = memory
    usage_sc[...] = usage
    age_sc[...] = age

    @pl.when(chunk_idx == pl.num_programs(1) - 1)
    def _finalize():
        # TODO(synk): a [N, Bt*M] output layout would be lane-dense (>=128) and
        # avoid masked vst; skipped since the M=32 tail store is tiny here.
        mem_out_ref[...] = memory


# ----------------------------- tiling heuristics -----------------------------
def _pick_batch_tile(batch):
    """All batches in one block on single-TC chips (v5e/v6e); split across the
    two TensorCores on v7x/v4-class parts via the 'parallel' grid axis."""
    try:
        kind = jax.devices()[0].device_kind.lower()
    except Exception:
        kind = ""
    two_tensorcores = any(tag in kind for tag in ("v7", "7x", "v4"))
    if two_tensorcores and batch % 2 == 0:
        return max(1, batch // 2)
    return batch


def _pick_seq_chunk(seq_len, batch_tile, max_chunk=64):
    """Largest divisor of S <= max_chunk keeping the qp/xg block sublane dim
    (chunk*Bt) 8-aligned; falls back to the full sequence."""
    if seq_len <= max_chunk:
        return seq_len
    best = None
    for d in range(1, max_chunk + 1):
        if seq_len % d == 0 and (d * batch_tile) % 8 == 0:
            best = d
    return best if best is not None else seq_len


def _vmem_limit_bytes(chunk, bt, n, m):
    f = 4  # f32
    slab = chunk * bt * 5 * m * f               # qp + xg per chunk
    state = bt * n * (m + 2 * 128) * f          # mem + lane-padded usage/age
    weights = (m * 4 * m + 2 * m * m + 6 * m) * f
    est = 2 * (2 * slab) + 4 * state + 2 * weights  # double-buffered slabs + scratch/out
    # Cap below v7x's 64 MiB physical VMEM; floor well above tiny estimates.
    return int(min(max(est * 2, 4 << 20), 48 << 20))


# ------------------------------ plain-JAX glue -------------------------------
def init_params(key, input_dim, memory_dim):
    """Deterministic synthetic params mirroring the module's _init_weights:
    Linear weights ~ N(0, 0.02), biases 0, LayerNorm gamma=1 / beta=0."""
    M, Din = memory_dim, input_dim
    ks = jax.random.split(key, 6)

    def lin_w(k, out_d, in_d):
        return 0.02 * jax.random.normal(k, (out_d, in_d), jnp.float32)

    return dict(
        wq=lin_w(ks[0], M, Din),           bq=jnp.zeros((M,), jnp.float32),
        wk=lin_w(ks[1], M, M),             bk=jnp.zeros((M,), jnp.float32),
        w1=lin_w(ks[2], 2 * M, M + Din),   b1=jnp.zeros((2 * M,), jnp.float32),
        gamma=jnp.ones((2 * M,), jnp.float32),
        beta=jnp.zeros((2 * M,), jnp.float32),
        w2=lin_w(ks[3], M, 2 * M),         b2=jnp.zeros((M,), jnp.float32),
        wd=lin_w(ks[4], M, M + Din),       bd=jnp.zeros((M,), jnp.float32),
        wu=lin_w(ks[5], M, M + Din),       bu=jnp.zeros((M,), jnp.float32),
    )


def init_memory(key, batch, num_slots, memory_dim):
    mem = 0.01 * jax.random.normal(key, (batch, num_slots, memory_dim), jnp.float32)
    norm = jnp.sqrt(jnp.sum(mem * mem, axis=-1, keepdims=True))
    mem = mem / jnp.maximum(norm, NORMALIZE_EPS)
    usage = jnp.zeros((batch, num_slots), jnp.float32)
    age = jnp.zeros((batch, num_slots), jnp.float32)
    return mem, usage, age


@functools.partial(jax.jit, static_argnames=("batch_tile", "seq_chunk"))
def _forward(hidden_states, memory0, usage0, age0, params, *, batch_tile, seq_chunk):
    B, S, Din = hidden_states.shape
    _, N, M = memory0.shape
    f32 = jnp.float32
    Bt, chunk = batch_tile, seq_chunk
    G, C = B // Bt, S // chunk

    wq, bq = params["wq"].astype(f32), params["bq"].astype(f32)
    wk = params["wk"].astype(f32)
    w1, b1 = params["w1"].astype(f32), params["b1"].astype(f32)
    wd, bd = params["wd"].astype(f32), params["bd"].astype(f32)
    wu, bu = params["wu"].astype(f32), params["bu"].astype(f32)
    w2, b2 = params["w2"].astype(f32), params["b2"].astype(f32)
    gamma, beta = params["gamma"].astype(f32), params["beta"].astype(f32)

    # combined = [h, x]: memory-side / x-side halves of each gate weight.
    w1m, w1x = w1[:, :M], w1[:, M:]
    wdm, wdx = wd[:, :M], wd[:, M:]
    wum, wux = wu[:, :M], wu[:, M:]

    # -------- hoisted x-dependent precompute: one [B*S, Din] matmul (XLA) ----
    x2d = hidden_states.astype(f32).reshape(B * S, Din)
    xside_w = jnp.concatenate([wq.T, wdx.T, wux.T, w1x.T], axis=1)    # [Din, 5M]
    xside_b = jnp.concatenate([bq, bd, bu, b1])[None, :]              # [1, 5M]
    xc = x2d @ xside_w + xside_b                                      # [B*S, 5M]
    query = xc[:, :M]
    # sim = mem . (query @ Wk)  (+ per-(b,t) const query.bk, dropped: the slot
    # softmax is shift-invariant).
    qp = query @ wk                                                   # [B*S, M]
    xg = xc[:, M:]                                                    # [B*S, 4M] = [d|u|l1]

    # Kernel layout: batch groups of Bt; rows time-major / batch-minor (2-D,
    # no singleton dims -> no (8,128) padding on the per-step slabs).
    qp_g = qp.reshape(G, Bt, S, M).transpose(0, 2, 1, 3).reshape(G, S * Bt, M)
    xg_g = xg.reshape(G, Bt, S, 4 * M).transpose(0, 2, 1, 3).reshape(G, S * Bt, 4 * M)
    mem0_g = memory0.astype(f32).reshape(G, Bt * N, M)
    usage0_g = usage0.astype(f32).reshape(G, Bt * N, 1)
    age0_g = age0.astype(f32).reshape(G, Bt * N, 1)

    # Fused memory-side gate weight ordered [decay | update | l1] so the
    # sigmoid slab is contiguous at lane offset 0.
    wmem = jnp.concatenate([wdm.T, wum.T, w1m.T], axis=1)             # [M, 4M]

    kernel = functools.partial(
        liquid_memory_kernel,
        batch_tile=Bt, num_slots=N, seq_chunk=chunk,
        unroll=min(chunk, 8),
        bcast_rows_ok=(chunk * Bt >= N))

    mem = pl.pallas_call(
        kernel,
        out_shape=jax.ShapeDtypeStruct((G, Bt * N, M), f32),
        grid=(G, C),
        in_specs=[
            pl.BlockSpec((None, chunk * Bt, M), lambda g, c: (g, c, 0)),      # qp
            pl.BlockSpec((None, chunk * Bt, 4 * M), lambda g, c: (g, c, 0)),  # xg
            pl.BlockSpec((None, Bt * N, M), lambda g, c: (g, 0, 0)),          # mem0
            pl.BlockSpec((None, Bt * N, 1), lambda g, c: (g, 0, 0)),          # usage0
            pl.BlockSpec((None, Bt * N, 1), lambda g, c: (g, 0, 0)),          # age0
            pl.BlockSpec((M, 4 * M), lambda g, c: (0, 0)),                    # wmem
            pl.BlockSpec((1, 2 * M), lambda g, c: (0, 0)),                    # gamma
            pl.BlockSpec((1, 2 * M), lambda g, c: (0, 0)),                    # beta
            pl.BlockSpec((2 * M, M), lambda g, c: (0, 0)),                    # w2
            pl.BlockSpec((1, M), lambda g, c: (0, 0)),                        # b2
        ],
        out_specs=pl.BlockSpec((None, Bt * N, M), lambda g, c: (g, 0, 0)),
        scratch_shapes=[
            pltpu.VMEM((Bt * N, M), f32),    # memory carry
            pltpu.VMEM((Bt * N, 1), f32),    # usage carry
            pltpu.VMEM((Bt * N, 1), f32),    # age carry
        ],
        compiler_params=pltpu.CompilerParams(
            dimension_semantics=("parallel", "arbitrary"),
            vmem_limit_bytes=_vmem_limit_bytes(chunk, Bt, N, M)),
    )(qp_g, xg_g, mem0_g, usage0_g, age0_g,
      wmem, gamma[None, :], beta[None, :], w2.T, b2[None, :])

    mem = mem.reshape(B, N, M)

    # --------- controller epilogue: global (cross-batch) NaN/Inf cleanup -----
    badmask = jnp.isnan(mem) | jnp.isinf(mem)
    any_bad = jnp.any(badmask)
    mem_clean = jnp.where(badmask, 0.0, mem)
    ss = jnp.sum(mem_clean * mem_clean, axis=-1, keepdims=True)
    mem_norm = mem_clean * jax.lax.rsqrt(jnp.maximum(ss, NORMALIZE_EPS * NORMALIZE_EPS))
    return jnp.where(any_bad, mem_norm, mem_clean)


def liquid_memory_controller(hidden_states, memory0, usage0, age0, params,
                             batch_tile=None, seq_chunk=None):
    """hidden_states: [B, S, D_in]  ->  memory: [B, N, M]"""
    B, S, _ = hidden_states.shape
    bt = batch_tile if batch_tile is not None else _pick_batch_tile(B)
    if B % bt != 0 or bt < 1:
        bt = 1
    ck = seq_chunk if seq_chunk is not None else _pick_seq_chunk(S, bt)
    if S % ck != 0 or ck < 1:
        ck = S
    return _forward(hidden_states, memory0, usage0, age0, params,
                    batch_tile=bt, seq_chunk=ck)


if __name__ == "__main__":
    # Small shapes consistent with the module's forward:
    # hidden_states [B, S, input_dim]; memory [B, num_slots, memory_dim]
    B, S, Din, M, N = 2, 8, 32, 32, 8

    root = jax.random.PRNGKey(0)
    k_x, k_p, k_m = jax.random.split(root, 3)

    hidden_states = jax.random.normal(k_x, (B, S, Din), jnp.float32)
    params = init_params(k_p, Din, M)
    mem0, usage0, age0 = init_memory(k_m, B, N, M)

    out = liquid_memory_controller(hidden_states, mem0, usage0, age0, params)
    out = jax.block_until_ready(out)

    assert out.shape == (B, N, M)
    assert bool(jnp.all(jnp.isfinite(out)))
    print("KERNEL_OK")
</pallas_src>

<mosaic_0001>
module attributes {stable_mosaic.version = 11 : i64} {
  func.func @liquid_memory_kernel(%arg0: i32, %arg1: i32, %arg2: memref<1x16x32xf32, #tpu.memory_space<vmem>>, %arg3: memref<1x16x128xf32, #tpu.memory_space<vmem>>, %arg4: memref<1x16x32xf32, #tpu.memory_space<vmem>>, %arg5: memref<1x16x1xf32, #tpu.memory_space<vmem>>, %arg6: memref<1x16x1xf32, #tpu.memory_space<vmem>>, %arg7: memref<32x128xf32, #tpu.memory_space<vmem>>, %arg8: memref<1x64xf32, #tpu.memory_space<vmem>>, %arg9: memref<1x64xf32, #tpu.memory_space<vmem>>, %arg10: memref<64x32xf32, #tpu.memory_space<vmem>>, %arg11: memref<1x32xf32, #tpu.memory_space<vmem>>, %arg12: memref<1x16x32xf32, #tpu.memory_space<vmem>>, %arg13: memref<16x32xf32, #tpu.memory_space<vmem>>, %arg14: memref<16x1xf32, #tpu.memory_space<vmem>>, %arg15: memref<16x1xf32, #tpu.memory_space<vmem>>) attributes {dimension_semantics = [#tpu.dimension_semantics<parallel>, #tpu.dimension_semantics<arbitrary>], iteration_bounds = array<i64: 1, 1>, scalar_prefetch = 0 : i64, scratch_operands = 3 : i64, tpu.core_type = #tpu.core_type<tc>, window_params = [{transform_indices = @transform_0, window_bounds = array<i64: 1, 16, 32>}, {transform_indices = @transform_1, window_bounds = array<i64: 1, 16, 128>}, {transform_indices = @transform_2, window_bounds = array<i64: 1, 16, 32>}, {transform_indices = @transform_3, window_bounds = array<i64: 1, 16, 1>}, {transform_indices = @transform_4, window_bounds = array<i64: 1, 16, 1>}, {pipeline_mode = #tpu.pipeline_mode<synchronous>, transform_indices = @transform_5, window_bounds = array<i64: 32, 128>}, {pipeline_mode = #tpu.pipeline_mode<synchronous>, transform_indices = @transform_6, window_bounds = array<i64: 1, 64>}, {pipeline_mode = #tpu.pipeline_mode<synchronous>, transform_indices = @transform_7, window_bounds = array<i64: 1, 64>}, {pipeline_mode = #tpu.pipeline_mode<synchronous>, transform_indices = @transform_8, window_bounds = array<i64: 64, 32>}, {pipeline_mode = #tpu.pipeline_mode<synchronous>, transform_indices = @transform_9, window_bounds = array<i64: 1, 32>}, {transform_indices = @transform_10, window_bounds = array<i64: 1, 16, 32>}]} {
    %c0_i32 = arith.constant 0 : i32
    %0 = arith.cmpi eq, %arg1, %c0_i32 : i32
    %1 = arith.extui %0 : i1 to i32
    %c0_i32_0 = arith.constant 0 : i32
    %2 = arith.cmpi ne, %1, %c0_i32_0 : i32
    scf.if %2 {
      %c0_424 = arith.constant 0 : index
      %c0_425 = arith.constant 0 : index
      %c0_426 = arith.constant 0 : index
      %1263 = vector.load %arg4[%c0_424, %c0_425, %c0_426] : memref<1x16x32xf32, #tpu.memory_space<vmem>>, vector<1x16x32xf32>
      %1264 = vector.shape_cast %1263 : vector<1x16x32xf32> to vector<16x32xf32>
      %c0_427 = arith.constant 0 : index
      %c0_428 = arith.constant 0 : index
      %1265 = vector.load %arg13[%c0_427, %c0_428] : memref<16x32xf32, #tpu.memory_space<vmem>>, vector<16x32xf32>
      tpu.vector_store %arg13[%c0_427, %c0_428], %1264 {strides = array<i32>} : memref<16x32xf32, #tpu.memory_space<vmem>>, vector<16x32xf32>,
      %c0_429 = arith.constant 0 : index
      %c0_430 = arith.constant 0 : index
      %c0_431 = arith.constant 0 : index
      %1266 = vector.load %arg5[%c0_429, %c0_430, %c0_431] : memref<1x16x1xf32, #tpu.memory_space<vmem>>, vector<1x16x1xf32>
      %1267 = vector.shape_cast %1266 : vector<1x16x1xf32> to vector<16x1xf32>
      %c0_432 = arith.constant 0 : index
      %c0_433 = arith.constant 0 : index
      %1268 = vector.load %arg14[%c0_432, %c0_433] : memref<16x1xf32, #tpu.memory_space<vmem>>, vector<16x1xf32>
      tpu.vector_store %arg14[%c0_432, %c0_433], %1267 {strides = array<i32>} : memref<16x1xf32, #tpu.memory_space<vmem>>, vector<16x1xf32>,
      %c0_434 = arith.constant 0 : index
      %c0_435 = arith.constant 0 : index
      %c0_436 = arith.constant 0 : index
      %1269 = vector.load %arg6[%c0_434, %c0_435, %c0_436] : memref<1x16x1xf32, #tpu.memory_space<vmem>>, vector<1x16x1xf32>
      %1270 = vector.shape_cast %1269 : vector<1x16x1xf32> to vector<16x1xf32>
      %c0_437 = arith.constant 0 : index
      %c0_438 = arith.constant 0 : index
      %1271 = vector.load %arg15[%c0_437, %c0_438] : memref<16x1xf32, #tpu.memory_space<vmem>>, vector<16x1xf32>
      tpu.vector_store %arg15[%c0_437, %c0_438], %1270 {strides = array<i32>} : memref<16x1xf32, #tpu.memory_space<vmem>>, vector<16x1xf32>,
    } else {
    }
    %c0 = arith.constant 0 : index
    %c0_1 = arith.constant 0 : index
    %3 = vector.load %arg7[%c0, %c0_1] : memref<32x128xf32, #tpu.memory_space<vmem>>, vector<32x128xf32>
    %c0_2 = arith.constant 0 : index
    %c0_3 = arith.constant 0 : index
    %4 = vector.load %arg10[%c0_2, %c0_3] : memref<64x32xf32, #tpu.memory_space<vmem>>, vector<64x32xf32>
    %c0_4 = arith.constant 0 : index
    %c0_5 = arith.constant 0 : index
    %5 = vector.load %arg8[%c0_4, %c0_5] : memref<1x64xf32, #tpu.memory_space<vmem>>, vector<1x64xf32>
    %6 = vector.shape_cast %5 : vector<1x64xf32> to vector<1x64xf32>
    %7 = vector.broadcast %6 : vector<1x64xf32> to vector<16x64xf32>
    %c0_6 = arith.constant 0 : index
    %c0_7 = arith.constant 0 : index
    %8 = vector.load %arg9[%c0_6, %c0_7] : memref<1x64xf32, #tpu.memory_space<vmem>>, vector<1x64xf32>
    %9 = vector.shape_cast %8 : vector<1x64xf32> to vector<1x64xf32>
    %10 = vector.broadcast %9 : vector<1x64xf32> to vector<16x64xf32>
    %c0_8 = arith.constant 0 : index
    %c0_9 = arith.constant 0 : index
    %11 = vector.load %arg11[%c0_8, %c0_9] : memref<1x32xf32, #tpu.memory_space<vmem>>, vector<1x32xf32>
    %12 = vector.shape_cast %11 : vector<1x32xf32> to vector<1x32xf32>
    %13 = vector.broadcast %12 : vector<1x32xf32> to vector<16x32xf32>
    %c0_10 = arith.constant 0 : index
    %c0_11 = arith.constant 0 : index
    %14 = vector.load %arg13[%c0_10, %c0_11] : memref<16x32xf32, #tpu.memory_space<vmem>>, vector<16x32xf32>
    %c0_12 = arith.constant 0 : index
    %c0_13 = arith.constant 0 : index
    %15 = vector.load %arg14[%c0_12, %c0_13] : memref<16x1xf32, #tpu.memory_space<vmem>>, vector<16x1xf32>
    %c0_14 = arith.constant 0 : index
    %c0_15 = arith.constant 0 : index
    %16 = vector.load %arg15[%c0_14, %c0_15] : memref<16x1xf32, #tpu.memory_space<vmem>>, vector<16x1xf32>
    %c0_i32_16 = arith.constant 0 : i32
    %c2_i32 = arith.constant 2 : i32
    %17 = arith.muli %c0_i32_16, %c2_i32 : i32
    %c0_i32_17 = arith.constant 0 : i32
    %18 = arith.addi %17, %c0_i32_17 : i32
    %c0_18 = arith.constant 0 : index
    %19 = arith.index_cast %18 : i32 to index
    %c0_19 = arith.constant 0 : index
    %20 = tpu.strided_load %arg2[%c0_18, %19, %c0_19] {strides = array<i32: 1, 0, 1>} : memref<1x16x32xf32, #tpu.memory_space<vmem>>, vector<1x8x32xf32>
    %21 = vector.shape_cast %20 : vector<1x8x32xf32> to vector<8x32xf32>
    %c2_i32_20 = arith.constant 2 : i32
    %22 = arith.muli %c0_i32_16, %c2_i32_20 : i32
    %c1_i32 = arith.constant 1 : i32
    %23 = arith.addi %22, %c1_i32 : i32
    %c0_21 = arith.constant 0 : index
    %24 = arith.index_cast %23 : i32 to index
    %c0_22 = arith.constant 0 : index
    %25 = tpu.strided_load %arg2[%c0_21, %24, %c0_22] {strides = array<i32: 1, 0, 1>} : memref<1x16x32xf32, #tpu.memory_space<vmem>>, vector<1x8x32xf32>
    %26 = vector.shape_cast %25 : vector<1x8x32xf32> to vector<8x32xf32>
    %27 = tpu.concatenate %21, %26 in 0 : vector<8x32xf32>, vector<8x32xf32> -> vector<16x32xf32>
    %c2_i32_23 = arith.constant 2 : i32
    %28 = arith.muli %c0_i32_16, %c2_i32_23 : i32
    %c0_i32_24 = arith.constant 0 : i32
    %29 = arith.addi %28, %c0_i32_24 : i32
    %c0_25 = arith.constant 0 : index
    %30 = arith.index_cast %29 : i32 to index
    %c0_26 = arith.constant 0 : index
    %31 = tpu.strided_load %arg3[%c0_25, %30, %c0_26] {strides = array<i32: 1, 0, 1>} : memref<1x16x128xf32, #tpu.memory_space<vmem>>, vector<1x8x128xf32>
    %32 = vector.shape_cast %31 : vector<1x8x128xf32> to vector<8x128xf32>
    %c2_i32_27 = arith.constant 2 : i32
    %33 = arith.muli %c0_i32_16, %c2_i32_27 : i32
    %c1_i32_28 = arith.constant 1 : i32
    %34 = arith.addi %33, %c1_i32_28 : i32
    %c0_29 = arith.constant 0 : index
    %35 = arith.index_cast %34 : i32 to index
    %c0_30 = arith.constant 0 : index
    %36 = tpu.strided_load %arg3[%c0_29, %35, %c0_30] {strides = array<i32: 1, 0, 1>} : memref<1x16x128xf32, #tpu.memory_space<vmem>>, vector<1x8x128xf32>
    %37 = vector.shape_cast %36 : vector<1x8x128xf32> to vector<8x128xf32>
    %38 = tpu.concatenate %32, %37 in 0 : vector<8x128xf32>, vector<8x128xf32> -> vector<16x128xf32>
    %39 = arith.mulf %14, %27 : vector<16x32xf32>
    %cst = arith.constant dense<0.000000e+00> : vector<16xf32>
    %40 = vector.multi_reduction <add>, %39, %cst [1] : vector<16x32xf32> to vector<16xf32>
    %41 = vector.shape_cast %40 : vector<16xf32> to vector<16x1xf32>
    %cst_31 = arith.constant 1.000000e-01 : f32
    %42 = vector.broadcast %cst_31 : f32 to vector<16x1xf32>
    %43 = arith.mulf %42, %16 : vector<16x1xf32>
    %44 = arith.subf %41, %43 : vector<16x1xf32>
    %cst_32 = arith.constant 2.000000e-01 : f32
    %45 = vector.broadcast %cst_32 : f32 to vector<16x1xf32>
    %46 = arith.mulf %45, %15 : vector<16x1xf32>
    %47 = arith.subf %44, %46 : vector<16x1xf32>
    %48 = vector.extract_strided_slice %47 {offsets = [0, 0], sizes = [8, 1], strides = [1, 1]} : vector<16x1xf32> to vector<8x1xf32>
    %cst_33 = arith.constant dense<0xFF800000> : vector<1xf32>
    %49 = vector.multi_reduction <maximumf>, %48, %cst_33 [0] : vector<8x1xf32> to vector<1xf32>
    %50 = vector.shape_cast %49 : vector<1xf32> to vector<1x1xf32>
    %51 = vector.broadcast %50 : vector<1x1xf32> to vector<8x1xf32>
    %52 = arith.subf %48, %51 : vector<8x1xf32>
    %53 = math.exp %52 : vector<8x1xf32>
    %cst_34 = arith.constant dense<0.000000e+00> : vector<1xf32>
    %54 = vector.multi_reduction <add>, %53, %cst_34 [0] : vector<8x1xf32> to vector<1xf32>
    %55 = vector.shape_cast %54 : vector<1xf32> to vector<1x1xf32>
    %56 = tpu.reciprocal %55 {approx = true} : vector<1x1xf32> -> vector<1x1xf32>
    %57 = vector.broadcast %56 : vector<1x1xf32> to vector<8x1xf32>
    %58 = arith.mulf %53, %57 : vector<8x1xf32>
    %59 = vector.extract_strided_slice %47 {offsets = [8, 0], sizes = [8, 1], strides = [1, 1]} : vector<16x1xf32> to vector<8x1xf32>
    %cst_35 = arith.constant dense<0xFF800000> : vector<1xf32>
    %60 = vector.multi_reduction <maximumf>, %59, %cst_35 [0] : vector<8x1xf32> to vector<1xf32>
    %61 = vector.shape_cast %60 : vector<1xf32> to vector<1x1xf32>
    %62 = vector.broadcast %61 : vector<1x1xf32> to vector<8x1xf32>
    %63 = arith.subf %59, %62 : vector<8x1xf32>
    %64 = math.exp %63 : vector<8x1xf32>
    %cst_36 = arith.constant dense<0.000000e+00> : vector<1xf32>
    %65 = vector.multi_reduction <add>, %64, %cst_36 [0] : vector<8x1xf32> to vector<1xf32>
    %66 = vector.shape_cast %65 : vector<1xf32> to vector<1x1xf32>
    %67 = tpu.reciprocal %66 {approx = true} : vector<1x1xf32> -> vector<1x1xf32>
    %68 = vector.broadcast %67 : vector<1x1xf32> to vector<8x1xf32>
    %69 = arith.mulf %64, %68 : vector<8x1xf32>
    %70 = tpu.concatenate %58, %69 in 0 : vector<8x1xf32>, vector<8x1xf32> -> vector<16x1xf32>
    %cst_37 = arith.constant dense<0.000000e+00> : vector<16x128xf32>
    %71 = tpu.matmul %14, %3, %cst_37 {dimension_numbers = #tpu.dot_dimension_numbers<[1], [0], [0], [1], [0, 0, 1, 1], [], []>} : vector<16x32xf32>, vector<32x128xf32>, vector<16x128xf32> -> vector<16x128xf32>
    %72 = arith.addf %71, %38 : vector<16x128xf32>
    %73 = vector.extract_strided_slice %72 {offsets = [0, 0], sizes = [16, 64], strides = [1, 1]} : vector<16x128xf32> to vector<16x64xf32>
    %74 = arith.negf %73 : vector<16x64xf32>
    %75 = math.exp %74 : vector<16x64xf32>
    %cst_38 = arith.constant 1.000000e+00 : f32
    %76 = vector.broadcast %cst_38 : f32 to vector<16x64xf32>
    %77 = arith.addf %76, %75 : vector<16x64xf32>
    %78 = arith.divf %76, %77 : vector<16x64xf32>
    %79 = vector.extract_strided_slice %78 {offsets = [0, 0], sizes = [16, 32], strides = [1, 1]} : vector<16x64xf32> to vector<16x32xf32>
    %80 = vector.extract_strided_slice %78 {offsets = [0, 32], sizes = [16, 32], strides = [1, 1]} : vector<16x64xf32> to vector<16x32xf32>
    %81 = vector.extract_strided_slice %72 {offsets = [0, 64], sizes = [16, 64], strides = [1, 1]} : vector<16x128xf32> to vector<16x64xf32>
    %cst_39 = arith.constant dense<0.000000e+00> : vector<16xf32>
    %82 = vector.multi_reduction <add>, %81, %cst_39 [1] : vector<16x64xf32> to vector<16xf32>
    %83 = vector.shape_cast %82 : vector<16xf32> to vector<16x1xf32>
    %84 = arith.mulf %81, %81 : vector<16x64xf32>
    %cst_40 = arith.constant dense<0.000000e+00> : vector<16xf32>
    %85 = vector.multi_reduction <add>, %84, %cst_40 [1] : vector<16x64xf32> to vector<16xf32>
    %86 = vector.shape_cast %85 : vector<16xf32> to vector<16x1xf32>
    %cst_41 = arith.constant 1.562500e-02 : f32
    %87 = vector.broadcast %cst_41 : f32 to vector<16x1xf32>
    %88 = arith.mulf %83, %87 : vector<16x1xf32>
    %cst_42 = arith.constant 1.562500e-02 : f32
    %89 = vector.broadcast %cst_42 : f32 to vector<16x1xf32>
    %90 = arith.mulf %86, %89 : vector<16x1xf32>
    %91 = arith.mulf %88, %88 : vector<16x1xf32>
    %92 = arith.subf %90, %91 : vector<16x1xf32>
    %cst_43 = arith.constant 0.000000e+00 : f32
    %93 = vector.broadcast %cst_43 : f32 to vector<16x1xf32>
    %94 = arith.maximumf %92, %93 : vector<16x1xf32>
    %95 = vector.broadcast %88 : vector<16x1xf32> to vector<16x64xf32>
    %96 = arith.subf %81, %95 : vector<16x64xf32>
    %cst_44 = arith.constant 9.99999974E-6 : f32
    %97 = vector.broadcast %cst_44 : f32 to vector<16x1xf32>
    %98 = arith.addf %94, %97 : vector<16x1xf32>
    %99 = math.rsqrt %98 : vector<16x1xf32>
    %100 = vector.broadcast %99 : vector<16x1xf32> to vector<16x64xf32>
    %101 = arith.mulf %96, %100 : vector<16x64xf32>
    %102 = arith.mulf %101, %7 : vector<16x64xf32>
    %103 = arith.addf %102, %10 : vector<16x64xf32>
    %cst_45 = arith.constant 5.000000e-01 : f32
    %104 = vector.broadcast %cst_45 : f32 to vector<16x64xf32>
    %105 = arith.mulf %104, %103 : vector<16x64xf32>
    %cst_46 = arith.constant 0.707106769 : f32
    %106 = vector.broadcast %cst_46 : f32 to vector<16x64xf32>
    %107 = arith.mulf %103, %106 : vector<16x64xf32>
    %108 = math.erf %107 : vector<16x64xf32>
    %cst_47 = arith.constant 1.000000e+00 : f32
    %109 = vector.broadcast %cst_47 : f32 to vector<16x64xf32>
    %110 = arith.addf %109, %108 : vector<16x64xf32>
    %111 = arith.mulf %105, %110 : vector<16x64xf32>
    %cst_48 = arith.constant dense<0.000000e+00> : vector<16x32xf32>
    %112 = tpu.matmul %111, %4, %cst_48 {dimension_numbers = #tpu.dot_dimension_numbers<[1], [0], [0], [1], [0, 0, 1, 1], [], []>} : vector<16x64xf32>, vector<64x32xf32>, vector<16x32xf32> -> vector<16x32xf32>
    %113 = arith.addf %112, %13 : vector<16x32xf32>
    %114 = math.tanh %113 : vector<16x32xf32>
    %cst_49 = arith.constant 9.89999961 : f32
    %115 = vector.broadcast %cst_49 : f32 to vector<16x32xf32>
    %116 = arith.mulf %115, %79 : vector<16x32xf32>
    %cst_50 = arith.constant 1.000000e-01 : f32
    %117 = vector.broadcast %cst_50 : f32 to vector<16x32xf32>
    %118 = arith.addf %117, %116 : vector<16x32xf32>
    %cst_51 = arith.constant 9.99999997E-7 : f32
    %119 = vector.broadcast %cst_51 : f32 to vector<16x32xf32>
    %120 = arith.addf %118, %119 : vector<16x32xf32>
    %cst_52 = arith.constant 1.000000e+00 : f32
    %121 = vector.broadcast %cst_52 : f32 to vector<16x32xf32>
    %122 = arith.subf %121, %80 : vector<16x32xf32>
    %123 = tpu.reciprocal %120 {approx = true} : vector<16x32xf32> -> vector<16x32xf32>
    %124 = arith.mulf %14, %123 : vector<16x32xf32>
    %125 = arith.mulf %122, %124 : vector<16x32xf32>
    %126 = arith.mulf %80, %114 : vector<16x32xf32>
    %127 = arith.addf %125, %126 : vector<16x32xf32>
    %128 = arith.mulf %127, %127 : vector<16x32xf32>
    %cst_53 = arith.constant dense<0.000000e+00> : vector<16xf32>
    %129 = vector.multi_reduction <add>, %128, %cst_53 [1] : vector<16x32xf32> to vector<16xf32>
    %130 = vector.shape_cast %129 : vector<16xf32> to vector<16x1xf32>
    %131 = arith.mulf %14, %14 : vector<16x32xf32>
    %cst_54 = arith.constant dense<0.000000e+00> : vector<16xf32>
    %132 = vector.multi_reduction <add>, %131, %cst_54 [1] : vector<16x32xf32> to vector<16xf32>
    %133 = vector.shape_cast %132 : vector<16xf32> to vector<16x1xf32>
    %134 = arith.cmpf one, %130, %130 : vector<16x1xf32>
    %135 = math.absf %130 : vector<16x1xf32>
    %cst_55 = arith.constant 0x7F800000 : f32
    %136 = vector.broadcast %cst_55 : f32 to vector<16x1xf32>
    %137 = arith.cmpf oeq, %135, %136 : vector<16x1xf32>
    %138 = arith.ori %134, %137 : vector<16x1xi1>
    %cst_56 = arith.constant 9.99999996E-13 : f32
    %139 = vector.broadcast %cst_56 : f32 to vector<16x1xf32>
    %140 = arith.maximumf %133, %139 : vector<16x1xf32>
    %141 = math.sqrt %140 : vector<16x1xf32>
    %cst_57 = arith.constant 1.000000e-24 : f32
    %142 = vector.broadcast %cst_57 : f32 to vector<16x1xf32>
    %143 = arith.maximumf %130, %142 : vector<16x1xf32>
    %144 = math.rsqrt %143 : vector<16x1xf32>
    %145 = arith.mulf %144, %141 : vector<16x1xf32>
    %146 = vector.broadcast %145 : vector<16x1xf32> to vector<16x32xf32>
    %147 = arith.mulf %127, %146 : vector<16x32xf32>
    %148 = vector.shape_cast %138 : vector<16x1xi1> to vector<16x1xi1>
    %149 = vector.broadcast %148 : vector<16x1xi1> to vector<16x32xi1>
    %150 = arith.select %149, %14, %147 : vector<16x32xi1>, vector<16x32xf32>
    %cst_58 = arith.constant 0.00999999977 : f32
    %151 = vector.broadcast %cst_58 : f32 to vector<16x1xf32>
    %152 = arith.cmpf ogt, %70, %151 : vector<16x1xf32>
    %cst_59 = arith.constant 1.000000e+00 : f32
    %153 = vector.broadcast %cst_59 : f32 to vector<16x1xf32>
    %154 = arith.subf %153, %70 : vector<16x1xf32>
    %155 = vector.broadcast %154 : vector<16x1xf32> to vector<16x32xf32>
    %156 = arith.mulf %14, %155 : vector<16x32xf32>
    %157 = vector.broadcast %70 : vector<16x1xf32> to vector<16x32xf32>
    %158 = arith.mulf %150, %157 : vector<16x32xf32>
    %159 = arith.addf %156, %158 : vector<16x32xf32>
    %160 = vector.shape_cast %152 : vector<16x1xi1> to vector<16x1xi1>
    %161 = vector.broadcast %160 : vector<16x1xi1> to vector<16x32xi1>
    %162 = arith.select %161, %159, %14 : vector<16x32xi1>, vector<16x32xf32>
    %cst_60 = arith.constant 0.000000e+00 : f32
    %163 = vector.broadcast %cst_60 : f32 to vector<16x1xf32>
    %164 = arith.select %152, %70, %163 : vector<16x1xi1>, vector<16x1xf32>
    %165 = arith.addf %15, %164 : vector<16x1xf32>
    %cst_61 = arith.constant 9.900000e-01 : f32
    %166 = vector.broadcast %cst_61 : f32 to vector<16x1xf32>
    %167 = arith.mulf %165, %166 : vector<16x1xf32>
    %cst_62 = arith.constant 9.800000e-01 : f32
    %168 = vector.broadcast %cst_62 : f32 to vector<16x1xf32>
    %169 = arith.mulf %16, %168 : vector<16x1xf32>
    %cst_63 = arith.constant 1.000000e+00 : f32
    %170 = vector.broadcast %cst_63 : f32 to vector<16x1xf32>
    %171 = arith.addf %169, %170 : vector<16x1xf32>
    %c1_i32_64 = arith.constant 1 : i32
    %c2_i32_65 = arith.constant 2 : i32
    %172 = arith.muli %c1_i32_64, %c2_i32_65 : i32
    %c0_i32_66 = arith.constant 0 : i32
    %173 = arith.addi %172, %c0_i32_66 : i32
    %c0_67 = arith.constant 0 : index
    %174 = arith.index_cast %173 : i32 to index
    %c0_68 = arith.constant 0 : index
    %175 = tpu.strided_load %arg2[%c0_67, %174, %c0_68] {strides = array<i32: 1, 0, 1>} : memref<1x16x32xf32, #tpu.memory_space<vmem>>, vector<1x8x32xf32>
    %176 = vector.shape_cast %175 : vector<1x8x32xf32> to vector<8x32xf32>
    %c2_i32_69 = arith.constant 2 : i32
    %177 = arith.muli %c1_i32_64, %c2_i32_69 : i32
    %c1_i32_70 = arith.constant 1 : i32
    %178 = arith.addi %177, %c1_i32_70 : i32
    %c0_71 = arith.constant 0 : index
    %179 = arith.index_cast %178 : i32 to index
    %c0_72 = arith.constant 0 : index
    %180 = tpu.strided_load %arg2[%c0_71, %179, %c0_72] {strides = array<i32: 1, 0, 1>} : memref<1x16x32xf32, #tpu.memory_space<vmem>>, vector<1x8x32xf32>
    %181 = vector.shape_cast %180 : vector<1x8x32xf32> to vector<8x32xf32>
    %182 = tpu.concatenate %176, %181 in 0 : vector<8x32xf32>, vector<8x32xf32> -> vector<16x32xf32>
    %c2_i32_73 = arith.constant 2 : i32
    %183 = arith.muli %c1_i32_64, %c2_i32_73 : i32
    %c0_i32_74 = arith.constant 0 : i32
    %184 = arith.addi %183, %c0_i32_74 : i32
    %c0_75 = arith.constant 0 : index
    %185 = arith.index_cast %184 : i32 to index
    %c0_76 = arith.constant 0 : index
    %186 = tpu.strided_load %arg3[%c0_75, %185, %c0_76] {strides = array<i32: 1, 0, 1>} : memref<1x16x128xf32, #tpu.memory_space<vmem>>, vector<1x8x128xf32>
    %187 = vector.shape_cast %186 : vector<1x8x128xf32> to vector<8x128xf32>
    %c2_i32_77 = arith.constant 2 : i32
    %188 = arith.muli %c1_i32_64, %c2_i32_77 : i32
    %c1_i32_78 = arith.constant 1 : i32
    %189 = arith.addi %188, %c1_i32_78 : i32
    %c0_79 = arith.constant 0 : index
    %190 = arith.index_cast %189 : i32 to index
    %c0_80 = arith.constant 0 : index
    %191 = tpu.strided_load %arg3[%c0_79, %190, %c0_80] {strides = array<i32: 1, 0, 1>} : memref<1x16x128xf32, #tpu.memory_space<vmem>>, vector<1x8x128xf32>
    %192 = vector.shape_cast %191 : vector<1x8x128xf32> to vector<8x128xf32>
    %193 = tpu.concatenate %187, %192 in 0 : vector<8x128xf32>, vector<8x128xf32> -> vector<16x128xf32>
    %194 = arith.mulf %162, %182 : vector<16x32xf32>
    %cst_81 = arith.constant dense<0.000000e+00> : vector<16xf32>
    %195 = vector.multi_reduction <add>, %194, %cst_81 [1] : vector<16x32xf32> to vector<16xf32>
    %196 = vector.shape_cast %195 : vector<16xf32> to vector<16x1xf32>
    %cst_82 = arith.constant 1.000000e-01 : f32
    %197 = vector.broadcast %cst_82 : f32 to vector<16x1xf32>
    %198 = arith.mulf %197, %171 : vector<16x1xf32>
    %199 = arith.subf %196, %198 : vector<16x1xf32>
    %cst_83 = arith.constant 2.000000e-01 : f32
    %200 = vector.broadcast %cst_83 : f32 to vector<16x1xf32>
    %201 = arith.mulf %200, %167 : vector<16x1xf32>
    %202 = arith.subf %199, %201 : vector<16x1xf32>
    %203 = vector.extract_strided_slice %202 {offsets = [0, 0], sizes = [8, 1], strides = [1, 1]} : vector<16x1xf32> to vector<8x1xf32>
    %cst_84 = arith.constant dense<0xFF800000> : vector<1xf32>
    %204 = vector.multi_reduction <maximumf>, %203, %cst_84 [0] : vector<8x1xf32> to vector<1xf32>
    %205 = vector.shape_cast %204 : vector<1xf32> to vector<1x1xf32>
    %206 = vector.broadcast %205 : vector<1x1xf32> to vector<8x1xf32>
    %207 = arith.subf %203, %206 : vector<8x1xf32>
    %208 = math.exp %207 : vector<8x1xf32>
    %cst_85 = arith.constant dense<0.000000e+00> : vector<1xf32>
    %209 = vector.multi_reduction <add>, %208, %cst_85 [0] : vector<8x1xf32> to vector<1xf32>
    %210 = vector.shape_cast %209 : vector<1xf32> to vector<1x1xf32>
    %211 = tpu.reciprocal %210 {approx = true} : vector<1x1xf32> -> vector<1x1xf32>
    %212 = vector.broadcast %211 : vector<1x1xf32> to vector<8x1xf32>
    %213 = arith.mulf %208, %212 : vector<8x1xf32>
    %214 = vector.extract_strided_slice %202 {offsets = [8, 0], sizes = [8, 1], strides = [1, 1]} : vector<16x1xf32> to vector<8x1xf32>
    %cst_86 = arith.constant dense<0xFF800000> : vector<1xf32>
    %215 = vector.multi_reduction <maximumf>, %214, %cst_86 [0] : vector<8x1xf32> to vector<1xf32>
    %216 = vector.shape_cast %215 : vector<1xf32> to vector<1x1xf32>
    %217 = vector.broadcast %216 : vector<1x1xf32> to vector<8x1xf32>
    %218 = arith.subf %214, %217 : vector<8x1xf32>
    %219 = math.exp %218 : vector<8x1xf32>
    %cst_87 = arith.constant dense<0.000000e+00> : vector<1xf32>
    %220 = vector.multi_reduction <add>, %219, %cst_87 [0] : vector<8x1xf32> to vector<1xf32>
    %221 = vector.shape_cast %220 : vector<1xf32> to vector<1x1xf32>
    %222 = tpu.reciprocal %221 {approx = true} : vector<1x1xf32> -> vector<1x1xf32>
    %223 = vector.broadcast %222 : vector<1x1xf32> to vector<8x1xf32>
    %224 = arith.mulf %219, %223 : vector<8x1xf32>
    %225 = tpu.concatenate %213, %224 in 0 : vector<8x1xf32>, vector<8x1xf32> -> vector<16x1xf32>
    %cst_88 = arith.constant dense<0.000000e+00> : vector<16x128xf32>
    %226 = tpu.matmul %162, %3, %cst_88 {dimension_numbers = #tpu.dot_dimension_numbers<[1], [0], [0], [1], [0, 0, 1, 1], [], []>} : vector<16x32xf32>, vector<32x128xf32>, vector<16x128xf32> -> vector<16x128xf32>
    %227 = arith.addf %226, %193 : vector<16x128xf32>
    %228 = vector.extract_strided_slice %227 {offsets = [0, 0], sizes = [16, 64], strides = [1, 1]} : vector<16x128xf32> to vector<16x64xf32>
    %229 = arith.negf %228 : vector<16x64xf32>
    %230 = math.exp %229 : vector<16x64xf32>
    %cst_89 = arith.constant 1.000000e+00 : f32
    %231 = vector.broadcast %cst_89 : f32 to vector<16x64xf32>
    %232 = arith.addf %231, %230 : vector<16x64xf32>
    %233 = arith.divf %231, %232 : vector<16x64xf32>
    %234 = vector.extract_strided_slice %233 {offsets = [0, 0], sizes = [16, 32], strides = [1, 1]} : vector<16x64xf32> to vector<16x32xf32>
    %235 = vector.extract_strided_slice %233 {offsets = [0, 32], sizes = [16, 32], strides = [1, 1]} : vector<16x64xf32> to vector<16x32xf32>
    %236 = vector.extract_strided_slice %227 {offsets = [0, 64], sizes = [16, 64], strides = [1, 1]} : vector<16x128xf32> to vector<16x64xf32>
    %cst_90 = arith.constant dense<0.000000e+00> : vector<16xf32>
    %237 = vector.multi_reduction <add>, %236, %cst_90 [1] : vector<16x64xf32> to vector<16xf32>
    %238 = vector.shape_cast %237 : vector<16xf32> to vector<16x1xf32>
    %239 = arith.mulf %236, %236 : vector<16x64xf32>
    %cst_91 = arith.constant dense<0.000000e+00> : vector<16xf32>
    %240 = vector.multi_reduction <add>, %239, %cst_91 [1] : vector<16x64xf32> to vector<16xf32>
    %241 = vector.shape_cast %240 : vector<16xf32> to vector<16x1xf32>
    %cst_92 = arith.constant 1.562500e-02 : f32
    %242 = vector.broadcast %cst_92 : f32 to vector<16x1xf32>
    %243 = arith.mulf %238, %242 : vector<16x1xf32>
    %cst_93 = arith.constant 1.562500e-02 : f32
    %244 = vector.broadcast %cst_93 : f32 to vector<16x1xf32>
    %245 = arith.mulf %241, %244 : vector<16x1xf32>
    %246 = arith.mulf %243, %243 : vector<16x1xf32>
    %247 = arith.subf %245, %246 : vector<16x1xf32>
    %cst_94 = arith.constant 0.000000e+00 : f32
    %248 = vector.broadcast %cst_94 : f32 to vector<16x1xf32>
    %249 = arith.maximumf %247, %248 : vector<16x1xf32>
    %250 = vector.broadcast %243 : vector<16x1xf32> to vector<16x64xf32>
    %251 = arith.subf %236, %250 : vector<16x64xf32>
    %cst_95 = arith.constant 9.99999974E-6 : f32
    %252 = vector.broadcast %cst_95 : f32 to vector<16x1xf32>
    %253 = arith.addf %249, %252 : vector<16x1xf32>
    %254 = math.rsqrt %253 : vector<16x1xf32>
    %255 = vector.broadcast %254 : vector<16x1xf32> to vector<16x64xf32>
    %256 = arith.mulf %251, %255 : vector<16x64xf32>
    %257 = arith.mulf %256, %7 : vector<16x64xf32>
    %258 = arith.addf %257, %10 : vector<16x64xf32>
    %cst_96 = arith.constant 5.000000e-01 : f32
    %259 = vector.broadcast %cst_96 : f32 to vector<16x64xf32>
    %260 = arith.mulf %259, %258 : vector<16x64xf32>
    %cst_97 = arith.constant 0.707106769 : f32
    %261 = vector.broadcast %cst_97 : f32 to vector<16x64xf32>
    %262 = arith.mulf %258, %261 : vector<16x64xf32>
    %263 = math.erf %262 : vector<16x64xf32>
    %cst_98 = arith.constant 1.000000e+00 : f32
    %264 = vector.broadcast %cst_98 : f32 to vector<16x64xf32>
    %265 = arith.addf %264, %263 : vector<16x64xf32>
    %266 = arith.mulf %260, %265 : vector<16x64xf32>
    %cst_99 = arith.constant dense<0.000000e+00> : vector<16x32xf32>
    %267 = tpu.matmul %266, %4, %cst_99 {dimension_numbers = #tpu.dot_dimension_numbers<[1], [0], [0], [1], [0, 0, 1, 1], [], []>} : vector<16x64xf32>, vector<64x32xf32>, vector<16x32xf32> -> vector<16x32xf32>
    %268 = arith.addf %267, %13 : vector<16x32xf32>
    %269 = math.tanh %268 : vector<16x32xf32>
    %cst_100 = arith.constant 9.89999961 : f32
    %270 = vector.broadcast %cst_100 : f32 to vector<16x32xf32>
    %271 = arith.mulf %270, %234 : vector<16x32xf32>
    %cst_101 = arith.constant 1.000000e-01 : f32
    %272 = vector.broadcast %cst_101 : f32 to vector<16x32xf32>
    %273 = arith.addf %272, %271 : vector<16x32xf32>
    %cst_102 = arith.constant 9.99999997E-7 : f32
    %274 = vector.broadcast %cst_102 : f32 to vector<16x32xf32>
    %275 = arith.addf %273, %274 : vector<16x32xf32>
    %cst_103 = arith.constant 1.000000e+00 : f32
    %276 = vector.broadcast %cst_103 : f32 to vector<16x32xf32>
    %277 = arith.subf %276, %235 : vector<16x32xf32>
    %278 = tpu.reciprocal %275 {approx = true} : vector<16x32xf32> -> vector<16x32xf32>
    %279 = arith.mulf %162, %278 : vector<16x32xf32>
    %280 = arith.mulf %277, %279 : vector<16x32xf32>
    %281 = arith.mulf %235, %269 : vector<16x32xf32>
    %282 = arith.addf %280, %281 : vector<16x32xf32>
    %283 = arith.mulf %282, %282 : vector<16x32xf32>
    %cst_104 = arith.constant dense<0.000000e+00> : vector<16xf32>
    %284 = vector.multi_reduction <add>, %283, %cst_104 [1] : vector<16x32xf32> to vector<16xf32>
    %285 = vector.shape_cast %284 : vector<16xf32> to vector<16x1xf32>
    %286 = arith.mulf %162, %162 : vector<16x32xf32>
    %cst_105 = arith.constant dense<0.000000e+00> : vector<16xf32>
    %287 = vector.multi_reduction <add>, %286, %cst_105 [1] : vector<16x32xf32> to vector<16xf32>
    %288 = vector.shape_cast %287 : vector<16xf32> to vector<16x1xf32>
    %289 = arith.cmpf one, %285, %285 : vector<16x1xf32>
    %290 = math.absf %285 : vector<16x1xf32>
    %cst_106 = arith.constant 0x7F800000 : f32
    %291 = vector.broadcast %cst_106 : f32 to vector<16x1xf32>
    %292 = arith.cmpf oeq, %290, %291 : vector<16x1xf32>
    %293 = arith.ori %289, %292 : vector<16x1xi1>
    %cst_107 = arith.constant 9.99999996E-13 : f32
    %294 = vector.broadcast %cst_107 : f32 to vector<16x1xf32>
    %295 = arith.maximumf %288, %294 : vector<16x1xf32>
    %296 = math.sqrt %295 : vector<16x1xf32>
    %cst_108 = arith.constant 1.000000e-24 : f32
    %297 = vector.broadcast %cst_108 : f32 to vector<16x1xf32>
    %298 = arith.maximumf %285, %297 : vector<16x1xf32>
    %299 = math.rsqrt %298 : vector<16x1xf32>
    %300 = arith.mulf %299, %296 : vector<16x1xf32>
    %301 = vector.broadcast %300 : vector<16x1xf32> to vector<16x32xf32>
    %302 = arith.mulf %282, %301 : vector<16x32xf32>
    %303 = vector.shape_cast %293 : vector<16x1xi1> to vector<16x1xi1>
    %304 = vector.broadcast %303 : vector<16x1xi1> to vector<16x32xi1>
    %305 = arith.select %304, %162, %302 : vector<16x32xi1>, vector<16x32xf32>
    %cst_109 = arith.constant 0.00999999977 : f32
    %306 = vector.broadcast %cst_109 : f32 to vector<16x1xf32>
    %307 = arith.cmpf ogt, %225, %306 : vector<16x1xf32>
    %cst_110 = arith.constant 1.000000e+00 : f32
    %308 = vector.broadcast %cst_110 : f32 to vector<16x1xf32>
    %309 = arith.subf %308, %225 : vector<16x1xf32>
    %310 = vector.broadcast %309 : vector<16x1xf32> to vector<16x32xf32>
    %311 = arith.mulf %162, %310 : vector<16x32xf32>
    %312 = vector.broadcast %225 : vector<16x1xf32> to vector<16x32xf32>
    %313 = arith.mulf %305, %312 : vector<16x32xf32>
    %314 = arith.addf %311, %313 : vector<16x32xf32>
    %315 = vector.shape_cast %307 : vector<16x1xi1> to vector<16x1xi1>
    %316 = vector.broadcast %315 : vector<16x1xi1> to vector<16x32xi1>
    %317 = arith.select %316, %314, %162 : vector<16x32xi1>, vector<16x32xf32>
    %cst_111 = arith.constant 0.000000e+00 : f32
    %318 = vector.broadcast %cst_111 : f32 to vector<16x1xf32>
    %319 = arith.select %307, %225, %318 : vector<16x1xi1>, vector<16x1xf32>
    %320 = arith.addf %167, %319 : vector<16x1xf32>
    %cst_112 = arith.constant 9.900000e-01 : f32
    %321 = vector.broadcast %cst_112 : f32 to vector<16x1xf32>
    %322 = arith.mulf %320, %321 : vector<16x1xf32>
    %cst_113 = arith.constant 9.800000e-01 : f32
    %323 = vector.broadcast %cst_113 : f32 to vector<16x1xf32>
    %324 = arith.mulf %171, %323 : vector<16x1xf32>
    %cst_114 = arith.constant 1.000000e+00 : f32
    %325 = vector.broadcast %cst_114 : f32 to vector<16x1xf32>
    %326 = arith.addf %324, %325 : vector<16x1xf32>
    %c2_i32_115 = arith.constant 2 : i32
    %c2_i32_116 = arith.constant 2 : i32
    %327 = arith.muli %c2_i32_115, %c2_i32_116 : i32
    %c0_i32_117 = arith.constant 0 : i32
    %328 = arith.addi %327, %c0_i32_117 : i32
    %c0_118 = arith.constant 0 : index
    %329 = arith.index_cast %328 : i32 to index
    %c0_119 = arith.constant 0 : index
    %330 = tpu.strided_load %arg2[%c0_118, %329, %c0_119] {strides = array<i32: 1, 0, 1>} : memref<1x16x32xf32, #tpu.memory_space<vmem>>, vector<1x8x32xf32>
    %331 = vector.shape_cast %330 : vector<1x8x32xf32> to vector<8x32xf32>
    %c2_i32_120 = arith.constant 2 : i32
    %332 = arith.muli %c2_i32_115, %c2_i32_120 : i32
    %c1_i32_121 = arith.constant 1 : i32
    %333 = arith.addi %332, %c1_i32_121 : i32
    %c0_122 = arith.constant 0 : index
    %334 = arith.index_cast %333 : i32 to index
    %c0_123 = arith.constant 0 : index
    %335 = tpu.strided_load %arg2[%c0_122, %334, %c0_123] {strides = array<i32: 1, 0, 1>} : memref<1x16x32xf32, #tpu.memory_space<vmem>>, vector<1x8x32xf32>
    %336 = vector.shape_cast %335 : vector<1x8x32xf32> to vector<8x32xf32>
    %337 = tpu.concatenate %331, %336 in 0 : vector<8x32xf32>, vector<8x32xf32> -> vector<16x32xf32>
    %c2_i32_124 = arith.constant 2 : i32
    %338 = arith.muli %c2_i32_115, %c2_i32_124 : i32
    %c0_i32_125 = arith.constant 0 : i32
    %339 = arith.addi %338, %c0_i32_125 : i32
    %c0_126 = arith.constant 0 : index
    %340 = arith.index_cast %339 : i32 to index
    %c0_127 = arith.constant 0 : index
    %341 = tpu.strided_load %arg3[%c0_126, %340, %c0_127] {strides = array<i32: 1, 0, 1>} : memref<1x16x128xf32, #tpu.memory_space<vmem>>, vector<1x8x128xf32>
    %342 = vector.shape_cast %341 : vector<1x8x128xf32> to vector<8x128xf32>
    %c2_i32_128 = arith.constant 2 : i32
    %343 = arith.muli %c2_i32_115, %c2_i32_128 : i32
    %c1_i32_129 = arith.constant 1 : i32
    %344 = arith.addi %343, %c1_i32_129 : i32
    %c0_130 = arith.constant 0 : index
    %345 = arith.index_cast %344 : i32 to index
    %c0_131 = arith.constant 0 : index
    %346 = tpu.strided_load %arg3[%c0_130, %345, %c0_131] {strides = array<i32: 1, 0, 1>} : memref<1x16x128xf32, #tpu.memory_space<vmem>>, vector<1x8x128xf32>
    %347 = vector.shape_cast %346 : vector<1x8x128xf32> to vector<8x128xf32>
    %348 = tpu.concatenate %342, %347 in 0 : vector<8x128xf32>, vector<8x128xf32> -> vector<16x128xf32>
    %349 = arith.mulf %317, %337 : vector<16x32xf32>
    %cst_132 = arith.constant dense<0.000000e+00> : vector<16xf32>
    %350 = vector.multi_reduction <add>, %349, %cst_132 [1] : vector<16x32xf32> to vector<16xf32>
    %351 = vector.shape_cast %350 : vector<16xf32> to vector<16x1xf32>
    %cst_133 = arith.constant 1.000000e-01 : f32
    %352 = vector.broadcast %cst_133 : f32 to vector<16x1xf32>
    %353 = arith.mulf %352, %326 : vector<16x1xf32>
    %354 = arith.subf %351, %353 : vector<16x1xf32>
    %cst_134 = arith.constant 2.000000e-01 : f32
    %355 = vector.broadcast %cst_134 : f32 to vector<16x1xf32>
    %356 = arith.mulf %355, %322 : vector<16x1xf32>
    %357 = arith.subf %354, %356 : vector<16x1xf32>
    %358 = vector.extract_strided_slice %357 {offsets = [0, 0], sizes = [8, 1], strides = [1, 1]} : vector<16x1xf32> to vector<8x1xf32>
    %cst_135 = arith.constant dense<0xFF800000> : vector<1xf32>
    %359 = vector.multi_reduction <maximumf>, %358, %cst_135 [0] : vector<8x1xf32> to vector<1xf32>
    %360 = vector.shape_cast %359 : vector<1xf32> to vector<1x1xf32>
    %361 = vector.broadcast %360 : vector<1x1xf32> to vector<8x1xf32>
    %362 = arith.subf %358, %361 : vector<8x1xf32>
    %363 = math.exp %362 : vector<8x1xf32>
    %cst_136 = arith.constant dense<0.000000e+00> : vector<1xf32>
    %364 = vector.multi_reduction <add>, %363, %cst_136 [0] : vector<8x1xf32> to vector<1xf32>
    %365 = vector.shape_cast %364 : vector<1xf32> to vector<1x1xf32>
    %366 = tpu.reciprocal %365 {approx = true} : vector<1x1xf32> -> vector<1x1xf32>
    %367 = vector.broadcast %366 : vector<1x1xf32> to vector<8x1xf32>
    %368 = arith.mulf %363, %367 : vector<8x1xf32>
    %369 = vector.extract_strided_slice %357 {offsets = [8, 0], sizes = [8, 1], strides = [1, 1]} : vector<16x1xf32> to vector<8x1xf32>
    %cst_137 = arith.constant dense<0xFF800000> : vector<1xf32>
    %370 = vector.multi_reduction <maximumf>, %369, %cst_137 [0] : vector<8x1xf32> to vector<1xf32>
    %371 = vector.shape_cast %370 : vector<1xf32> to vector<1x1xf32>
    %372 = vector.broadcast %371 : vector<1x1xf32> to vector<8x1xf32>
    %373 = arith.subf %369, %372 : vector<8x1xf32>
    %374 = math.exp %373 : vector<8x1xf32>
    %cst_138 = arith.constant dense<0.000000e+00> : vector<1xf32>
    %375 = vector.multi_reduction <add>, %374, %cst_138 [0] : vector<8x1xf32> to vector<1xf32>
    %376 = vector.shape_cast %375 : vector<1xf32> to vector<1x1xf32>
    %377 = tpu.reciprocal %376 {approx = true} : vector<1x1xf32> -> vector<1x1xf32>
    %378 = vector.broadcast %377 : vector<1x1xf32> to vector<8x1xf32>
    %379 = arith.mulf %374, %378 : vector<8x1xf32>
    %380 = tpu.concatenate %368, %379 in 0 : vector<8x1xf32>, vector<8x1xf32> -> vector<16x1xf32>
    %cst_139 = arith.constant dense<0.000000e+00> : vector<16x128xf32>
    %381 = tpu.matmul %317, %3, %cst_139 {dimension_numbers = #tpu.dot_dimension_numbers<[1], [0], [0], [1], [0, 0, 1, 1], [], []>} : vector<16x32xf32>, vector<32x128xf32>, vector<16x128xf32> -> vector<16x128xf32>
    %382 = arith.addf %381, %348 : vector<16x128xf32>
    %383 = vector.extract_strided_slice %382 {offsets = [0, 0], sizes = [16, 64], strides = [1, 1]} : vector<16x128xf32> to vector<16x64xf32>
    %384 = arith.negf %383 : vector<16x64xf32>
    %385 = math.exp %384 : vector<16x64xf32>
    %cst_140 = arith.constant 1.000000e+00 : f32
    %386 = vector.broadcast %cst_140 : f32 to vector<16x64xf32>
    %387 = arith.addf %386, %385 : vector<16x64xf32>
    %388 = arith.divf %386, %387 : vector<16x64xf32>
    %389 = vector.extract_strided_slice %388 {offsets = [0, 0], sizes = [16, 32], strides = [1, 1]} : vector<16x64xf32> to vector<16x32xf32>
    %390 = vector.extract_strided_slice %388 {offsets = [0, 32], sizes = [16, 32], strides = [1, 1]} : vector<16x64xf32> to vector<16x32xf32>
    %391 = vector.extract_strided_slice %382 {offsets = [0, 64], sizes = [16, 64], strides = [1, 1]} : vector<16x128xf32> to vector<16x64xf32>
    %cst_141 = arith.constant dense<0.000000e+00> : vector<16xf32>
    %392 = vector.multi_reduction <add>, %391, %cst_141 [1] : vector<16x64xf32> to vector<16xf32>
    %393 = vector.shape_cast %392 : vector<16xf32> to vector<16x1xf32>
    %394 = arith.mulf %391, %391 : vector<16x64xf32>
    %cst_142 = arith.constant dense<0.000000e+00> : vector<16xf32>
    %395 = vector.multi_reduction <add>, %394, %cst_142 [1] : vector<16x64xf32> to vector<16xf32>
    %396 = vector.shape_cast %395 : vector<16xf32> to vector<16x1xf32>
    %cst_143 = arith.constant 1.562500e-02 : f32
    %397 = vector.broadcast %cst_143 : f32 to vector<16x1xf32>
    %398 = arith.mulf %393, %397 : vector<16x1xf32>
    %cst_144 = arith.constant 1.562500e-02 : f32
    %399 = vector.broadcast %cst_144 : f32 to vector<16x1xf32>
    %400 = arith.mulf %396, %399 : vector<16x1xf32>
    %401 = arith.mulf %398, %398 : vector<16x1xf32>
    %402 = arith.subf %400, %401 : vector<16x1xf32>
    %cst_145 = arith.constant 0.000000e+00 : f32
    %403 = vector.broadcast %cst_145 : f32 to vector<16x1xf32>
    %404 = arith.maximumf %402, %403 : vector<16x1xf32>
    %405 = vector.broadcast %398 : vector<16x1xf32> to vector<16x64xf32>
    %406 = arith.subf %391, %405 : vector<16x64xf32>
    %cst_146 = arith.constant 9.99999974E-6 : f32
    %407 = vector.broadcast %cst_146 : f32 to vector<16x1xf32>
    %408 = arith.addf %404, %407 : vector<16x1xf32>
    %409 = math.rsqrt %408 : vector<16x1xf32>
    %410 = vector.broadcast %409 : vector<16x1xf32> to vector<16x64xf32>
    %411 = arith.mulf %406, %410 : vector<16x64xf32>
    %412 = arith.mulf %411, %7 : vector<16x64xf32>
    %413 = arith.addf %412, %10 : vector<16x64xf32>
    %cst_147 = arith.constant 5.000000e-01 : f32
    %414 = vector.broadcast %cst_147 : f32 to vector<16x64xf32>
    %415 = arith.mulf %414, %413 : vector<16x64xf32>
    %cst_148 = arith.constant 0.707106769 : f32
    %416 = vector.broadcast %cst_148 : f32 to vector<16x64xf32>
    %417 = arith.mulf %413, %416 : vector<16x64xf32>
    %418 = math.erf %417 : vector<16x64xf32>
    %cst_149 = arith.constant 1.000000e+00 : f32
    %419 = vector.broadcast %cst_149 : f32 to vector<16x64xf32>
    %420 = arith.addf %419, %418 : vector<16x64xf32>
    %421 = arith.mulf %415, %420 : vector<16x64xf32>
    %cst_150 = arith.constant dense<0.000000e+00> : vector<16x32xf32>
    %422 = tpu.matmul %421, %4, %cst_150 {dimension_numbers = #tpu.dot_dimension_numbers<[1], [0], [0], [1], [0, 0, 1, 1], [], []>} : vector<16x64xf32>, vector<64x32xf32>, vector<16x32xf32> -> vector<16x32xf32>
    %423 = arith.addf %422, %13 : vector<16x32xf32>
    %424 = math.tanh %423 : vector<16x32xf32>
    %cst_151 = arith.constant 9.89999961 : f32
    %425 = vector.broadcast %cst_151 : f32 to vector<16x32xf32>
    %426 = arith.mulf %425, %389 : vector<16x32xf32>
    %cst_152 = arith.constant 1.000000e-01 : f32
    %427 = vector.broadcast %cst_152 : f32 to vector<16x32xf32>
    %428 = arith.addf %427, %426 : vector<16x32xf32>
    %cst_153 = arith.constant 9.99999997E-7 : f32
    %429 = vector.broadcast %cst_153 : f32 to vector<16x32xf32>
    %430 = arith.addf %428, %429 : vector<16x32xf32>
    %cst_154 = arith.constant 1.000000e+00 : f32
    %431 = vector.broadcast %cst_154 : f32 to vector<16x32xf32>
    %432 = arith.subf %431, %390 : vector<16x32xf32>
    %433 = tpu.reciprocal %430 {approx = true} : vector<16x32xf32> -> vector<16x32xf32>
    %434 = arith.mulf %317, %433 : vector<16x32xf32>
    %435 = arith.mulf %432, %434 : vector<16x32xf32>
    %436 = arith.mulf %390, %424 : vector<16x32xf32>
    %437 = arith.addf %435, %436 : vector<16x32xf32>
    %438 = arith.mulf %437, %437 : vector<16x32xf32>
    %cst_155 = arith.constant dense<0.000000e+00> : vector<16xf32>
    %439 = vector.multi_reduction <add>, %438, %cst_155 [1] : vector<16x32xf32> to vector<16xf32>
    %440 = vector.shape_cast %439 : vector<16xf32> to vector<16x1xf32>
    %441 = arith.mulf %317, %317 : vector<16x32xf32>
    %cst_156 = arith.constant dense<0.000000e+00> : vector<16xf32>
    %442 = vector.multi_reduction <add>, %441, %cst_156 [1] : vector<16x32xf32> to vector<16xf32>
    %443 = vector.shape_cast %442 : vector<16xf32> to vector<16x1xf32>
    %444 = arith.cmpf one, %440, %440 : vector<16x1xf32>
    %445 = math.absf %440 : vector<16x1xf32>
    %cst_157 = arith.constant 0x7F800000 : f32
    %446 = vector.broadcast %cst_157 : f32 to vector<16x1xf32>
    %447 = arith.cmpf oeq, %445, %446 : vector<16x1xf32>
    %448 = arith.ori %444, %447 : vector<16x1xi1>
    %cst_158 = arith.constant 9.99999996E-13 : f32
    %449 = vector.broadcast %cst_158 : f32 to vector<16x1xf32>
    %450 = arith.maximumf %443, %449 : vector<16x1xf32>
    %451 = math.sqrt %450 : vector<16x1xf32>
    %cst_159 = arith.constant 1.000000e-24 : f32
    %452 = vector.broadcast %cst_159 : f32 to vector<16x1xf32>
    %453 = arith.maximumf %440, %452 : vector<16x1xf32>
    %454 = math.rsqrt %453 : vector<16x1xf32>
    %455 = arith.mulf %454, %451 : vector<16x1xf32>
    %456 = vector.broadcast %455 : vector<16x1xf32> to vector<16x32xf32>
    %457 = arith.mulf %437, %456 : vector<16x32xf32>
    %458 = vector.shape_cast %448 : vector<16x1xi1> to vector<16x1xi1>
    %459 = vector.broadcast %458 : vector<16x1xi1> to vector<16x32xi1>
    %460 = arith.select %459, %317, %457 : vector<16x32xi1>, vector<16x32xf32>
    %cst_160 = arith.constant 0.00999999977 : f32
    %461 = vector.broadcast %cst_160 : f32 to vector<16x1xf32>
    %462 = arith.cmpf ogt, %380, %461 : vector<16x1xf32>
    %cst_161 = arith.constant 1.000000e+00 : f32
    %463 = vector.broadcast %cst_161 : f32 to vector<16x1xf32>
    %464 = arith.subf %463, %380 : vector<16x1xf32>
    %465 = vector.broadcast %464 : vector<16x1xf32> to vector<16x32xf32>
    %466 = arith.mulf %317, %465 : vector<16x32xf32>
    %467 = vector.broadcast %380 : vector<16x1xf32> to vector<16x32xf32>
    %468 = arith.mulf %460, %467 : vector<16x32xf32>
    %469 = arith.addf %466, %468 : vector<16x32xf32>
    %470 = vector.shape_cast %462 : vector<16x1xi1> to vector<16x1xi1>
    %471 = vector.broadcast %470 : vector<16x1xi1> to vector<16x32xi1>
    %472 = arith.select %471, %469, %317 : vector<16x32xi1>, vector<16x32xf32>
    %cst_162 = arith.constant 0.000000e+00 : f32
    %473 = vector.broadcast %cst_162 : f32 to vector<16x1xf32>
    %474 = arith.select %462, %380, %473 : vector<16x1xi1>, vector<16x1xf32>
    %475 = arith.addf %322, %474 : vector<16x1xf32>
    %cst_163 = arith.constant 9.900000e-01 : f32
    %476 = vector.broadcast %cst_163 : f32 to vector<16x1xf32>
    %477 = arith.mulf %475, %476 : vector<16x1xf32>
    %cst_164 = arith.constant 9.800000e-01 : f32
    %478 = vector.broadcast %cst_164 : f32 to vector<16x1xf32>
    %479 = arith.mulf %326, %478 : vector<16x1xf32>
    %cst_165 = arith.constant 1.000000e+00 : f32
    %480 = vector.broadcast %cst_165 : f32 to vector<16x1xf32>
    %481 = arith.addf %479, %480 : vector<16x1xf32>
    %c3_i32 = arith.constant 3 : i32
    %c2_i32_166 = arith.constant 2 : i32
    %482 = arith.muli %c3_i32, %c2_i32_166 : i32
    %c0_i32_167 = arith.constant 0 : i32
    %483 = arith.addi %482, %c0_i32_167 : i32
    %c0_168 = arith.constant 0 : index
    %484 = arith.index_cast %483 : i32 to index
    %c0_169 = arith.constant 0 : index
    %485 = tpu.strided_load %arg2[%c0_168, %484, %c0_169] {strides = array<i32: 1, 0, 1>} : memref<1x16x32xf32, #tpu.memory_space<vmem>>, vector<1x8x32xf32>
    %486 = vector.shape_cast %485 : vector<1x8x32xf32> to vector<8x32xf32>
    %c2_i32_170 = arith.constant 2 : i32
    %487 = arith.muli %c3_i32, %c2_i32_170 : i32
    %c1_i32_171 = arith.constant 1 : i32
    %488 = arith.addi %487, %c1_i32_171 : i32
    %c0_172 = arith.constant 0 : index
    %489 = arith.index_cast %488 : i32 to index
    %c0_173 = arith.constant 0 : index
    %490 = tpu.strided_load %arg2[%c0_172, %489, %c0_173] {strides = array<i32: 1, 0, 1>} : memref<1x16x32xf32, #tpu.memory_space<vmem>>, vector<1x8x32xf32>
    %491 = vector.shape_cast %490 : vector<1x8x32xf32> to vector<8x32xf32>
    %492 = tpu.concatenate %486, %491 in 0 : vector<8x32xf32>, vector<8x32xf32> -> vector<16x32xf32>
    %c2_i32_174 = arith.constant 2 : i32
    %493 = arith.muli %c3_i32, %c2_i32_174 : i32
    %c0_i32_175 = arith.constant 0 : i32
    %494 = arith.addi %493, %c0_i32_175 : i32
    %c0_176 = arith.constant 0 : index
    %495 = arith.index_cast %494 : i32 to index
    %c0_177 = arith.constant 0 : index
    %496 = tpu.strided_load %arg3[%c0_176, %495, %c0_177] {strides = array<i32: 1, 0, 1>} : memref<1x16x128xf32, #tpu.memory_space<vmem>>, vector<1x8x128xf32>
    %497 = vector.shape_cast %496 : vector<1x8x128xf32> to vector<8x128xf32>
    %c2_i32_178 = arith.constant 2 : i32
    %498 = arith.muli %c3_i32, %c2_i32_178 : i32
    %c1_i32_179 = arith.constant 1 : i32
    %499 = arith.addi %498, %c1_i32_179 : i32
    %c0_180 = arith.constant 0 : index
    %500 = arith.index_cast %499 : i32 to index
    %c0_181 = arith.constant 0 : index
    %501 = tpu.strided_load %arg3[%c0_180, %500, %c0_181] {strides = array<i32: 1, 0, 1>} : memref<1x16x128xf32, #tpu.memory_space<vmem>>, vector<1x8x128xf32>
    %502 = vector.shape_cast %501 : vector<1x8x128xf32> to vector<8x128xf32>
    %503 = tpu.concatenate %497, %502 in 0 : vector<8x128xf32>, vector<8x128xf32> -> vector<16x128xf32>
    %504 = arith.mulf %472, %492 : vector<16x32xf32>
    %cst_182 = arith.constant dense<0.000000e+00> : vector<16xf32>
    %505 = vector.multi_reduction <add>, %504, %cst_182 [1] : vector<16x32xf32> to vector<16xf32>
    %506 = vector.shape_cast %505 : vector<16xf32> to vector<16x1xf32>
    %cst_183 = arith.constant 1.000000e-01 : f32
    %507 = vector.broadcast %cst_183 : f32 to vector<16x1xf32>
    %508 = arith.mulf %507, %481 : vector<16x1xf32>
    %509 = arith.subf %506, %508 : vector<16x1xf32>
    %cst_184 = arith.constant 2.000000e-01 : f32
    %510 = vector.broadcast %cst_184 : f32 to vector<16x1xf32>
    %511 = arith.mulf %510, %477 : vector<16x1xf32>
    %512 = arith.subf %509, %511 : vector<16x1xf32>
    %513 = vector.extract_strided_slice %512 {offsets = [0, 0], sizes = [8, 1], strides = [1, 1]} : vector<16x1xf32> to vector<8x1xf32>
    %cst_185 = arith.constant dense<0xFF800000> : vector<1xf32>
    %514 = vector.multi_reduction <maximumf>, %513, %cst_185 [0] : vector<8x1xf32> to vector<1xf32>
    %515 = vector.shape_cast %514 : vector<1xf32> to vector<1x1xf32>
    %516 = vector.broadcast %515 : vector<1x1xf32> to vector<8x1xf32>
    %517 = arith.subf %513, %516 : vector<8x1xf32>
    %518 = math.exp %517 : vector<8x1xf32>
    %cst_186 = arith.constant dense<0.000000e+00> : vector<1xf32>
    %519 = vector.multi_reduction <add>, %518, %cst_186 [0] : vector<8x1xf32> to vector<1xf32>
    %520 = vector.shape_cast %519 : vector<1xf32> to vector<1x1xf32>
    %521 = tpu.reciprocal %520 {approx = true} : vector<1x1xf32> -> vector<1x1xf32>
    %522 = vector.broadcast %521 : vector<1x1xf32> to vector<8x1xf32>
    %523 = arith.mulf %518, %522 : vector<8x1xf32>
    %524 = vector.extract_strided_slice %512 {offsets = [8, 0], sizes = [8, 1], strides = [1, 1]} : vector<16x1xf32> to vector<8x1xf32>
    %cst_187 = arith.constant dense<0xFF800000> : vector<1xf32>
    %525 = vector.multi_reduction <maximumf>, %524, %cst_187 [0] : vector<8x1xf32> to vector<1xf32>
    %526 = vector.shape_cast %525 : vector<1xf32> to vector<1x1xf32>
    %527 = vector.broadcast %526 : vector<1x1xf32> to vector<8x1xf32>
    %528 = arith.subf %524, %527 : vector<8x1xf32>
    %529 = math.exp %528 : vector<8x1xf32>
    %cst_188 = arith.constant dense<0.000000e+00> : vector<1xf32>
    %530 = vector.multi_reduction <add>, %529, %cst_188 [0] : vector<8x1xf32> to vector<1xf32>
    %531 = vector.shape_cast %530 : vector<1xf32> to vector<1x1xf32>
    %532 = tpu.reciprocal %531 {approx = true} : vector<1x1xf32> -> vector<1x1xf32>
    %533 = vector.broadcast %532 : vector<1x1xf32> to vector<8x1xf32>
    %534 = arith.mulf %529, %533 : vector<8x1xf32>
    %535 = tpu.concatenate %523, %534 in 0 : vector<8x1xf32>, vector<8x1xf32> -> vector<16x1xf32>
    %cst_189 = arith.constant dense<0.000000e+00> : vector<16x128xf32>
    %536 = tpu.matmul %472, %3, %cst_189 {dimension_numbers = #tpu.dot_dimension_numbers<[1], [0], [0], [1], [0, 0, 1, 1], [], []>} : vector<16x32xf32>, vector<32x128xf32>, vector<16x128xf32> -> vector<16x128xf32>
    %537 = arith.addf %536, %503 : vector<16x128xf32>
    %538 = vector.extract_strided_slice %537 {offsets = [0, 0], sizes = [16, 64], strides = [1, 1]} : vector<16x128xf32> to vector<16x64xf32>
    %539 = arith.negf %538 : vector<16x64xf32>
    %540 = math.exp %539 : vector<16x64xf32>
    %cst_190 = arith.constant 1.000000e+00 : f32
    %541 = vector.broadcast %cst_190 : f32 to vector<16x64xf32>
    %542 = arith.addf %541, %540 : vector<16x64xf32>
    %543 = arith.divf %541, %542 : vector<16x64xf32>
    %544 = vector.extract_strided_slice %543 {offsets = [0, 0], sizes = [16, 32], strides = [1, 1]} : vector<16x64xf32> to vector<16x32xf32>
    %545 = vector.extract_strided_slice %543 {offsets = [0, 32], sizes = [16, 32], strides = [1, 1]} : vector<16x64xf32> to vector<16x32xf32>
    %546 = vector.extract_strided_slice %537 {offsets = [0, 64], sizes = [16, 64], strides = [1, 1]} : vector<16x128xf32> to vector<16x64xf32>
    %cst_191 = arith.constant dense<0.000000e+00> : vector<16xf32>
    %547 = vector.multi_reduction <add>, %546, %cst_191 [1] : vector<16x64xf32> to vector<16xf32>
    %548 = vector.shape_cast %547 : vector<16xf32> to vector<16x1xf32>
    %549 = arith.mulf %546, %546 : vector<16x64xf32>
    %cst_192 = arith.constant dense<0.000000e+00> : vector<16xf32>
    %550 = vector.multi_reduction <add>, %549, %cst_192 [1] : vector<16x64xf32> to vector<16xf32>
    %551 = vector.shape_cast %550 : vector<16xf32> to vector<16x1xf32>
    %cst_193 = arith.constant 1.562500e-02 : f32
    %552 = vector.broadcast %cst_193 : f32 to vector<16x1xf32>
    %553 = arith.mulf %548, %552 : vector<16x1xf32>
    %cst_194 = arith.constant 1.562500e-02 : f32
    %554 = vector.broadcast %cst_194 : f32 to vector<16x1xf32>
    %555 = arith.mulf %551, %554 : vector<16x1xf32>
    %556 = arith.mulf %553, %553 : vector<16x1xf32>
    %557 = arith.subf %555, %556 : vector<16x1xf32>
    %cst_195 = arith.constant 0.000000e+00 : f32
    %558 = vector.broadcast %cst_195 : f32 to vector<16x1xf32>
    %559 = arith.maximumf %557, %558 : vector<16x1xf32>
    %560 = vector.broadcast %553 : vector<16x1xf32> to vector<16x64xf32>
    %561 = arith.subf %546, %560 : vector<16x64xf32>
    %cst_196 = arith.constant 9.99999974E-6 : f32
    %562 = vector.broadcast %cst_196 : f32 to vector<16x1xf32>
    %563 = arith.addf %559, %562 : vector<16x1xf32>
    %564 = math.rsqrt %563 : vector<16x1xf32>
    %565 = vector.broadcast %564 : vector<16x1xf32> to vector<16x64xf32>
    %566 = arith.mulf %561, %565 : vector<16x64xf32>
    %567 = arith.mulf %566, %7 : vector<16x64xf32>
    %568 = arith.addf %567, %10 : vector<16x64xf32>
    %cst_197 = arith.constant 5.000000e-01 : f32
    %569 = vector.broadcast %cst_197 : f32 to vector<16x64xf32>
    %570 = arith.mulf %569, %568 : vector<16x64xf32>
    %cst_198 = arith.constant 0.707106769 : f32
    %571 = vector.broadcast %cst_198 : f32 to vector<16x64xf32>
    %572 = arith.mulf %568, %571 : vector<16x64xf32>
    %573 = math.erf %572 : vector<16x64xf32>
    %cst_199 = arith.constant 1.000000e+00 : f32
    %574 = vector.broadcast %cst_199 : f32 to vector<16x64xf32>
    %575 = arith.addf %574, %573 : vector<16x64xf32>
    %576 = arith.mulf %570, %575 : vector<16x64xf32>
    %cst_200 = arith.constant dense<0.000000e+00> : vector<16x32xf32>
    %577 = tpu.matmul %576, %4, %cst_200 {dimension_numbers = #tpu.dot_dimension_numbers<[1], [0], [0], [1], [0, 0, 1, 1], [], []>} : vector<16x64xf32>, vector<64x32xf32>, vector<16x32xf32> -> vector<16x32xf32>
    %578 = arith.addf %577, %13 : vector<16x32xf32>
    %579 = math.tanh %578 : vector<16x32xf32>
    %cst_201 = arith.constant 9.89999961 : f32
    %580 = vector.broadcast %cst_201 : f32 to vector<16x32xf32>
    %581 = arith.mulf %580, %544 : vector<16x32xf32>
    %cst_202 = arith.constant 1.000000e-01 : f32
    %582 = vector.broadcast %cst_202 : f32 to vector<16x32xf32>
    %583 = arith.addf %582, %581 : vector<16x32xf32>
    %cst_203 = arith.constant 9.99999997E-7 : f32
    %584 = vector.broadcast %cst_203 : f32 to vector<16x32xf32>
    %585 = arith.addf %583, %584 : vector<16x32xf32>
    %cst_204 = arith.constant 1.000000e+00 : f32
    %586 = vector.broadcast %cst_204 : f32 to vector<16x32xf32>
    %587 = arith.subf %586, %545 : vector<16x32xf32>
    %588 = tpu.reciprocal %585 {approx = true} : vector<16x32xf32> -> vector<16x32xf32>
    %589 = arith.mulf %472, %588 : vector<16x32xf32>
    %590 = arith.mulf %587, %589 : vector<16x32xf32>
    %591 = arith.mulf %545, %579 : vector<16x32xf32>
    %592 = arith.addf %590, %591 : vector<16x32xf32>
    %593 = arith.mulf %592, %592 : vector<16x32xf32>
    %cst_205 = arith.constant dense<0.000000e+00> : vector<16xf32>
    %594 = vector.multi_reduction <add>, %593, %cst_205 [1] : vector<16x32xf32> to vector<16xf32>
    %595 = vector.shape_cast %594 : vector<16xf32> to vector<16x1xf32>
    %596 = arith.mulf %472, %472 : vector<16x32xf32>
    %cst_206 = arith.constant dense<0.000000e+00> : vector<16xf32>
    %597 = vector.multi_reduction <add>, %596, %cst_206 [1] : vector<16x32xf32> to vector<16xf32>
    %598 = vector.shape_cast %597 : vector<16xf32> to vector<16x1xf32>
    %599 = arith.cmpf one, %595, %595 : vector<16x1xf32>
    %600 = math.absf %595 : vector<16x1xf32>
    %cst_207 = arith.constant 0x7F800000 : f32
    %601 = vector.broadcast %cst_207 : f32 to vector<16x1xf32>
    %602 = arith.cmpf oeq, %600, %601 : vector<16x1xf32>
    %603 = arith.ori %599, %602 : vector<16x1xi1>
    %cst_208 = arith.constant 9.99999996E-13 : f32
    %604 = vector.broadcast %cst_208 : f32 to vector<16x1xf32>
    %605 = arith.maximumf %598, %604 : vector<16x1xf32>
    %606 = math.sqrt %605 : vector<16x1xf32>
    %cst_209 = arith.constant 1.000000e-24 : f32
    %607 = vector.broadcast %cst_209 : f32 to vector<16x1xf32>
    %608 = arith.maximumf %595, %607 : vector<16x1xf32>
    %609 = math.rsqrt %608 : vector<16x1xf32>
    %610 = arith.mulf %609, %606 : vector<16x1xf32>
    %611 = vector.broadcast %610 : vector<16x1xf32> to vector<16x32xf32>
    %612 = arith.mulf %592, %611 : vector<16x32xf32>
    %613 = vector.shape_cast %603 : vector<16x1xi1> to vector<16x1xi1>
    %614 = vector.broadcast %613 : vector<16x1xi1> to vector<16x32xi1>
    %615 = arith.select %614, %472, %612 : vector<16x32xi1>, vector<16x32xf32>
    %cst_210 = arith.constant 0.00999999977 : f32
    %616 = vector.broadcast %cst_210 : f32 to vector<16x1xf32>
    %617 = arith.cmpf ogt, %535, %616 : vector<16x1xf32>
    %cst_211 = arith.constant 1.000000e+00 : f32
    %618 = vector.broadcast %cst_211 : f32 to vector<16x1xf32>
    %619 = arith.subf %618, %535 : vector<16x1xf32>
    %620 = vector.broadcast %619 : vector<16x1xf32> to vector<16x32xf32>
    %621 = arith.mulf %472, %620 : vector<16x32xf32>
    %622 = vector.broadcast %535 : vector<16x1xf32> to vector<16x32xf32>
    %623 = arith.mulf %615, %622 : vector<16x32xf32>
    %624 = arith.addf %621, %623 : vector<16x32xf32>
    %625 = vector.shape_cast %617 : vector<16x1xi1> to vector<16x1xi1>
    %626 = vector.broadcast %625 : vector<16x1xi1> to vector<16x32xi1>
    %627 = arith.select %626, %624, %472 : vector<16x32xi1>, vector<16x32xf32>
    %cst_212 = arith.constant 0.000000e+00 : f32
    %628 = vector.broadcast %cst_212 : f32 to vector<16x1xf32>
    %629 = arith.select %617, %535, %628 : vector<16x1xi1>, vector<16x1xf32>
    %630 = arith.addf %477, %629 : vector<16x1xf32>
    %cst_213 = arith.constant 9.900000e-01 : f32
    %631 = vector.broadcast %cst_213 : f32 to vector<16x1xf32>
    %632 = arith.mulf %630, %631 : vector<16x1xf32>
    %cst_214 = arith.constant 9.800000e-01 : f32
    %633 = vector.broadcast %cst_214 : f32 to vector<16x1xf32>
    %634 = arith.mulf %481, %633 : vector<16x1xf32>
    %cst_215 = arith.constant 1.000000e+00 : f32
    %635 = vector.broadcast %cst_215 : f32 to vector<16x1xf32>
    %636 = arith.addf %634, %635 : vector<16x1xf32>
    %c4_i32 = arith.constant 4 : i32
    %c2_i32_216 = arith.constant 2 : i32
    %637 = arith.muli %c4_i32, %c2_i32_216 : i32
    %c0_i32_217 = arith.constant 0 : i32
    %638 = arith.addi %637, %c0_i32_217 : i32
    %c0_218 = arith.constant 0 : index
    %639 = arith.index_cast %638 : i32 to index
    %c0_219 = arith.constant 0 : index
    %640 = tpu.strided_load %arg2[%c0_218, %639, %c0_219] {strides = array<i32: 1, 0, 1>} : memref<1x16x32xf32, #tpu.memory_space<vmem>>, vector<1x8x32xf32>
    %641 = vector.shape_cast %640 : vector<1x8x32xf32> to vector<8x32xf32>
    %c2_i32_220 = arith.constant 2 : i32
    %642 = arith.muli %c4_i32, %c2_i32_220 : i32
    %c1_i32_221 = arith.constant 1 : i32
    %643 = arith.addi %642, %c1_i32_221 : i32
    %c0_222 = arith.constant 0 : index
    %644 = arith.index_cast %643 : i32 to index
    %c0_223 = arith.constant 0 : index
    %645 = tpu.strided_load %arg2[%c0_222, %644, %c0_223] {strides = array<i32: 1, 0, 1>} : memref<1x16x32xf32, #tpu.memory_space<vmem>>, vector<1x8x32xf32>
    %646 = vector.shape_cast %645 : vector<1x8x32xf32> to vector<8x32xf32>
    %647 = tpu.concatenate %641, %646 in 0 : vector<8x32xf32>, vector<8x32xf32> -> vector<16x32xf32>
    %c2_i32_224 = arith.constant 2 : i32
    %648 = arith.muli %c4_i32, %c2_i32_224 : i32
    %c0_i32_225 = arith.constant 0 : i32
    %649 = arith.addi %648, %c0_i32_225 : i32
    %c0_226 = arith.constant 0 : index
    %650 = arith.index_cast %649 : i32 to index
    %c0_227 = arith.constant 0 : index
    %651 = tpu.strided_load %arg3[%c0_226, %650, %c0_227] {strides = array<i32: 1, 0, 1>} : memref<1x16x128xf32, #tpu.memory_space<vmem>>, vector<1x8x128xf32>
    %652 = vector.shape_cast %651 : vector<1x8x128xf32> to vector<8x128xf32>
    %c2_i32_228 = arith.constant 2 : i32
    %653 = arith.muli %c4_i32, %c2_i32_228 : i32
    %c1_i32_229 = arith.constant 1 : i32
    %654 = arith.addi %653, %c1_i32_229 : i32
    %c0_230 = arith.constant 0 : index
    %655 = arith.index_cast %654 : i32 to index
    %c0_231 = arith.constant 0 : index
    %656 = tpu.strided_load %arg3[%c0_230, %655, %c0_231] {strides = array<i32: 1, 0, 1>} : memref<1x16x128xf32, #tpu.memory_space<vmem>>, vector<1x8x128xf32>
    %657 = vector.shape_cast %656 : vector<1x8x128xf32> to vector<8x128xf32>
    %658 = tpu.concatenate %652, %657 in 0 : vector<8x128xf32>, vector<8x128xf32> -> vector<16x128xf32>
    %659 = arith.mulf %627, %647 : vector<16x32xf32>
    %cst_232 = arith.constant dense<0.000000e+00> : vector<16xf32>
    %660 = vector.multi_reduction <add>, %659, %cst_232 [1] : vector<16x32xf32> to vector<16xf32>
    %661 = vector.shape_cast %660 : vector<16xf32> to vector<16x1xf32>
    %cst_233 = arith.constant 1.000000e-01 : f32
    %662 = vector.broadcast %cst_233 : f32 to vector<16x1xf32>
    %663 = arith.mulf %662, %636 : vector<16x1xf32>
    %664 = arith.subf %661, %663 : vector<16x1xf32>
    %cst_234 = arith.constant 2.000000e-01 : f32
    %665 = vector.broadcast %cst_234 : f32 to vector<16x1xf32>
    %666 = arith.mulf %665, %632 : vector<16x1xf32>
    %667 = arith.subf %664, %666 : vector<16x1xf32>
    %668 = vector.extract_strided_slice %667 {offsets = [0, 0], sizes = [8, 1], strides = [1, 1]} : vector<16x1xf32> to vector<8x1xf32>
    %cst_235 = arith.constant dense<0xFF800000> : vector<1xf32>
    %669 = vector.multi_reduction <maximumf>, %668, %cst_235 [0] : vector<8x1xf32> to vector<1xf32>
    %670 = vector.shape_cast %669 : vector<1xf32> to vector<1x1xf32>
    %671 = vector.broadcast %670 : vector<1x1xf32> to vector<8x1xf32>
    %672 = arith.subf %668, %671 : vector<8x1xf32>
    %673 = math.exp %672 : vector<8x1xf32>
    %cst_236 = arith.constant dense<0.000000e+00> : vector<1xf32>
    %674 = vector.multi_reduction <add>, %673, %cst_236 [0] : vector<8x1xf32> to vector<1xf32>
    %675 = vector.shape_cast %674 : vector<1xf32> to vector<1x1xf32>
    %676 = tpu.reciprocal %675 {approx = true} : vector<1x1xf32> -> vector<1x1xf32>
    %677 = vector.broadcast %676 : vector<1x1xf32> to vector<8x1xf32>
    %678 = arith.mulf %673, %677 : vector<8x1xf32>
    %679 = vector.extract_strided_slice %667 {offsets = [8, 0], sizes = [8, 1], strides = [1, 1]} : vector<16x1xf32> to vector<8x1xf32>
    %cst_237 = arith.constant dense<0xFF800000> : vector<1xf32>
    %680 = vector.multi_reduction <maximumf>, %679, %cst_237 [0] : vector<8x1xf32> to vector<1xf32>
    %681 = vector.shape_cast %680 : vector<1xf32> to vector<1x1xf32>
    %682 = vector.broadcast %681 : vector<1x1xf32> to vector<8x1xf32>
    %683 = arith.subf %679, %682 : vector<8x1xf32>
    %684 = math.exp %683 : vector<8x1xf32>
    %cst_238 = arith.constant dense<0.000000e+00> : vector<1xf32>
    %685 = vector.multi_reduction <add>, %684, %cst_238 [0] : vector<8x1xf32> to vector<1xf32>
    %686 = vector.shape_cast %685 : vector<1xf32> to vector<1x1xf32>
    %687 = tpu.reciprocal %686 {approx = true} : vector<1x1xf32> -> vector<1x1xf32>
    %688 = vector.broadcast %687 : vector<1x1xf32> to vector<8x1xf32>
    %689 = arith.mulf %684, %688 : vector<8x1xf32>
    %690 = tpu.concatenate %678, %689 in 0 : vector<8x1xf32>, vector<8x1xf32> -> vector<16x1xf32>
    %cst_239 = arith.constant dense<0.000000e+00> : vector<16x128xf32>
    %691 = tpu.matmul %627, %3, %cst_239 {dimension_numbers = #tpu.dot_dimension_numbers<[1], [0], [0], [1], [0, 0, 1, 1], [], []>} : vector<16x32xf32>, vector<32x128xf32>, vector<16x128xf32> -> vector<16x128xf32>
    %692 = arith.addf %691, %658 : vector<16x128xf32>
    %693 = vector.extract_strided_slice %692 {offsets = [0, 0], sizes = [16, 64], strides = [1, 1]} : vector<16x128xf32> to vector<16x64xf32>
    %694 = arith.negf %693 : vector<16x64xf32>
    %695 = math.exp %694 : vector<16x64xf32>
    %cst_240 = arith.constant 1.000000e+00 : f32
    %696 = vector.broadcast %cst_240 : f32 to vector<16x64xf32>
    %697 = arith.addf %696, %695 : vector<16x64xf32>
    %698 = arith.divf %696, %697 : vector<16x64xf32>
    %699 = vector.extract_strided_slice %698 {offsets = [0, 0], sizes = [16, 32], strides = [1, 1]} : vector<16x64xf32> to vector<16x32xf32>
    %700 = vector.extract_strided_slice %698 {offsets = [0, 32], sizes = [16, 32], strides = [1, 1]} : vector<16x64xf32> to vector<16x32xf32>
    %701 = vector.extract_strided_slice %692 {offsets = [0, 64], sizes = [16, 64], strides = [1, 1]} : vector<16x128xf32> to vector<16x64xf32>
    %cst_241 = arith.constant dense<0.000000e+00> : vector<16xf32>
    %702 = vector.multi_reduction <add>, %701, %cst_241 [1] : vector<16x64xf32> to vector<16xf32>
    %703 = vector.shape_cast %702 : vector<16xf32> to vector<16x1xf32>
    %704 = arith.mulf %701, %701 : vector<16x64xf32>
    %cst_242 = arith.constant dense<0.000000e+00> : vector<16xf32>
    %705 = vector.multi_reduction <add>, %704, %cst_242 [1] : vector<16x64xf32> to vector<16xf32>
    %706 = vector.shape_cast %705 : vector<16xf32> to vector<16x1xf32>
    %cst_243 = arith.constant 1.562500e-02 : f32
    %707 = vector.broadcast %cst_243 : f32 to vector<16x1xf32>
    %708 = arith.mulf %703, %707 : vector<16x1xf32>
    %cst_244 = arith.constant 1.562500e-02 : f32
    %709 = vector.broadcast %cst_244 : f32 to vector<16x1xf32>
    %710 = arith.mulf %706, %709 : vector<16x1xf32>
    %711 = arith.mulf %708, %708 : vector<16x1xf32>
    %712 = arith.subf %710, %711 : vector<16x1xf32>
    %cst_245 = arith.constant 0.000000e+00 : f32
    %713 = vector.broadcast %cst_245 : f32 to vector<16x1xf32>
    %714 = arith.maximumf %712, %713 : vector<16x1xf32>
    %715 = vector.broadcast %708 : vector<16x1xf32> to vector<16x64xf32>
    %716 = arith.subf %701, %715 : vector<16x64xf32>
    %cst_246 = arith.constant 9.99999974E-6 : f32
    %717 = vector.broadcast %cst_246 : f32 to vector<16x1xf32>
    %718 = arith.addf %714, %717 : vector<16x1xf32>
    %719 = math.rsqrt %718 : vector<16x1xf32>
    %720 = vector.broadcast %719 : vector<16x1xf32> to vector<16x64xf32>
    %721 = arith.mulf %716, %720 : vector<16x64xf32>
    %722 = arith.mulf %721, %7 : vector<16x64xf32>
    %723 = arith.addf %722, %10 : vector<16x64xf32>
    %cst_247 = arith.constant 5.000000e-01 : f32
    %724 = vector.broadcast %cst_247 : f32 to vector<16x64xf32>
    %725 = arith.mulf %724, %723 : vector<16x64xf32>
    %cst_248 = arith.constant 0.707106769 : f32
    %726 = vector.broadcast %cst_248 : f32 to vector<16x64xf32>
    %727 = arith.mulf %723, %726 : vector<16x64xf32>
    %728 = math.erf %727 : vector<16x64xf32>
    %cst_249 = arith.constant 1.000000e+00 : f32
    %729 = vector.broadcast %cst_249 : f32 to vector<16x64xf32>
    %730 = arith.addf %729, %728 : vector<16x64xf32>
    %731 = arith.mulf %725, %730 : vector<16x64xf32>
    %cst_250 = arith.constant dense<0.000000e+00> : vector<16x32xf32>
    %732 = tpu.matmul %731, %4, %cst_250 {dimension_numbers = #tpu.dot_dimension_numbers<[1], [0], [0], [1], [0, 0, 1, 1], [], []>} : vector<16x64xf32>, vector<64x32xf32>, vector<16x32xf32> -> vector<16x32xf32>
    %733 = arith.addf %732, %13 : vector<16x32xf32>
    %734 = math.tanh %733 : vector<16x32xf32>
    %cst_251 = arith.constant 9.89999961 : f32
    %735 = vector.broadcast %cst_251 : f32 to vector<16x32xf32>
    %736 = arith.mulf %735, %699 : vector<16x32xf32>
    %cst_252 = arith.constant 1.000000e-01 : f32
    %737 = vector.broadcast %cst_252 : f32 to vector<16x32xf32>
    %738 = arith.addf %737, %736 : vector<16x32xf32>
    %cst_253 = arith.constant 9.99999997E-7 : f32
    %739 = vector.broadcast %cst_253 : f32 to vector<16x32xf32>
    %740 = arith.addf %738, %739 : vector<16x32xf32>
    %cst_254 = arith.constant 1.000000e+00 : f32
    %741 = vector.broadcast %cst_254 : f32 to vector<16x32xf32>
    %742 = arith.subf %741, %700 : vector<16x32xf32>
    %743 = tpu.reciprocal %740 {approx = true} : vector<16x32xf32> -> vector<16x32xf32>
    %744 = arith.mulf %627, %743 : vector<16x32xf32>
    %745 = arith.mulf %742, %744 : vector<16x32xf32>
    %746 = arith.mulf %700, %734 : vector<16x32xf32>
    %747 = arith.addf %745, %746 : vector<16x32xf32>
    %748 = arith.mulf %747, %747 : vector<16x32xf32>
    %cst_255 = arith.constant dense<0.000000e+00> : vector<16xf32>
    %749 = vector.multi_reduction <add>, %748, %cst_255 [1] : vector<16x32xf32> to vector<16xf32>
    %750 = vector.shape_cast %749 : vector<16xf32> to vector<16x1xf32>
    %751 = arith.mulf %627, %627 : vector<16x32xf32>
    %cst_256 = arith.constant dense<0.000000e+00> : vector<16xf32>
    %752 = vector.multi_reduction <add>, %751, %cst_256 [1] : vector<16x32xf32> to vector<16xf32>
    %753 = vector.shape_cast %752 : vector<16xf32> to vector<16x1xf32>
    %754 = arith.cmpf one, %750, %750 : vector<16x1xf32>
    %755 = math.absf %750 : vector<16x1xf32>
    %cst_257 = arith.constant 0x7F800000 : f32
    %756 = vector.broadcast %cst_257 : f32 to vector<16x1xf32>
    %757 = arith.cmpf oeq, %755, %756 : vector<16x1xf32>
    %758 = arith.ori %754, %757 : vector<16x1xi1>
    %cst_258 = arith.constant 9.99999996E-13 : f32
    %759 = vector.broadcast %cst_258 : f32 to vector<16x1xf32>
    %760 = arith.maximumf %753, %759 : vector<16x1xf32>
    %761 = math.sqrt %760 : vector<16x1xf32>
    %cst_259 = arith.constant 1.000000e-24 : f32
    %762 = vector.broadcast %cst_259 : f32 to vector<16x1xf32>
    %763 = arith.maximumf %750, %762 : vector<16x1xf32>
    %764 = math.rsqrt %763 : vector<16x1xf32>
    %765 = arith.mulf %764, %761 : vector<16x1xf32>
    %766 = vector.broadcast %765 : vector<16x1xf32> to vector<16x32xf32>
    %767 = arith.mulf %747, %766 : vector<16x32xf32>
    %768 = vector.shape_cast %758 : vector<16x1xi1> to vector<16x1xi1>
    %769 = vector.broadcast %768 : vector<16x1xi1> to vector<16x32xi1>
    %770 = arith.select %769, %627, %767 : vector<16x32xi1>, vector<16x32xf32>
    %cst_260 = arith.constant 0.00999999977 : f32
    %771 = vector.broadcast %cst_260 : f32 to vector<16x1xf32>
    %772 = arith.cmpf ogt, %690, %771 : vector<16x1xf32>
    %cst_261 = arith.constant 1.000000e+00 : f32
    %773 = vector.broadcast %cst_261 : f32 to vector<16x1xf32>
    %774 = arith.subf %773, %690 : vector<16x1xf32>
    %775 = vector.broadcast %774 : vector<16x1xf32> to vector<16x32xf32>
    %776 = arith.mulf %627, %775 : vector<16x32xf32>
    %777 = vector.broadcast %690 : vector<16x1xf32> to vector<16x32xf32>
    %778 = arith.mulf %770, %777 : vector<16x32xf32>
    %779 = arith.addf %776, %778 : vector<16x32xf32>
    %780 = vector.shape_cast %772 : vector<16x1xi1> to vector<16x1xi1>
    %781 = vector.broadcast %780 : vector<16x1xi1> to vector<16x32xi1>
    %782 = arith.select %781, %779, %627 : vector<16x32xi1>, vector<16x32xf32>
    %cst_262 = arith.constant 0.000000e+00 : f32
    %783 = vector.broadcast %cst_262 : f32 to vector<16x1xf32>
    %784 = arith.select %772, %690, %783 : vector<16x1xi1>, vector<16x1xf32>
    %785 = arith.addf %632, %784 : vector<16x1xf32>
    %cst_263 = arith.constant 9.900000e-01 : f32
    %786 = vector.broadcast %cst_263 : f32 to vector<16x1xf32>
    %787 = arith.mulf %785, %786 : vector<16x1xf32>
    %cst_264 = arith.constant 9.800000e-01 : f32
    %788 = vector.broadcast %cst_264 : f32 to vector<16x1xf32>
    %789 = arith.mulf %636, %788 : vector<16x1xf32>
    %cst_265 = arith.constant 1.000000e+00 : f32
    %790 = vector.broadcast %cst_265 : f32 to vector<16x1xf32>
    %791 = arith.addf %789, %790 : vector<16x1xf32>
    %c5_i32 = arith.constant 5 : i32
    %c2_i32_266 = arith.constant 2 : i32
    %792 = arith.muli %c5_i32, %c2_i32_266 : i32
    %c0_i32_267 = arith.constant 0 : i32
    %793 = arith.addi %792, %c0_i32_267 : i32
    %c0_268 = arith.constant 0 : index
    %794 = arith.index_cast %793 : i32 to index
    %c0_269 = arith.constant 0 : index
    %795 = tpu.strided_load %arg2[%c0_268, %794, %c0_269] {strides = array<i32: 1, 0, 1>} : memref<1x16x32xf32, #tpu.memory_space<vmem>>, vector<1x8x32xf32>
    %796 = vector.shape_cast %795 : vector<1x8x32xf32> to vector<8x32xf32>
    %c2_i32_270 = arith.constant 2 : i32
    %797 = arith.muli %c5_i32, %c2_i32_270 : i32
    %c1_i32_271 = arith.constant 1 : i32
    %798 = arith.addi %797, %c1_i32_271 : i32
    %c0_272 = arith.constant 0 : index
    %799 = arith.index_cast %798 : i32 to index
    %c0_273 = arith.constant 0 : index
    %800 = tpu.strided_load %arg2[%c0_272, %799, %c0_273] {strides = array<i32: 1, 0, 1>} : memref<1x16x32xf32, #tpu.memory_space<vmem>>, vector<1x8x32xf32>
    %801 = vector.shape_cast %800 : vector<1x8x32xf32> to vector<8x32xf32>
    %802 = tpu.concatenate %796, %801 in 0 : vector<8x32xf32>, vector<8x32xf32> -> vector<16x32xf32>
    %c2_i32_274 = arith.constant 2 : i32
    %803 = arith.muli %c5_i32, %c2_i32_274 : i32
    %c0_i32_275 = arith.constant 0 : i32
    %804 = arith.addi %803, %c0_i32_275 : i32
    %c0_276 = arith.constant 0 : index
    %805 = arith.index_cast %804 : i32 to index
    %c0_277 = arith.constant 0 : index
    %806 = tpu.strided_load %arg3[%c0_276, %805, %c0_277] {strides = array<i32: 1, 0, 1>} : memref<1x16x128xf32, #tpu.memory_space<vmem>>, vector<1x8x128xf32>
    %807 = vector.shape_cast %806 : vector<1x8x128xf32> to vector<8x128xf32>
    %c2_i32_278 = arith.constant 2 : i32
    %808 = arith.muli %c5_i32, %c2_i32_278 : i32
    %c1_i32_279 = arith.constant 1 : i32
    %809 = arith.addi %808, %c1_i32_279 : i32
    %c0_280 = arith.constant 0 : index
    %810 = arith.index_cast %809 : i32 to index
    %c0_281 = arith.constant 0 : index
    %811 = tpu.strided_load %arg3[%c0_280, %810, %c0_281] {strides = array<i32: 1, 0, 1>} : memref<1x16x128xf32, #tpu.memory_space<vmem>>, vector<1x8x128xf32>
    %812 = vector.shape_cast %811 : vector<1x8x128xf32> to vector<8x128xf32>
    %813 = tpu.concatenate %807, %812 in 0 : vector<8x128xf32>, vector<8x128xf32> -> vector<16x128xf32>
    %814 = arith.mulf %782, %802 : vector<16x32xf32>
    %cst_282 = arith.constant dense<0.000000e+00> : vector<16xf32>
    %815 = vector.multi_reduction <add>, %814, %cst_282 [1] : vector<16x32xf32> to vector<16xf32>
    %816 = vector.shape_cast %815 : vector<16xf32> to vector<16x1xf32>
    %cst_283 = arith.constant 1.000000e-01 : f32
    %817 = vector.broadcast %cst_283 : f32 to vector<16x1xf32>
    %818 = arith.mulf %817, %791 : vector<16x1xf32>
    %819 = arith.subf %816, %818 : vector<16x1xf32>
    %cst_284 = arith.constant 2.000000e-01 : f32
    %820 = vector.broadcast %cst_284 : f32 to vector<16x1xf32>
    %821 = arith.mulf %820, %787 : vector<16x1xf32>
    %822 = arith.subf %819, %821 : vector<16x1xf32>
    %823 = vector.extract_strided_slice %822 {offsets = [0, 0], sizes = [8, 1], strides = [1, 1]} : vector<16x1xf32> to vector<8x1xf32>
    %cst_285 = arith.constant dense<0xFF800000> : vector<1xf32>
    %824 = vector.multi_reduction <maximumf>, %823, %cst_285 [0] : vector<8x1xf32> to vector<1xf32>
    %825 = vector.shape_cast %824 : vector<1xf32> to vector<1x1xf32>
    %826 = vector.broadcast %825 : vector<1x1xf32> to vector<8x1xf32>
    %827 = arith.subf %823, %826 : vector<8x1xf32>
    %828 = math.exp %827 : vector<8x1xf32>
    %cst_286 = arith.constant dense<0.000000e+00> : vector<1xf32>
    %829 = vector.multi_reduction <add>, %828, %cst_286 [0] : vector<8x1xf32> to vector<1xf32>
    %830 = vector.shape_cast %829 : vector<1xf32> to vector<1x1xf32>
    %831 = tpu.reciprocal %830 {approx = true} : vector<1x1xf32> -> vector<1x1xf32>
    %832 = vector.broadcast %831 : vector<1x1xf32> to vector<8x1xf32>
    %833 = arith.mulf %828, %832 : vector<8x1xf32>
    %834 = vector.extract_strided_slice %822 {offsets = [8, 0], sizes = [8, 1], strides = [1, 1]} : vector<16x1xf32> to vector<8x1xf32>
    %cst_287 = arith.constant dense<0xFF800000> : vector<1xf32>
    %835 = vector.multi_reduction <maximumf>, %834, %cst_287 [0] : vector<8x1xf32> to vector<1xf32>
    %836 = vector.shape_cast %835 : vector<1xf32> to vector<1x1xf32>
    %837 = vector.broadcast %836 : vector<1x1xf32> to vector<8x1xf32>
    %838 = arith.subf %834, %837 : vector<8x1xf32>
    %839 = math.exp %838 : vector<8x1xf32>
    %cst_288 = arith.constant dense<0.000000e+00> : vector<1xf32>
    %840 = vector.multi_reduction <add>, %839, %cst_288 [0] : vector<8x1xf32> to vector<1xf32>
    %841 = vector.shape_cast %840 : vector<1xf32> to vector<1x1xf32>
    %842 = tpu.reciprocal %841 {approx = true} : vector<1x1xf32> -> vector<1x1xf32>
    %843 = vector.broadcast %842 : vector<1x1xf32> to vector<8x1xf32>
    %844 = arith.mulf %839, %843 : vector<8x1xf32>
    %845 = tpu.concatenate %833, %844 in 0 : vector<8x1xf32>, vector<8x1xf32> -> vector<16x1xf32>
    %cst_289 = arith.constant dense<0.000000e+00> : vector<16x128xf32>
    %846 = tpu.matmul %782, %3, %cst_289 {dimension_numbers = #tpu.dot_dimension_numbers<[1], [0], [0], [1], [0, 0, 1, 1], [], []>} : vector<16x32xf32>, vector<32x128xf32>, vector<16x128xf32> -> vector<16x128xf32>
    %847 = arith.addf %846, %813 : vector<16x128xf32>
    %848 = vector.extract_strided_slice %847 {offsets = [0, 0], sizes = [16, 64], strides = [1, 1]} : vector<16x128xf32> to vector<16x64xf32>
    %849 = arith.negf %848 : vector<16x64xf32>
    %850 = math.exp %849 : vector<16x64xf32>
    %cst_290 = arith.constant 1.000000e+00 : f32
    %851 = vector.broadcast %cst_290 : f32 to vector<16x64xf32>
    %852 = arith.addf %851, %850 : vector<16x64xf32>
    %853 = arith.divf %851, %852 : vector<16x64xf32>
    %854 = vector.extract_strided_slice %853 {offsets = [0, 0], sizes = [16, 32], strides = [1, 1]} : vector<16x64xf32> to vector<16x32xf32>
    %855 = vector.extract_strided_slice %853 {offsets = [0, 32], sizes = [16, 32], strides = [1, 1]} : vector<16x64xf32> to vector<16x32xf32>
    %856 = vector.extract_strided_slice %847 {offsets = [0, 64], sizes = [16, 64], strides = [1, 1]} : vector<16x128xf32> to vector<16x64xf32>
    %cst_291 = arith.constant dense<0.000000e+00> : vector<16xf32>
    %857 = vector.multi_reduction <add>, %856, %cst_291 [1] : vector<16x64xf32> to vector<16xf32>
    %858 = vector.shape_cast %857 : vector<16xf32> to vector<16x1xf32>
    %859 = arith.mulf %856, %856 : vector<16x64xf32>
    %cst_292 = arith.constant dense<0.000000e+00> : vector<16xf32>
    %860 = vector.multi_reduction <add>, %859, %cst_292 [1] : vector<16x64xf32> to vector<16xf32>
    %861 = vector.shape_cast %860 : vector<16xf32> to vector<16x1xf32>
    %cst_293 = arith.constant 1.562500e-02 : f32
    %862 = vector.broadcast %cst_293 : f32 to vector<16x1xf32>
    %863 = arith.mulf %858, %862 : vector<16x1xf32>
    %cst_294 = arith.constant 1.562500e-02 : f32
    %864 = vector.broadcast %cst_294 : f32 to vector<16x1xf32>
    %865 = arith.mulf %861, %864 : vector<16x1xf32>
    %866 = arith.mulf %863, %863 : vector<16x1xf32>
    %867 = arith.subf %865, %866 : vector<16x1xf32>
    %cst_295 = arith.constant 0.000000e+00 : f32
    %868 = vector.broadcast %cst_295 : f32 to vector<16x1xf32>
    %869 = arith.maximumf %867, %868 : vector<16x1xf32>
    %870 = vector.broadcast %863 : vector<16x1xf32> to vector<16x64xf32>
    %871 = arith.subf %856, %870 : vector<16x64xf32>
    %cst_296 = arith.constant 9.99999974E-6 : f32
    %872 = vector.broadcast %cst_296 : f32 to vector<16x1xf32>
    %873 = arith.addf %869, %872 : vector<16x1xf32>
    %874 = math.rsqrt %873 : vector<16x1xf32>
    %875 = vector.broadcast %874 : vector<16x1xf32> to vector<16x64xf32>
    %876 = arith.mulf %871, %875 : vector<16x64xf32>
    %877 = arith.mulf %876, %7 : vector<16x64xf32>
    %878 = arith.addf %877, %10 : vector<16x64xf32>
    %cst_297 = arith.constant 5.000000e-01 : f32
    %879 = vector.broadcast %cst_297 : f32 to vector<16x64xf32>
    %880 = arith.mulf %879, %878 : vector<16x64xf32>
    %cst_298 = arith.constant 0.707106769 : f32
    %881 = vector.broadcast %cst_298 : f32 to vector<16x64xf32>
    %882 = arith.mulf %878, %881 : vector<16x64xf32>
    %883 = math.erf %882 : vector<16x64xf32>
    %cst_299 = arith.constant 1.000000e+00 : f32
    %884 = vector.broadcast %cst_299 : f32 to vector<16x64xf32>
    %885 = arith.addf %884, %883 : vector<16x64xf32>
    %886 = arith.mulf %880, %885 : vector<16x64xf32>
    %cst_300 = arith.constant dense<0.000000e+00> : vector<16x32xf32>
    %887 = tpu.matmul %886, %4, %cst_300 {dimension_numbers = #tpu.dot_dimension_numbers<[1], [0], [0], [1], [0, 0, 1, 1], [], []>} : vector<16x64xf32>, vector<64x32xf32>, vector<16x32xf32> -> vector<16x32xf32>
    %888 = arith.addf %887, %13 : vector<16x32xf32>
    %889 = math.tanh %888 : vector<16x32xf32>
    %cst_301 = arith.constant 9.89999961 : f32
    %890 = vector.broadcast %cst_301 : f32 to vector<16x32xf32>
    %891 = arith.mulf %890, %854 : vector<16x32xf32>
    %cst_302 = arith.constant 1.000000e-01 : f32
    %892 = vector.broadcast %cst_302 : f32 to vector<16x32xf32>
    %893 = arith.addf %892, %891 : vector<16x32xf32>
    %cst_303 = arith.constant 9.99999997E-7 : f32
    %894 = vector.broadcast %cst_303 : f32 to vector<16x32xf32>
    %895 = arith.addf %893, %894 : vector<16x32xf32>
    %cst_304 = arith.constant 1.000000e+00 : f32
    %896 = vector.broadcast %cst_304 : f32 to vector<16x32xf32>
    %897 = arith.subf %896, %855 : vector<16x32xf32>
    %898 = tpu.reciprocal %895 {approx = true} : vector<16x32xf32> -> vector<16x32xf32>
    %899 = arith.mulf %782, %898 : vector<16x32xf32>
    %900 = arith.mulf %897, %899 : vector<16x32xf32>
    %901 = arith.mulf %855, %889 : vector<16x32xf32>
    %902 = arith.addf %900, %901 : vector<16x32xf32>
    %903 = arith.mulf %902, %902 : vector<16x32xf32>
    %cst_305 = arith.constant dense<0.000000e+00> : vector<16xf32>
    %904 = vector.multi_reduction <add>, %903, %cst_305 [1] : vector<16x32xf32> to vector<16xf32>
    %905 = vector.shape_cast %904 : vector<16xf32> to vector<16x1xf32>
    %906 = arith.mulf %782, %782 : vector<16x32xf32>
    %cst_306 = arith.constant dense<0.000000e+00> : vector<16xf32>
    %907 = vector.multi_reduction <add>, %906, %cst_306 [1] : vector<16x32xf32> to vector<16xf32>
    %908 = vector.shape_cast %907 : vector<16xf32> to vector<16x1xf32>
    %909 = arith.cmpf one, %905, %905 : vector<16x1xf32>
    %910 = math.absf %905 : vector<16x1xf32>
    %cst_307 = arith.constant 0x7F800000 : f32
    %911 = vector.broadcast %cst_307 : f32 to vector<16x1xf32>
    %912 = arith.cmpf oeq, %910, %911 : vector<16x1xf32>
    %913 = arith.ori %909, %912 : vector<16x1xi1>
    %cst_308 = arith.constant 9.99999996E-13 : f32
    %914 = vector.broadcast %cst_308 : f32 to vector<16x1xf32>
    %915 = arith.maximumf %908, %914 : vector<16x1xf32>
    %916 = math.sqrt %915 : vector<16x1xf32>
    %cst_309 = arith.constant 1.000000e-24 : f32
    %917 = vector.broadcast %cst_309 : f32 to vector<16x1xf32>
    %918 = arith.maximumf %905, %917 : vector<16x1xf32>
    %919 = math.rsqrt %918 : vector<16x1xf32>
    %920 = arith.mulf %919, %916 : vector<16x1xf32>
    %921 = vector.broadcast %920 : vector<16x1xf32> to vector<16x32xf32>
    %922 = arith.mulf %902, %921 : vector<16x32xf32>
    %923 = vector.shape_cast %913 : vector<16x1xi1> to vector<16x1xi1>
    %924 = vector.broadcast %923 : vector<16x1xi1> to vector<16x32xi1>
    %925 = arith.select %924, %782, %922 : vector<16x32xi1>, vector<16x32xf32>
    %cst_310 = arith.constant 0.00999999977 : f32
    %926 = vector.broadcast %cst_310 : f32 to vector<16x1xf32>
    %927 = arith.cmpf ogt, %845, %926 : vector<16x1xf32>
    %cst_311 = arith.constant 1.000000e+00 : f32
    %928 = vector.broadcast %cst_311 : f32 to vector<16x1xf32>
    %929 = arith.subf %928, %845 : vector<16x1xf32>
    %930 = vector.broadcast %929 : vector<16x1xf32> to vector<16x32xf32>
    %931 = arith.mulf %782, %930 : vector<16x32xf32>
    %932 = vector.broadcast %845 : vector<16x1xf32> to vector<16x32xf32>
    %933 = arith.mulf %925, %932 : vector<16x32xf32>
    %934 = arith.addf %931, %933 : vector<16x32xf32>
    %935 = vector.shape_cast %927 : vector<16x1xi1> to vector<16x1xi1>
    %936 = vector.broadcast %935 : vector<16x1xi1> to vector<16x32xi1>
    %937 = arith.select %936, %934, %782 : vector<16x32xi1>, vector<16x32xf32>
    %cst_312 = arith.constant 0.000000e+00 : f32
    %938 = vector.broadcast %cst_312 : f32 to vector<16x1xf32>
    %939 = arith.select %927, %845, %938 : vector<16x1xi1>, vector<16x1xf32>
    %940 = arith.addf %787, %939 : vector<16x1xf32>
    %cst_313 = arith.constant 9.900000e-01 : f32
    %941 = vector.broadcast %cst_313 : f32 to vector<16x1xf32>
    %942 = arith.mulf %940, %941 : vector<16x1xf32>
    %cst_314 = arith.constant 9.800000e-01 : f32
    %943 = vector.broadcast %cst_314 : f32 to vector<16x1xf32>
    %944 = arith.mulf %791, %943 : vector<16x1xf32>
    %cst_315 = arith.constant 1.000000e+00 : f32
    %945 = vector.broadcast %cst_315 : f32 to vector<16x1xf32>
    %946 = arith.addf %944, %945 : vector<16x1xf32>
    %c6_i32 = arith.constant 6 : i32
    %c2_i32_316 = arith.constant 2 : i32
    %947 = arith.muli %c6_i32, %c2_i32_316 : i32
    %c0_i32_317 = arith.constant 0 : i32
    %948 = arith.addi %947, %c0_i32_317 : i32
    %c0_318 = arith.constant 0 : index
    %949 = arith.index_cast %948 : i32 to index
    %c0_319 = arith.constant 0 : index
    %950 = tpu.strided_load %arg2[%c0_318, %949, %c0_319] {strides = array<i32: 1, 0, 1>} : memref<1x16x32xf32, #tpu.memory_space<vmem>>, vector<1x8x32xf32>
    %951 = vector.shape_cast %950 : vector<1x8x32xf32> to vector<8x32xf32>
    %c2_i32_320 = arith.constant 2 : i32
    %952 = arith.muli %c6_i32, %c2_i32_320 : i32
    %c1_i32_321 = arith.constant 1 : i32
    %953 = arith.addi %952, %c1_i32_321 : i32
    %c0_322 = arith.constant 0 : index
    %954 = arith.index_cast %953 : i32 to index
    %c0_323 = arith.constant 0 : index
    %955 = tpu.strided_load %arg2[%c0_322, %954, %c0_323] {strides = array<i32: 1, 0, 1>} : memref<1x16x32xf32, #tpu.memory_space<vmem>>, vector<1x8x32xf32>
    %956 = vector.shape_cast %955 : vector<1x8x32xf32> to vector<8x32xf32>
    %957 = tpu.concatenate %951, %956 in 0 : vector<8x32xf32>, vector<8x32xf32> -> vector<16x32xf32>
    %c2_i32_324 = arith.constant 2 : i32
    %958 = arith.muli %c6_i32, %c2_i32_324 : i32
    %c0_i32_325 = arith.constant 0 : i32
    %959 = arith.addi %958, %c0_i32_325 : i32
    %c0_326 = arith.constant 0 : index
    %960 = arith.index_cast %959 : i32 to index
    %c0_327 = arith.constant 0 : index
    %961 = tpu.strided_load %arg3[%c0_326, %960, %c0_327] {strides = array<i32: 1, 0, 1>} : memref<1x16x128xf32, #tpu.memory_space<vmem>>, vector<1x8x128xf32>
    %962 = vector.shape_cast %961 : vector<1x8x128xf32> to vector<8x128xf32>
    %c2_i32_328 = arith.constant 2 : i32
    %963 = arith.muli %c6_i32, %c2_i32_328 : i32
    %c1_i32_329 = arith.constant 1 : i32
    %964 = arith.addi %963, %c1_i32_329 : i32
    %c0_330 = arith.constant 0 : index
    %965 = arith.index_cast %964 : i32 to index
    %c0_331 = arith.constant 0 : index
    %966 = tpu.strided_load %arg3[%c0_330, %965, %c0_331] {strides = array<i32: 1, 0, 1>} : memref<1x16x128xf32, #tpu.memory_space<vmem>>, vector<1x8x128xf32>
    %967 = vector.shape_cast %966 : vector<1x8x128xf32> to vector<8x128xf32>
    %968 = tpu.concatenate %962, %967 in 0 : vector<8x128xf32>, vector<8x128xf32> -> vector<16x128xf32>
    %969 = arith.mulf %937, %957 : vector<16x32xf32>
    %cst_332 = arith.constant dense<0.000000e+00> : vector<16xf32>
    %970 = vector.multi_reduction <add>, %969, %cst_332 [1] : vector<16x32xf32> to vector<16xf32>
    %971 = vector.shape_cast %970 : vector<16xf32> to vector<16x1xf32>
    %cst_333 = arith.constant 1.000000e-01 : f32
    %972 = vector.broadcast %cst_333 : f32 to vector<16x1xf32>
    %973 = arith.mulf %972, %946 : vector<16x1xf32>
    %974 = arith.subf %971, %973 : vector<16x1xf32>
    %cst_334 = arith.constant 2.000000e-01 : f32
    %975 = vector.broadcast %cst_334 : f32 to vector<16x1xf32>
    %976 = arith.mulf %975, %942 : vector<16x1xf32>
    %977 = arith.subf %974, %976 : vector<16x1xf32>
    %978 = vector.extract_strided_slice %977 {offsets = [0, 0], sizes = [8, 1], strides = [1, 1]} : vector<16x1xf32> to vector<8x1xf32>
    %cst_335 = arith.constant dense<0xFF800000> : vector<1xf32>
    %979 = vector.multi_reduction <maximumf>, %978, %cst_335 [0] : vector<8x1xf32> to vector<1xf32>
    %980 = vector.shape_cast %979 : vector<1xf32> to vector<1x1xf32>
    %981 = vector.broadcast %980 : vector<1x1xf32> to vector<8x1xf32>
    %982 = arith.subf %978, %981 : vector<8x1xf32>
    %983 = math.exp %982 : vector<8x1xf32>
    %cst_336 = arith.constant dense<0.000000e+00> : vector<1xf32>
    %984 = vector.multi_reduction <add>, %983, %cst_336 [0] : vector<8x1xf32> to vector<1xf32>
    %985 = vector.shape_cast %984 : vector<1xf32> to vector<1x1xf32>
    %986 = tpu.reciprocal %985 {approx = true} : vector<1x1xf32> -> vector<1x1xf32>
    %987 = vector.broadcast %986 : vector<1x1xf32> to vector<8x1xf32>
    %988 = arith.mulf %983, %987 : vector<8x1xf32>
    %989 = vector.extract_strided_slice %977 {offsets = [8, 0], sizes = [8, 1], strides = [1, 1]} : vector<16x1xf32> to vector<8x1xf32>
    %cst_337 = arith.constant dense<0xFF800000> : vector<1xf32>
    %990 = vector.multi_reduction <maximumf>, %989, %cst_337 [0] : vector<8x1xf32> to vector<1xf32>
    %991 = vector.shape_cast %990 : vector<1xf32> to vector<1x1xf32>
    %992 = vector.broadcast %991 : vector<1x1xf32> to vector<8x1xf32>
    %993 = arith.subf %989, %992 : vector<8x1xf32>
    %994 = math.exp %993 : vector<8x1xf32>
    %cst_338 = arith.constant dense<0.000000e+00> : vector<1xf32>
    %995 = vector.multi_reduction <add>, %994, %cst_338 [0] : vector<8x1xf32> to vector<1xf32>
    %996 = vector.shape_cast %995 : vector<1xf32> to vector<1x1xf32>
    %997 = tpu.reciprocal %996 {approx = true} : vector<1x1xf32> -> vector<1x1xf32>
    %998 = vector.broadcast %997 : vector<1x1xf32> to vector<8x1xf32>
    %999 = arith.mulf %994, %998 : vector<8x1xf32>
    %1000 = tpu.concatenate %988, %999 in 0 : vector<8x1xf32>, vector<8x1xf32> -> vector<16x1xf32>
    %cst_339 = arith.constant dense<0.000000e+00> : vector<16x128xf32>
    %1001 = tpu.matmul %937, %3, %cst_339 {dimension_numbers = #tpu.dot_dimension_numbers<[1], [0], [0], [1], [0, 0, 1, 1], [], []>} : vector<16x32xf32>, vector<32x128xf32>, vector<16x128xf32> -> vector<16x128xf32>
    %1002 = arith.addf %1001, %968 : vector<16x128xf32>
    %1003 = vector.extract_strided_slice %1002 {offsets = [0, 0], sizes = [16, 64], strides = [1, 1]} : vector<16x128xf32> to vector<16x64xf32>
    %1004 = arith.negf %1003 : vector<16x64xf32>
    %1005 = math.exp %1004 : vector<16x64xf32>
    %cst_340 = arith.constant 1.000000e+00 : f32
    %1006 = vector.broadcast %cst_340 : f32 to vector<16x64xf32>
    %1007 = arith.addf %1006, %1005 : vector<16x64xf32>
    %1008 = arith.divf %1006, %1007 : vector<16x64xf32>
    %1009 = vector.extract_strided_slice %1008 {offsets = [0, 0], sizes = [16, 32], strides = [1, 1]} : vector<16x64xf32> to vector<16x32xf32>
    %1010 = vector.extract_strided_slice %1008 {offsets = [0, 32], sizes = [16, 32], strides = [1, 1]} : vector<16x64xf32> to vector<16x32xf32>
    %1011 = vector.extract_strided_slice %1002 {offsets = [0, 64], sizes = [16, 64], strides = [1, 1]} : vector<16x128xf32> to vector<16x64xf32>
    %cst_341 = arith.constant dense<0.000000e+00> : vector<16xf32>
    %1012 = vector.multi_reduction <add>, %1011, %cst_341 [1] : vector<16x64xf32> to vector<16xf32>
    %1013 = vector.shape_cast %1012 : vector<16xf32> to vector<16x1xf32>
    %1014 = arith.mulf %1011, %1011 : vector<16x64xf32>
    %cst_342 = arith.constant dense<0.000000e+00> : vector<16xf32>
    %1015 = vector.multi_reduction <add>, %1014, %cst_342 [1] : vector<16x64xf32> to vector<16xf32>
    %1016 = vector.shape_cast %1015 : vector<16xf32> to vector<16x1xf32>
    %cst_343 = arith.constant 1.562500e-02 : f32
    %1017 = vector.broadcast %cst_343 : f32 to vector<16x1xf32>
    %1018 = arith.mulf %1013, %1017 : vector<16x1xf32>
    %cst_344 = arith.constant 1.562500e-02 : f32
    %1019 = vector.broadcast %cst_344 : f32 to vector<16x1xf32>
    %1020 = arith.mulf %1016, %1019 : vector<16x1xf32>
    %1021 = arith.mulf %1018, %1018 : vector<16x1xf32>
    %1022 = arith.subf %1020, %1021 : vector<16x1xf32>
    %cst_345 = arith.constant 0.000000e+00 : f32
    %1023 = vector.broadcast %cst_345 : f32 to vector<16x1xf32>
    %1024 = arith.maximumf %1022, %1023 : vector<16x1xf32>
    %1025 = vector.broadcast %1018 : vector<16x1xf32> to vector<16x64xf32>
    %1026 = arith.subf %1011, %1025 : vector<16x64xf32>
    %cst_346 = arith.constant 9.99999974E-6 : f32
    %1027 = vector.broadcast %cst_346 : f32 to vector<16x1xf32>
    %1028 = arith.addf %1024, %1027 : vector<16x1xf32>
    %1029 = math.rsqrt %1028 : vector<16x1xf32>
    %1030 = vector.broadcast %1029 : vector<16x1xf32> to vector<16x64xf32>
    %1031 = arith.mulf %1026, %1030 : vector<16x64xf32>
    %1032 = arith.mulf %1031, %7 : vector<16x64xf32>
    %1033 = arith.addf %1032, %10 : vector<16x64xf32>
    %cst_347 = arith.constant 5.000000e-01 : f32
    %1034 = vector.broadcast %cst_347 : f32 to vector<16x64xf32>
    %1035 = arith.mulf %1034, %1033 : vector<16x64xf32>
    %cst_348 = arith.constant 0.707106769 : f32
    %1036 = vector.broadcast %cst_348 : f32 to vector<16x64xf32>
    %1037 = arith.mulf %1033, %1036 : vector<16x64xf32>
    %1038 = math.erf %1037 : vector<16x64xf32>
    %cst_349 = arith.constant 1.000000e+00 : f32
    %1039 = vector.broadcast %cst_349 : f32 to vector<16x64xf32>
    %1040 = arith.addf %1039, %1038 : vector<16x64xf32>
    %1041 = arith.mulf %1035, %1040 : vector<16x64xf32>
    %cst_350 = arith.constant dense<0.000000e+00> : vector<16x32xf32>
    %1042 = tpu.matmul %1041, %4, %cst_350 {dimension_numbers = #tpu.dot_dimension_numbers<[1], [0], [0], [1], [0, 0, 1, 1], [], []>} : vector<16x64xf32>, vector<64x32xf32>, vector<16x32xf32> -> vector<16x32xf32>
    %1043 = arith.addf %1042, %13 : vector<16x32xf32>
    %1044 = math.tanh %1043 : vector<16x32xf32>
    %cst_351 = arith.constant 9.89999961 : f32
    %1045 = vector.broadcast %cst_351 : f32 to vector<16x32xf32>
    %1046 = arith.mulf %1045, %1009 : vector<16x32xf32>
    %cst_352 = arith.constant 1.000000e-01 : f32
    %1047 = vector.broadcast %cst_352 : f32 to vector<16x32xf32>
    %1048 = arith.addf %1047, %1046 : vector<16x32xf32>
    %cst_353 = arith.constant 9.99999997E-7 : f32
    %1049 = vector.broadcast %cst_353 : f32 to vector<16x32xf32>
    %1050 = arith.addf %1048, %1049 : vector<16x32xf32>
    %cst_354 = arith.constant 1.000000e+00 : f32
    %1051 = vector.broadcast %cst_354 : f32 to vector<16x32xf32>
    %1052 = arith.subf %1051, %1010 : vector<16x32xf32>
    %1053 = tpu.reciprocal %1050 {approx = true} : vector<16x32xf32> -> vector<16x32xf32>
    %1054 = arith.mulf %937, %1053 : vector<16x32xf32>
    %1055 = arith.mulf %1052, %1054 : vector<16x32xf32>
    %1056 = arith.mulf %1010, %1044 : vector<16x32xf32>
    %1057 = arith.addf %1055, %1056 : vector<16x32xf32>
    %1058 = arith.mulf %1057, %1057 : vector<16x32xf32>
    %cst_355 = arith.constant dense<0.000000e+00> : vector<16xf32>
    %1059 = vector.multi_reduction <add>, %1058, %cst_355 [1] : vector<16x32xf32> to vector<16xf32>
    %1060 = vector.shape_cast %1059 : vector<16xf32> to vector<16x1xf32>
    %1061 = arith.mulf %937, %937 : vector<16x32xf32>
    %cst_356 = arith.constant dense<0.000000e+00> : vector<16xf32>
    %1062 = vector.multi_reduction <add>, %1061, %cst_356 [1] : vector<16x32xf32> to vector<16xf32>
    %1063 = vector.shape_cast %1062 : vector<16xf32> to vector<16x1xf32>
    %1064 = arith.cmpf one, %1060, %1060 : vector<16x1xf32>
    %1065 = math.absf %1060 : vector<16x1xf32>
    %cst_357 = arith.constant 0x7F800000 : f32
    %1066 = vector.broadcast %cst_357 : f32 to vector<16x1xf32>
    %1067 = arith.cmpf oeq, %1065, %1066 : vector<16x1xf32>
    %1068 = arith.ori %1064, %1067 : vector<16x1xi1>
    %cst_358 = arith.constant 9.99999996E-13 : f32
    %1069 = vector.broadcast %cst_358 : f32 to vector<16x1xf32>
    %1070 = arith.maximumf %1063, %1069 : vector<16x1xf32>
    %1071 = math.sqrt %1070 : vector<16x1xf32>
    %cst_359 = arith.constant 1.000000e-24 : f32
    %1072 = vector.broadcast %cst_359 : f32 to vector<16x1xf32>
    %1073 = arith.maximumf %1060, %1072 : vector<16x1xf32>
    %1074 = math.rsqrt %1073 : vector<16x1xf32>
    %1075 = arith.mulf %1074, %1071 : vector<16x1xf32>
    %1076 = vector.broadcast %1075 : vector<16x1xf32> to vector<16x32xf32>
    %1077 = arith.mulf %1057, %1076 : vector<16x32xf32>
    %1078 = vector.shape_cast %1068 : vector<16x1xi1> to vector<16x1xi1>
    %1079 = vector.broadcast %1078 : vector<16x1xi1> to vector<16x32xi1>
    %1080 = arith.select %1079, %937, %1077 : vector<16x32xi1>, vector<16x32xf32>
    %cst_360 = arith.constant 0.00999999977 : f32
    %1081 = vector.broadcast %cst_360 : f32 to vector<16x1xf32>
    %1082 = arith.cmpf ogt, %1000, %1081 : vector<16x1xf32>
    %cst_361 = arith.constant 1.000000e+00 : f32
    %1083 = vector.broadcast %cst_361 : f32 to vector<16x1xf32>
    %1084 = arith.subf %1083, %1000 : vector<16x1xf32>
    %1085 = vector.broadcast %1084 : vector<16x1xf32> to vector<16x32xf32>
    %1086 = arith.mulf %937, %1085 : vector<16x32xf32>
    %1087 = vector.broadcast %1000 : vector<16x1xf32> to vector<16x32xf32>
    %1088 = arith.mulf %1080, %1087 : vector<16x32xf32>
    %1089 = arith.addf %1086, %1088 : vector<16x32xf32>
    %1090 = vector.shape_cast %1082 : vector<16x1xi1> to vector<16x1xi1>
    %1091 = vector.broadcast %1090 : vector<16x1xi1> to vector<16x32xi1>
    %1092 = arith.select %1091, %1089, %937 : vector<16x32xi1>, vector<16x32xf32>
    %cst_362 = arith.constant 0.000000e+00 : f32
    %1093 = vector.broadcast %cst_362 : f32 to vector<16x1xf32>
    %1094 = arith.select %1082, %1000, %1093 : vector<16x1xi1>, vector<16x1xf32>
    %1095 = arith.addf %942, %1094 : vector<16x1xf32>
    %cst_363 = arith.constant 9.900000e-01 : f32
    %1096 = vector.broadcast %cst_363 : f32 to vector<16x1xf32>
    %1097 = arith.mulf %1095, %1096 : vector<16x1xf32>
    %cst_364 = arith.constant 9.800000e-01 : f32
    %1098 = vector.broadcast %cst_364 : f32 to vector<16x1xf32>
    %1099 = arith.mulf %946, %1098 : vector<16x1xf32>
    %cst_365 = arith.constant 1.000000e+00 : f32
    %1100 = vector.broadcast %cst_365 : f32 to vector<16x1xf32>
    %1101 = arith.addf %1099, %1100 : vector<16x1xf32>
    %c7_i32 = arith.constant 7 : i32
    %c2_i32_366 = arith.constant 2 : i32
    %1102 = arith.muli %c7_i32, %c2_i32_366 : i32
    %c0_i32_367 = arith.constant 0 : i32
    %1103 = arith.addi %1102, %c0_i32_367 : i32
    %c0_368 = arith.constant 0 : index
    %1104 = arith.index_cast %1103 : i32 to index
    %c0_369 = arith.constant 0 : index
    %1105 = tpu.strided_load %arg2[%c0_368, %1104, %c0_369] {strides = array<i32: 1, 0, 1>} : memref<1x16x32xf32, #tpu.memory_space<vmem>>, vector<1x8x32xf32>
    %1106 = vector.shape_cast %1105 : vector<1x8x32xf32> to vector<8x32xf32>
    %c2_i32_370 = arith.constant 2 : i32
    %1107 = arith.muli %c7_i32, %c2_i32_370 : i32
    %c1_i32_371 = arith.constant 1 : i32
    %1108 = arith.addi %1107, %c1_i32_371 : i32
    %c0_372 = arith.constant 0 : index
    %1109 = arith.index_cast %1108 : i32 to index
    %c0_373 = arith.constant 0 : index
    %1110 = tpu.strided_load %arg2[%c0_372, %1109, %c0_373] {strides = array<i32: 1, 0, 1>} : memref<1x16x32xf32, #tpu.memory_space<vmem>>, vector<1x8x32xf32>
    %1111 = vector.shape_cast %1110 : vector<1x8x32xf32> to vector<8x32xf32>
    %1112 = tpu.concatenate %1106, %1111 in 0 : vector<8x32xf32>, vector<8x32xf32> -> vector<16x32xf32>
    %c2_i32_374 = arith.constant 2 : i32
    %1113 = arith.muli %c7_i32, %c2_i32_374 : i32
    %c0_i32_375 = arith.constant 0 : i32
    %1114 = arith.addi %1113, %c0_i32_375 : i32
    %c0_376 = arith.constant 0 : index
    %1115 = arith.index_cast %1114 : i32 to index
    %c0_377 = arith.constant 0 : index
    %1116 = tpu.strided_load %arg3[%c0_376, %1115, %c0_377] {strides = array<i32: 1, 0, 1>} : memref<1x16x128xf32, #tpu.memory_space<vmem>>, vector<1x8x128xf32>
    %1117 = vector.shape_cast %1116 : vector<1x8x128xf32> to vector<8x128xf32>
    %c2_i32_378 = arith.constant 2 : i32
    %1118 = arith.muli %c7_i32, %c2_i32_378 : i32
    %c1_i32_379 = arith.constant 1 : i32
    %1119 = arith.addi %1118, %c1_i32_379 : i32
    %c0_380 = arith.constant 0 : index
    %1120 = arith.index_cast %1119 : i32 to index
    %c0_381 = arith.constant 0 : index
    %1121 = tpu.strided_load %arg3[%c0_380, %1120, %c0_381] {strides = array<i32: 1, 0, 1>} : memref<1x16x128xf32, #tpu.memory_space<vmem>>, vector<1x8x128xf32>
    %1122 = vector.shape_cast %1121 : vector<1x8x128xf32> to vector<8x128xf32>
    %1123 = tpu.concatenate %1117, %1122 in 0 : vector<8x128xf32>, vector<8x128xf32> -> vector<16x128xf32>
    %1124 = arith.mulf %1092, %1112 : vector<16x32xf32>
    %cst_382 = arith.constant dense<0.000000e+00> : vector<16xf32>
    %1125 = vector.multi_reduction <add>, %1124, %cst_382 [1] : vector<16x32xf32> to vector<16xf32>
    %1126 = vector.shape_cast %1125 : vector<16xf32> to vector<16x1xf32>
    %cst_383 = arith.constant 1.000000e-01 : f32
    %1127 = vector.broadcast %cst_383 : f32 to vector<16x1xf32>
    %1128 = arith.mulf %1127, %1101 : vector<16x1xf32>
    %1129 = arith.subf %1126, %1128 : vector<16x1xf32>
    %cst_384 = arith.constant 2.000000e-01 : f32
    %1130 = vector.broadcast %cst_384 : f32 to vector<16x1xf32>
    %1131 = arith.mulf %1130, %1097 : vector<16x1xf32>
    %1132 = arith.subf %1129, %1131 : vector<16x1xf32>
    %1133 = vector.extract_strided_slice %1132 {offsets = [0, 0], sizes = [8, 1], strides = [1, 1]} : vector<16x1xf32> to vector<8x1xf32>
    %cst_385 = arith.constant dense<0xFF800000> : vector<1xf32>
    %1134 = vector.multi_reduction <maximumf>, %1133, %cst_385 [0] : vector<8x1xf32> to vector<1xf32>
    %1135 = vector.shape_cast %1134 : vector<1xf32> to vector<1x1xf32>
    %1136 = vector.broadcast %1135 : vector<1x1xf32> to vector<8x1xf32>
    %1137 = arith.subf %1133, %1136 : vector<8x1xf32>
    %1138 = math.exp %1137 : vector<8x1xf32>
    %cst_386 = arith.constant dense<0.000000e+00> : vector<1xf32>
    %1139 = vector.multi_reduction <add>, %1138, %cst_386 [0] : vector<8x1xf32> to vector<1xf32>
    %1140 = vector.shape_cast %1139 : vector<1xf32> to vector<1x1xf32>
    %1141 = tpu.reciprocal %1140 {approx = true} : vector<1x1xf32> -> vector<1x1xf32>
    %1142 = vector.broadcast %1141 : vector<1x1xf32> to vector<8x1xf32>
    %1143 = arith.mulf %1138, %1142 : vector<8x1xf32>
    %1144 = vector.extract_strided_slice %1132 {offsets = [8, 0], sizes = [8, 1], strides = [1, 1]} : vector<16x1xf32> to vector<8x1xf32>
    %cst_387 = arith.constant dense<0xFF800000> : vector<1xf32>
    %1145 = vector.multi_reduction <maximumf>, %1144, %cst_387 [0] : vector<8x1xf32> to vector<1xf32>
    %1146 = vector.shape_cast %1145 : vector<1xf32> to vector<1x1xf32>
    %1147 = vector.broadcast %1146 : vector<1x1xf32> to vector<8x1xf32>
    %1148 = arith.subf %1144, %1147 : vector<8x1xf32>
    %1149 = math.exp %1148 : vector<8x1xf32>
    %cst_388 = arith.constant dense<0.000000e+00> : vector<1xf32>
    %1150 = vector.multi_reduction <add>, %1149, %cst_388 [0] : vector<8x1xf32> to vector<1xf32>
    %1151 = vector.shape_cast %1150 : vector<1xf32> to vector<1x1xf32>
    %1152 = tpu.reciprocal %1151 {approx = true} : vector<1x1xf32> -> vector<1x1xf32>
    %1153 = vector.broadcast %1152 : vector<1x1xf32> to vector<8x1xf32>
    %1154 = arith.mulf %1149, %1153 : vector<8x1xf32>
    %1155 = tpu.concatenate %1143, %1154 in 0 : vector<8x1xf32>, vector<8x1xf32> -> vector<16x1xf32>
    %cst_389 = arith.constant dense<0.000000e+00> : vector<16x128xf32>
    %1156 = tpu.matmul %1092, %3, %cst_389 {dimension_numbers = #tpu.dot_dimension_numbers<[1], [0], [0], [1], [0, 0, 1, 1], [], []>} : vector<16x32xf32>, vector<32x128xf32>, vector<16x128xf32> -> vector<16x128xf32>
    %1157 = arith.addf %1156, %1123 : vector<16x128xf32>
    %1158 = vector.extract_strided_slice %1157 {offsets = [0, 0], sizes = [16, 64], strides = [1, 1]} : vector<16x128xf32> to vector<16x64xf32>
    %1159 = arith.negf %1158 : vector<16x64xf32>
    %1160 = math.exp %1159 : vector<16x64xf32>
    %cst_390 = arith.constant 1.000000e+00 : f32
    %1161 = vector.broadcast %cst_390 : f32 to vector<16x64xf32>
    %1162 = arith.addf %1161, %1160 : vector<16x64xf32>
    %1163 = arith.divf %1161, %1162 : vector<16x64xf32>
    %1164 = vector.extract_strided_slice %1163 {offsets = [0, 0], sizes = [16, 32], strides = [1, 1]} : vector<16x64xf32> to vector<16x32xf32>
    %1165 = vector.extract_strided_slice %1163 {offsets = [0, 32], sizes = [16, 32], strides = [1, 1]} : vector<16x64xf32> to vector<16x32xf32>
    %1166 = vector.extract_strided_slice %1157 {offsets = [0, 64], sizes = [16, 64], strides = [1, 1]} : vector<16x128xf32> to vector<16x64xf32>
    %cst_391 = arith.constant dense<0.000000e+00> : vector<16xf32>
    %1167 = vector.multi_reduction <add>, %1166, %cst_391 [1] : vector<16x64xf32> to vector<16xf32>
    %1168 = vector.shape_cast %1167 : vector<16xf32> to vector<16x1xf32>
    %1169 = arith.mulf %1166, %1166 : vector<16x64xf32>
    %cst_392 = arith.constant dense<0.000000e+00> : vector<16xf32>
    %1170 = vector.multi_reduction <add>, %1169, %cst_392 [1] : vector<16x64xf32> to vector<16xf32>
    %1171 = vector.shape_cast %1170 : vector<16xf32> to vector<16x1xf32>
    %cst_393 = arith.constant 1.562500e-02 : f32
    %1172 = vector.broadcast %cst_393 : f32 to vector<16x1xf32>
    %1173 = arith.mulf %1168, %1172 : vector<16x1xf32>
    %cst_394 = arith.constant 1.562500e-02 : f32
    %1174 = vector.broadcast %cst_394 : f32 to vector<16x1xf32>
    %1175 = arith.mulf %1171, %1174 : vector<16x1xf32>
    %1176 = arith.mulf %1173, %1173 : vector<16x1xf32>
    %1177 = arith.subf %1175, %1176 : vector<16x1xf32>
    %cst_395 = arith.constant 0.000000e+00 : f32
    %1178 = vector.broadcast %cst_395 : f32 to vector<16x1xf32>
    %1179 = arith.maximumf %1177, %1178 : vector<16x1xf32>
    %1180 = vector.broadcast %1173 : vector<16x1xf32> to vector<16x64xf32>
    %1181 = arith.subf %1166, %1180 : vector<16x64xf32>
    %cst_396 = arith.constant 9.99999974E-6 : f32
    %1182 = vector.broadcast %cst_396 : f32 to vector<16x1xf32>
    %1183 = arith.addf %1179, %1182 : vector<16x1xf32>
    %1184 = math.rsqrt %1183 : vector<16x1xf32>
    %1185 = vector.broadcast %1184 : vector<16x1xf32> to vector<16x64xf32>
    %1186 = arith.mulf %1181, %1185 : vector<16x64xf32>
    %1187 = arith.mulf %1186, %7 : vector<16x64xf32>
    %1188 = arith.addf %1187, %10 : vector<16x64xf32>
    %cst_397 = arith.constant 5.000000e-01 : f32
    %1189 = vector.broadcast %cst_397 : f32 to vector<16x64xf32>
    %1190 = arith.mulf %1189, %1188 : vector<16x64xf32>
    %cst_398 = arith.constant 0.707106769 : f32
    %1191 = vector.broadcast %cst_398 : f32 to vector<16x64xf32>
    %1192 = arith.mulf %1188, %1191 : vector<16x64xf32>
    %1193 = math.erf %1192 : vector<16x64xf32>
    %cst_399 = arith.constant 1.000000e+00 : f32
    %1194 = vector.broadcast %cst_399 : f32 to vector<16x64xf32>
    %1195 = arith.addf %1194, %1193 : vector<16x64xf32>
    %1196 = arith.mulf %1190, %1195 : vector<16x64xf32>
    %cst_400 = arith.constant dense<0.000000e+00> : vector<16x32xf32>
    %1197 = tpu.matmul %1196, %4, %cst_400 {dimension_numbers = #tpu.dot_dimension_numbers<[1], [0], [0], [1], [0, 0, 1, 1], [], []>} : vector<16x64xf32>, vector<64x32xf32>, vector<16x32xf32> -> vector<16x32xf32>
    %1198 = arith.addf %1197, %13 : vector<16x32xf32>
    %1199 = math.tanh %1198 : vector<16x32xf32>
    %cst_401 = arith.constant 9.89999961 : f32
    %1200 = vector.broadcast %cst_401 : f32 to vector<16x32xf32>
    %1201 = arith.mulf %1200, %1164 : vector<16x32xf32>
    %cst_402 = arith.constant 1.000000e-01 : f32
    %1202 = vector.broadcast %cst_402 : f32 to vector<16x32xf32>
    %1203 = arith.addf %1202, %1201 : vector<16x32xf32>
    %cst_403 = arith.constant 9.99999997E-7 : f32
    %1204 = vector.broadcast %cst_403 : f32 to vector<16x32xf32>
    %1205 = arith.addf %1203, %1204 : vector<16x32xf32>
    %cst_404 = arith.constant 1.000000e+00 : f32
    %1206 = vector.broadcast %cst_404 : f32 to vector<16x32xf32>
    %1207 = arith.subf %1206, %1165 : vector<16x32xf32>
    %1208 = tpu.reciprocal %1205 {approx = true} : vector<16x32xf32> -> vector<16x32xf32>
    %1209 = arith.mulf %1092, %1208 : vector<16x32xf32>
    %1210 = arith.mulf %1207, %1209 : vector<16x32xf32>
    %1211 = arith.mulf %1165, %1199 : vector<16x32xf32>
    %1212 = arith.addf %1210, %1211 : vector<16x32xf32>
    %1213 = arith.mulf %1212, %1212 : vector<16x32xf32>
    %cst_405 = arith.constant dense<0.000000e+00> : vector<16xf32>
    %1214 = vector.multi_reduction <add>, %1213, %cst_405 [1] : vector<16x32xf32> to vector<16xf32>
    %1215 = vector.shape_cast %1214 : vector<16xf32> to vector<16x1xf32>
    %1216 = arith.mulf %1092, %1092 : vector<16x32xf32>
    %cst_406 = arith.constant dense<0.000000e+00> : vector<16xf32>
    %1217 = vector.multi_reduction <add>, %1216, %cst_406 [1] : vector<16x32xf32> to vector<16xf32>
    %1218 = vector.shape_cast %1217 : vector<16xf32> to vector<16x1xf32>
    %1219 = arith.cmpf one, %1215, %1215 : vector<16x1xf32>
    %1220 = math.absf %1215 : vector<16x1xf32>
    %cst_407 = arith.constant 0x7F800000 : f32
    %1221 = vector.broadcast %cst_407 : f32 to vector<16x1xf32>
    %1222 = arith.cmpf oeq, %1220, %1221 : vector<16x1xf32>
    %1223 = arith.ori %1219, %1222 : vector<16x1xi1>
    %cst_408 = arith.constant 9.99999996E-13 : f32
    %1224 = vector.broadcast %cst_408 : f32 to vector<16x1xf32>
    %1225 = arith.maximumf %1218, %1224 : vector<16x1xf32>
    %1226 = math.sqrt %1225 : vector<16x1xf32>
    %cst_409 = arith.constant 1.000000e-24 : f32
    %1227 = vector.broadcast %cst_409 : f32 to vector<16x1xf32>
    %1228 = arith.maximumf %1215, %1227 : vector<16x1xf32>
    %1229 = math.rsqrt %1228 : vector<16x1xf32>
    %1230 = arith.mulf %1229, %1226 : vector<16x1xf32>
    %1231 = vector.broadcast %1230 : vector<16x1xf32> to vector<16x32xf32>
    %1232 = arith.mulf %1212, %1231 : vector<16x32xf32>
    %1233 = vector.shape_cast %1223 : vector<16x1xi1> to vector<16x1xi1>
    %1234 = vector.broadcast %1233 : vector<16x1xi1> to vector<16x32xi1>
    %1235 = arith.select %1234, %1092, %1232 : vector<16x32xi1>, vector<16x32xf32>
    %cst_410 = arith.constant 0.00999999977 : f32
    %1236 = vector.broadcast %cst_410 : f32 to vector<16x1xf32>
    %1237 = arith.cmpf ogt, %1155, %1236 : vector<16x1xf32>
    %cst_411 = arith.constant 1.000000e+00 : f32
    %1238 = vector.broadcast %cst_411 : f32 to vector<16x1xf32>
    %1239 = arith.subf %1238, %1155 : vector<16x1xf32>
    %1240 = vector.broadcast %1239 : vector<16x1xf32> to vector<16x32xf32>
    %1241 = arith.mulf %1092, %1240 : vector<16x32xf32>
    %1242 = vector.broadcast %1155 : vector<16x1xf32> to vector<16x32xf32>
    %1243 = arith.mulf %1235, %1242 : vector<16x32xf32>
    %1244 = arith.addf %1241, %1243 : vector<16x32xf32>
    %1245 = vector.shape_cast %1237 : vector<16x1xi1> to vector<16x1xi1>
    %1246 = vector.broadcast %1245 : vector<16x1xi1> to vector<16x32xi1>
    %1247 = arith.select %1246, %1244, %1092 : vector<16x32xi1>, vector<16x32xf32>
    %cst_412 = arith.constant 0.000000e+00 : f32
    %1248 = vector.broadcast %cst_412 : f32 to vector<16x1xf32>
    %1249 = arith.select %1237, %1155, %1248 : vector<16x1xi1>, vector<16x1xf32>
    %1250 = arith.addf %1097, %1249 : vector<16x1xf32>
    %cst_413 = arith.constant 9.900000e-01 : f32
    %1251 = vector.broadcast %cst_413 : f32 to vector<16x1xf32>
    %1252 = arith.mulf %1250, %1251 : vector<16x1xf32>
    %cst_414 = arith.constant 9.800000e-01 : f32
    %1253 = vector.broadcast %cst_414 : f32 to vector<16x1xf32>
    %1254 = arith.mulf %1101, %1253 : vector<16x1xf32>
    %cst_415 = arith.constant 1.000000e+00 : f32
    %1255 = vector.broadcast %cst_415 : f32 to vector<16x1xf32>
    %1256 = arith.addf %1254, %1255 : vector<16x1xf32>
    %c8_i32 = arith.constant 8 : i32
    %c0_416 = arith.constant 0 : index
    %c0_417 = arith.constant 0 : index
    %1257 = vector.load %arg13[%c0_416, %c0_417] : memref<16x32xf32, #tpu.memory_space<vmem>>, vector<16x32xf32>
    tpu.vector_store %arg13[%c0_416, %c0_417], %1247 {strides = array<i32>} : memref<16x32xf32, #tpu.memory_space<vmem>>, vector<16x32xf32>,
    %c0_418 = arith.constant 0 : index
    %c0_419 = arith.constant 0 : index
    %1258 = vector.load %arg14[%c0_418, %c0_419] : memref<16x1xf32, #tpu.memory_space<vmem>>, vector<16x1xf32>
    tpu.vector_store %arg14[%c0_418, %c0_419], %1252 {strides = array<i32>} : memref<16x1xf32, #tpu.memory_space<vmem>>, vector<16x1xf32>,
    %c0_420 = arith.constant 0 : index
    %c0_421 = arith.constant 0 : index
    %1259 = vector.load %arg15[%c0_420, %c0_421] : memref<16x1xf32, #tpu.memory_space<vmem>>, vector<16x1xf32>
    tpu.vector_store %arg15[%c0_420, %c0_421], %1256 {strides = array<i32>} : memref<16x1xf32, #tpu.memory_space<vmem>>, vector<16x1xf32>,
    %c0_i32_422 = arith.constant 0 : i32
    %1260 = arith.cmpi eq, %arg1, %c0_i32_422 : i32
    %1261 = arith.extui %1260 : i1 to i32
    %c0_i32_423 = arith.constant 0 : i32
    %1262 = arith.cmpi ne, %1261, %c0_i32_423 : i32
    scf.if %1262 {
      %c0_424 = arith.constant 0 : index
      %c0_425 = arith.constant 0 : index
      %c0_426 = arith.constant 0 : index
      %1263 = vector.load %arg12[%c0_424, %c0_425, %c0_426] : memref<1x16x32xf32, #tpu.memory_space<vmem>>, vector<1x16x32xf32>
      %1264 = vector.shape_cast %1263 : vector<1x16x32xf32> to vector<16x32xf32>
      %1265 = vector.shape_cast %1247 : vector<16x32xf32> to vector<1x16x32xf32>
      tpu.vector_store %arg12[%c0_424, %c0_425, %c0_426], %1265 {strides = array<i32>} : memref<1x16x32xf32, #tpu.memory_space<vmem>>, vector<1x16x32xf32>,
    } else {
    }
    return
  }
  func.func @transform_0(%arg0: i32, %arg1: i32) -> (i32, i32, i32) {
    %c0_i32 = arith.constant 0 : i32
    %c0_i32_0 = arith.constant 0 : i32
    return %arg0, %arg1, %c0_i32 : i32, i32, i32
  }
  func.func @transform_1(%arg0: i32, %arg1: i32) -> (i32, i32, i32) {
    %c0_i32 = arith.constant 0 : i32
    %c0_i32_0 = arith.constant 0 : i32
    return %arg0, %arg1, %c0_i32 : i32, i32, i32
  }
  func.func @transform_2(%arg0: i32, %arg1: i32) -> (i32, i32, i32) {
    %c0_i32 = arith.constant 0 : i32
    %c0_i32_0 = arith.constant 0 : i32
    %c0_i32_1 = arith.constant 0 : i32
    return %arg0, %c0_i32, %c0_i32_0 : i32, i32, i32
  }
  func.func @transform_3(%arg0: i32, %arg1: i32) -> (i32, i32, i32) {
    %c0_i32 = arith.constant 0 : i32
    %c0_i32_0 = arith.constant 0 : i32
    %c0_i32_1 = arith.constant 0 : i32
    return %arg0, %c0_i32, %c0_i32_0 : i32, i32, i32
  }
  func.func @transform_4(%arg0: i32, %arg1: i32) -> (i32, i32, i32) {
    %c0_i32 = arith.constant 0 : i32
    %c0_i32_0 = arith.constant 0 : i32
    %c0_i32_1 = arith.constant 0 : i32
    return %arg0, %c0_i32, %c0_i32_0 : i32, i32, i32
  }
  func.func @transform_5(%arg0: i32, %arg1: i32) -> (i32, i32) {
    %c0_i32 = arith.constant 0 : i32
    %c0_i32_0 = arith.constant 0 : i32
    %c0_i32_1 = arith.constant 0 : i32
    return %c0_i32, %c0_i32_0 : i32, i32
  }
  func.func @transform_6(%arg0: i32, %arg1: i32) -> (i32, i32) {
    %c0_i32 = arith.constant 0 : i32
    %c0_i32_0 = arith.constant 0 : i32
    %c0_i32_1 = arith.constant 0 : i32
    return %c0_i32, %c0_i32_0 : i32, i32
  }
  func.func @transform_7(%arg0: i32, %arg1: i32) -> (i32, i32) {
    %c0_i32 = arith.constant 0 : i32
    %c0_i32_0 = arith.constant 0 : i32
    %c0_i32_1 = arith.constant 0 : i32
    return %c0_i32, %c0_i32_0 : i32, i32
  }
  func.func @transform_8(%arg0: i32, %arg1: i32) -> (i32, i32) {
    %c0_i32 = arith.constant 0 : i32
    %c0_i32_0 = arith.constant 0 : i32
    %c0_i32_1 = arith.constant 0 : i32
    return %c0_i32, %c0_i32_0 : i32, i32
  }
  func.func @transform_9(%arg0: i32, %arg1: i32) -> (i32, i32) {
    %c0_i32 = arith.constant 0 : i32
    %c0_i32_0 = arith.constant 0 : i32
    %c0_i32_1 = arith.constant 0 : i32
    return %c0_i32, %c0_i32_0 : i32, i32
  }
  func.func @transform_10(%arg0: i32, %arg1: i32) -> (i32, i32, i32) {
    %c0_i32 = arith.constant 0 : i32
    %c0_i32_0 = arith.constant 0 : i32
    %c0_i32_1 = arith.constant 0 : i32
    return %arg0, %c0_i32, %c0_i32_0 : i32, i32, i32
  }
}

</mosaic_0001>

<llo_original>
// kernel: _forward.1
$region0: #{_forward.1}
  #allocation0 [shape = 'u32[]', space=smem, size = 0x4, offset = 0x4, fixed_abs, tag = 'smem constant byte address 0x4 - core index']
  #allocation1 [shape = 'u32[144,128]{1,0:T(1,128)}', space=vmem, size = 0x12000, scoped, tag = 'internal scratch']
  #allocation2 [shape = 'f32[16,32]{1,0:T(8,128)}', space=vmem, size = 0x2000, scoped, tag = 'scratch operand']
  #allocation3 [shape = 'f32[16,1]{1,0:T(8,128)}', space=vmem, size = 0x2000, scoped, tag = 'scratch operand']
  #allocation4 [shape = 'f32[16,1]{1,0:T(8,128)}', space=vmem, size = 0x2000, scoped, tag = 'scratch operand']
  %s0 = inlined_call_operand.vmem [shape: f32[1,16,32], index: 0, kind: input, shape index: {}]
  %s1 = inlined_call_operand.vmem [shape: f32[1,16,128], index: 1, kind: input, shape index: {}]
  %s2 = inlined_call_operand.vmem [shape: f32[1,16,32], index: 2, kind: input, shape index: {}]
  %s3 = inlined_call_operand.vmem [shape: f32[1,16,1], index: 3, kind: input, shape index: {}]
  %s4 = inlined_call_operand.vmem [shape: f32[1,16,1], index: 4, kind: input, shape index: {}]
  %s5 = inlined_call_operand.vmem [shape: f32[32,128], index: 5, kind: input, shape index: {}]
  %s6 = inlined_call_operand.vmem [shape: f32[1,64], index: 6, kind: input, shape index: {}]
  %s7 = inlined_call_operand.vmem [shape: f32[1,64], index: 7, kind: input, shape index: {}]
  %s8 = inlined_call_operand.vmem [shape: f32[64,32], index: 8, kind: input, shape index: {}]
  %s9 = inlined_call_operand.vmem [shape: f32[1,32], index: 9, kind: input, shape index: {}]
  %s10 = inlined_call_operand.vmem [shape: f32[1,16,32], index: 10, kind: output, shape index: {}]
  %s11 = sld [smem:[#allocation0]]
  $region58: #{_forward.1} parent=0
    _
  %s13 = ssub.s32 1, %s11
  %s14 = scalar_select 0, %s13, %s11
  // Predicated region
  $region2: #{_forward.1} parent=0 // pred_check
    _
  $region3: #{_forward.1} parent=0 // pred_check_branch
    %16 = sbr.rel (0) target = $region5
  $region4: #{_forward.1} parent=0 // pred_region
    _
  $region5: #{_forward.1} parent=0 // pred_fallthru
    _
  // Predicated region
  $region6: #{_forward.1} parent=0 // pred_check
    _
  $region7: #{_forward.1} parent=0 // pred_check_branch
    %18 = sbr.rel (0) target = $region9
  $region8: #{_forward.1} parent=0 // pred_region
    _
  $region9: #{_forward.1} parent=0 // pred_fallthru
    _
  // Predicated region
  $region10: #{_forward.1} parent=0 // pred_check
    _
  $region11: #{_forward.1} parent=0 // pred_check_branch
    %20 = sbr.rel (0) target = $region13
  $region12: #{_forward.1} parent=0 // pred_region
    _
  $region13: #{_forward.1} parent=0 // pred_fallthru
    _
  // Predicated region
  $region14: #{_forward.1} parent=0 // pred_check
    _
  $region15: #{_forward.1} parent=0 // pred_check_branch
    %22 = sbr.rel (0) target = $region17
  $region16: #{_forward.1} parent=0 // pred_region
    _
  $region17: #{_forward.1} parent=0 // pred_fallthru
    _
  // Predicated region
  $region18: #{_forward.1} parent=0 // pred_check
    _
  $region19: #{_forward.1} parent=0 // pred_check_branch
    %24 = sbr.rel (0) target = $region21
  $region20: #{_forward.1} parent=0 // pred_region
    _
  $region21: #{_forward.1} parent=0 // pred_fallthru
    _
  // Predicated region
  $region22: #{_forward.1} parent=0 // pred_check
    _
  $region23: #{_forward.1} parent=0 // pred_check_branch
    %26 = sbr.rel (0) target = $region25
  $region24: #{_forward.1} parent=0 // pred_region
    _
  $region25: #{_forward.1} parent=0 // pred_fallthru
    _
  // Predicated region
  $region26: #{_forward.1} parent=0 // pred_check
    _
  $region27: #{_forward.1} parent=0 // pred_check_branch
    %28 = sbr.rel (0) target = $region29
  $region28: #{_forward.1} parent=0 // pred_region
    _
  $region29: #{_forward.1} parent=0 // pred_fallthru
    _
  // Predicated region
  $region30: #{_forward.1} parent=0 // pred_check
    _
  $region31: #{_forward.1} parent=0 // pred_check_branch
    %30 = sbr.rel (0) target = $region33
  $region32: #{_forward.1} parent=0 // pred_region
    _
  $region33: #{_forward.1} parent=0 // pred_fallthru
    _
  // Predicated region
  $region34: #{_forward.1} parent=0 // pred_check
    _
  $region35: #{_forward.1} parent=0 // pred_check_branch
    %32 = sbr.rel (0) target = $region37
  $region36: #{_forward.1} parent=0 // pred_region
    _
  $region37: #{_forward.1} parent=0 // pred_fallthru
    _
  // Predicated region
  $region38: #{_forward.1} parent=0 // pred_check
    _
  $region39: #{_forward.1} parent=0 // pred_check_branch
    %34 = sbr.rel (0) target = $region41
  $region40: #{_forward.1} parent=0 // pred_region
    _
  $region41: #{_forward.1} parent=0 // pred_fallthru
    _
  %p35 = scmp.eq.s32.totalorder 0, 0
  // Predicated region
  $region42: #{_forward.1} parent=0 // pred_check
    %p36 = pneg %p35
  $region43: #{_forward.1} parent=0 // pred_check_branch
    %38 = sbr.rel (%p36) target = $region45
  $region44: #{_forward.1} parent=0 // pred_region
    %v39 = vld [vmem:[%s2] sm:$0xff]
    %v40 = vld [vmem:[%s2 + $0x8] sm:$0xff]
    %vm41 = vcmask 261120
    %42 = vst.msk [vmem:[#allocation2] sm:$0xff] %vm41, %v39
    %43 = vst.msk [vmem:[#allocation2 + $0x8] sm:$0xff] %vm41, %v40
    %v44 = vld [vmem:[%s3] sm:$0xff]
    %v45 = vld [vmem:[%s3 + $0x8] sm:$0xff]
    %vm46 = vcmask 7168
    %47 = vst.msk [vmem:[#allocation3] sm:$0xff] %vm46, %v44
    %48 = vst.msk [vmem:[#allocation3 + $0x8] sm:$0xff] %vm46, %v45
    %v49 = vld [vmem:[%s4] sm:$0xff]
    %v50 = vld [vmem:[%s4 + $0x8] sm:$0xff]
    %51 = vst.msk [vmem:[#allocation4] sm:$0xff] %vm46, %v49
    %52 = vst.msk [vmem:[#allocation4 + $0x8] sm:$0xff] %vm46, %v50
  $region45: #{_forward.1} parent=0 // pred_fallthru
    _
  %v53 = vld [vmem:[%s5] sm:$0xff]
  %v54 = vld [vmem:[%s5 + $0x8] sm:$0xff]
  %v55 = vld [vmem:[%s5 + $0x10] sm:$0xff]
  %v56 = vld [vmem:[%s5 + $0x18] sm:$0xff]
  %v57 = vld [vmem:[%s8] sm:$0xff]
  %v58 = vld [vmem:[%s8 + $0x8] sm:$0xff]
  %v59 = vld [vmem:[%s8 + $0x10] sm:$0xff]
  %v60 = vld [vmem:[%s8 + $0x18] sm:$0xff]
  %v61 = vld [vmem:[%s8 + $0x20] sm:$0xff]
  %v62 = vld [vmem:[%s8 + $0x28] sm:$0xff]
  %v63 = vld [vmem:[%s8 + $0x30] sm:$0xff]
  %v64 = vld [vmem:[%s8 + $0x38] sm:$0xff]
  %v65 = vld [vmem:[%s6] sm:$0x1]
  %v67 = vlaneseq
  %v68 = vshrl.u32 %v67, 7
  %v69 = vsub.s32 0, %v68
  %v70 = vrot.slane %v65, %v69
  %v71 = vld [vmem:[%s7] sm:$0x1]
  %v73 = vlaneseq
  %v74 = vshrl.u32 %v73, 7
  %v75 = vsub.s32 0, %v74
  %v76 = vrot.slane %v71, %v75
  %v77 = vld [vmem:[%s9] sm:$0x1]
  %v79 = vlaneseq
  %v80 = vshrl.u32 %v79, 7
  %v81 = vsub.s32 0, %v80
  %v82 = vrot.slane %v77, %v81
  %v84 = vld [vmem:[#allocation2] sm:$0xff]
  %v85 = vld [vmem:[#allocation2 + $0x8] sm:$0xff]
  %v86 = vld [vmem:[#allocation3] sm:$0xff]
  %v87 = vld [vmem:[#allocation3 + $0x8] sm:$0xff]
  %v88 = vld [vmem:[#allocation4] sm:$0xff]
  %v89 = vld [vmem:[#allocation4 + $0x8] sm:$0xff]
  %v90 = vld [vmem:[%s0] ss:$0 sm:$0xff]
  %v91 = vld [vmem:[%s0 + $0x1] ss:$0 sm:$0xff]
  %v92 = vld [vmem:[%s1] ss:$0 sm:$0xff]
  %v93 = vld [vmem:[%s1 + $0x1] ss:$0 sm:$0xff]
  %v94 = vmul.f32 %v84, %v90
  %v95 = vmul.f32 %v85, %v91
  %vm96 = vcmask 261120
  %v97 = vsel %vm96, %v94, 0.0
  %98 = vadd.xlane.f32.xlu0 %v97
  %v99 = vpop.xlane.xlu0 %98
  %v100 = vsel %vm96, %v95, 0.0
  %101 = vadd.xlane.f32.xlu0 %v100
  %v102 = vpop.xlane.xlu0 %101
  %v103 = vmul.f32 %v88, 0.1
  %v104 = vmul.f32 %v89, 0.1
  %v105 = vsub.f32 %v99, %v103
  %v106 = vsub.f32 %v102, %v104
  %v107 = vmul.f32 %v86, 0.2
  %v108 = vmul.f32 %v87, 0.2
  %v109 = vsub.f32 %v105, %v107
  %v110 = vsub.f32 %v106, %v108
  %vm111 = vcmask 7168
  %v112 = vsel %vm111, %v109, -inf
  %v113 = vrot.slane %v112, 4
  %v114 = vmax.f32 %v112, %v113
  %v115 = vrot.slane %v114, 2
  %v116 = vmax.f32 %v114, %v115
  %v117 = vrot.slane %v116, 1
  %v118 = vmax.f32 %v116, %v117
  %v119 = vsub.f32 %v109, %v118
  %v120 = vmul.f32 %v119, 1.442695
  %v121 = vpow.pop %v120
  %v122 = vsel %vm111, %v121, 0.0
  %v123 = vrot.slane %v122, 4
  %v124 = vadd.f32 %v122, %v123
  %v125 = vrot.slane %v124, 2
  %v126 = vadd.f32 %v124, %v125
  %v127 = vrot.slane %v126, 1
  %v128 = vadd.f32 %v126, %v127
  %v129 = vrcp.pop %v128
  %v130 = vmul.f32 %v121, %v129
  %v131 = vsel %vm111, %v110, -inf
  %v132 = vrot.slane %v131, 4
  %v133 = vmax.f32 %v131, %v132
  %v134 = vrot.slane %v133, 2
  %v135 = vmax.f32 %v133, %v134
  %v136 = vrot.slane %v135, 1
  %v137 = vmax.f32 %v135, %v136
  %v138 = vsub.f32 %v110, %v137
  %v139 = vmul.f32 %v138, 1.442695
  %v140 = vpow.pop %v139
  %v141 = vsel %vm111, %v140, 0.0
  %v142 = vrot.slane %v141, 4
  %v143 = vadd.f32 %v141, %v142
  %v144 = vrot.slane %v143, 2
  %v145 = vadd.f32 %v143, %v144
  %v146 = vrot.slane %v145, 1
  %v147 = vadd.f32 %v145, %v146
  %v148 = vrcp.pop %v147
  %v149 = vmul.f32 %v140, %v148
  %v151 = vsel %vm96, %v84, 0
  %v154 = vsel %vm96, %v85, 0
  %156 = vmatprep.subr.mxu0 0.0
  %157 = vmatpush1.msra.mxu0 %v53
  %158 = vmatprep.subr.mxu0 0.0
  %159 = vmatpush1.msra.mxu0 %v54
  %160 = vmatprep.subr.mxu0 0.0
  %161 = vmatpush1.msra.mxu0 %v55
  %162 = vmatprep.subr.mxu0 0.0
  %163 = vmatpush1.msra.mxu0 %v56
  %164 = vmatprep.subr.mxu0 0.0
  %165 = vmatpush1.msra.mxu0 0.0
  %166 = vmatprep.subr.mxu0 0.0
  %167 = vmatpush1.msra.mxu0 0.0
  %168 = vmatprep.subr.mxu0 0.0
  %169 = vmatpush1.msra.mxu0 0.0
  %170 = vmatprep.subr.mxu0 0.0
  %171 = vmatpush1.msra.mxu0 0.0
  %172 = vmatprep.subr.mxu0 0.0
  %173 = vmatpush1.msra.mxu0 0.0
  %174 = vmatprep.subr.mxu0 0.0
  %175 = vmatpush1.msra.mxu0 0.0
  %176 = vmatprep.subr.mxu0 0.0
  %177 = vmatpush1.msra.mxu0 0.0
  %178 = vmatprep.subr.mxu0 0.0
  %179 = vmatpush1.msra.mxu0 0.0
  %180 = vmatprep.subr.mxu0 0.0
  %181 = vmatpush1.msra.mxu0 0.0
  %182 = vmatprep.subr.mxu0 0.0
  %183 = vmatpush1.msra.mxu0 0.0
  %184 = vmatprep.subr.mxu0 0.0
  %185 = vmatpush1.msra.mxu0 0.0
  %186 = vmatprep.subr.mxu0 0.0
  %187 = vmatpush1.msra.mxu0 0.0
  %188 = vmatprep.subr.mxu0 0.0
  %189 = vmatpush1.msra.mxu0 0.0
  %190 = vmatprep.subr.mxu0 0.0
  %191 = vmatpush1.msra.mxu0 0.0
  %192 = vmatprep.subr.mxu0 0.0
  %193 = vmatpush1.msra.mxu0 0.0
  %194 = vmatprep.subr.mxu0 0.0
  %195 = vmatpush1.msra.mxu0 0.0
  %196 = vmatprep.subr.mxu0 0.0
  %197 = vmatpush1.msra.mxu0 0.0
  %198 = vmatprep.subr.mxu0 0.0
  %199 = vmatpush1.msra.mxu0 0.0
  %200 = vmatprep.subr.mxu0 0.0
  %201 = vmatpush1.msra.mxu0 0.0
  %202 = vmatprep.subr.mxu0 0.0
  %203 = vmatpush1.msra.mxu0 0.0
  %204 = vmatprep.subr.mxu0 0.0
  %205 = vmatpush1.msra.mxu0 0.0
  %206 = vmatprep.subr.mxu0 0.0
  %207 = vmatpush1.msra.mxu0 0.0
  %208 = vmatprep.subr.mxu0 0.0
  %209 = vmatpush1.msra.mxu0 0.0
  %210 = vmatprep.subr.mxu0 0.0
  %211 = vmatpush1.msra.mxu0 0.0
  %212 = vmatprep.subr.mxu0 0.0
  %213 = vmatpush1.msra.mxu0 0.0
  %214 = vmatprep.subr.mxu0 0.0
  %215 = vmatpush1.msra.mxu0 0.0
  %216 = vmatprep.subr.mxu0 0.0
  %217 = vmatpush1.msra.mxu0 0.0
  %218 = vmatprep.subr.mxu0 0.0
  %219 = vmatpush1.msra.mxu0 0.0
  %220 = vmatprep.mubr.f32.mxu0 0.0
  %221 = vmatmul.mubr.f32.gmra.mrb[0].mxu0 %v151
  %v222 = vpop.f32.mrb[0].mxu0
  %v223 = vadd.f32 %v92, %v222
  %v224 = vpop.f32.mrb[0].mxu0
  %225 = vmatprep.mubr.f32.mxu0 0.0
  %226 = vmatmul.mubr.f32.gmra.mrb[0].mxu0 %v154
  %v227 = vpop.f32.mrb[0].mxu0
  %v228 = vadd.f32 %v93, %v227
  %v229 = vpop.f32.mrb[0].mxu0
  %230 = vdwg.mxu0
  %v231 = vxor.u32 %v223, 2147483648
  %v232 = vxor.u32 %v228, 2147483648
  %v233 = vmul.f32 %v231, 1.442695
  %v234 = vpow.pop %v233
  %v235 = vmul.f32 %v232, 1.442695
  %v236 = vpow.pop %v235
  %v237 = vadd.f32 %v234, 1.0
  %v238 = vadd.f32 %v236, 1.0
  %v239 = vrcp.pop %v237
  %v240 = vmul.f32 1.0, %v239
  %v241 = vrcp.pop %v238
  %v242 = vmul.f32 1.0, %v241
  %245 = vrot.lane.b32.xlu0 %v223, 64
  %v246 = vpop.permute.xlu0 %245
  %247 = vrot.lane.b32.xlu0 %v228, 64
  %v248 = vpop.permute.xlu0 %247
  %vm251 = vcmask 523264
  %v252 = vsel %vm251, %v246, 0.0
  %253 = vadd.xlane.f32.xlu0 %v252
  %v254 = vpop.xlane.xlu0 %253
  %v255 = vsel %vm251, %v248, 0.0
  %256 = vadd.xlane.f32.xlu0 %v255
  %v257 = vpop.xlane.xlu0 %256
  %v258 = vmul.f32 %v223, %v223
  %v259 = vmul.f32 %v228, %v228
  %262 = vrot.lane.b32.xlu0 %v258, 64
  %v263 = vpop.permute.xlu0 %262
  %264 = vrot.lane.b32.xlu0 %v259, 64
  %v265 = vpop.permute.xlu0 %264
  %v268 = vsel %vm251, %v263, 0.0
  %269 = vadd.xlane.f32.xlu0 %v268
  %v270 = vpop.xlane.xlu0 %269
  %v271 = vsel %vm251, %v265, 0.0
  %272 = vadd.xlane.f32.xlu0 %v271
  %v273 = vpop.xlane.xlu0 %272
  %v274 = vmul.f32 %v254, 0.015625
  %v275 = vmul.f32 %v257, 0.015625
  %v276 = vmul.f32 %v270, 0.015625
  %v277 = vmul.f32 %v273, 0.015625
  %v278 = vmul.f32 %v274, %v274
  %v279 = vmul.f32 %v275, %v275
  %v280 = vsub.f32 %v276, %v278
  %v281 = vsub.f32 %v277, %v279
  %v282 = vmax.f32 %v280, 0.0
  %v283 = vmax.f32 %v281, 0.0
  %v284 = vsub.f32 %v223, %v274
  %v285 = vsub.f32 %v228, %v275
  %v286 = vadd.f32 %v282, 1e-05
  %v287 = vadd.f32 %v283, 1e-05
  %v288 = vrsqrt.pop %v286
  %v289 = vrsqrt.pop %v287
  %v290 = vmul.f32 %v284, %v288
  %v291 = vmul.f32 %v285, %v289
  %292 = vrot.lane.b32.xlu0 %v70, 64
  %v293 = vpop.permute.xlu0 %292
  %v295 = vmul.f32 %v290, %v293
  %v296 = vmul.f32 %v291, %v293
  %297 = vrot.lane.b32.xlu0 %v76, 64
  %v298 = vpop.permute.xlu0 %297
  %v300 = vadd.f32 %v295, %v298
  %v301 = vadd.f32 %v296, %v298
  %v302 = vmul.f32 %v300, 0.5
  %v303 = vmul.f32 %v301, 0.5
  %v304 = vmul.f32 %v300, 0.70710677
  %v305 = vmul.f32 %v301, 0.70710677
  %v306 = verf.f32.pop %v304
  %v307 = verf.f32.pop %v305
  %v308 = vadd.f32 %v306, 1.0
  %v309 = vadd.f32 %v307, 1.0
  %v310 = vmul.f32 %v302, %v308
  %v311 = vmul.f32 %v303, %v309
  %314 = vrot.lane.b32.xlu0 %v310, 64
  %v315 = vpop.permute.xlu0 %314
  %316 = vrot.lane.b32.xlu0 %v311, 64
  %v317 = vpop.permute.xlu0 %316
  %v318 = vsel %vm251, %v315, 0
  %v320 = vsel %vm251, %v317, 0
  %322 = vmatprep.subr.mxu0 0.0
  %323 = vmatpush1.msra.mxu0 %v57
  %324 = vmatprep.subr.mxu0 0.0
  %325 = vmatpush1.msra.mxu0 %v58
  %326 = vmatprep.subr.mxu0 0.0
  %327 = vmatpush1.msra.mxu0 %v59
  %328 = vmatprep.subr.mxu0 0.0
  %329 = vmatpush1.msra.mxu0 %v60
  %330 = vmatprep.subr.mxu0 0.0
  %331 = vmatpush1.msra.mxu0 %v61
  %332 = vmatprep.subr.mxu0 0.0
  %333 = vmatpush1.msra.mxu0 %v62
  %334 = vmatprep.subr.mxu0 0.0
  %335 = vmatpush1.msra.mxu0 %v63
  %336 = vmatprep.subr.mxu0 0.0
  %337 = vmatpush1.msra.mxu0 %v64
  %338 = vmatprep.subr.mxu0 0.0
  %339 = vmatpush1.msra.mxu0 0.0
  %340 = vmatprep.subr.mxu0 0.0
  %341 = vmatpush1.msra.mxu0 0.0
  %342 = vmatprep.subr.mxu0 0.0
  %343 = vmatpush1.msra.mxu0 0.0
  %344 = vmatprep.subr.mxu0 0.0
  %345 = vmatpush1.msra.mxu0 0.0
  %346 = vmatprep.subr.mxu0 0.0
  %347 = vmatpush1.msra.mxu0 0.0
  %348 = vmatprep.subr.mxu0 0.0
  %349 = vmatpush1.msra.mxu0 0.0
  %350 = vmatprep.subr.mxu0 0.0
  %351 = vmatpush1.msra.mxu0 0.0
  %352 = vmatprep.subr.mxu0 0.0
  %353 = vmatpush1.msra.mxu0 0.0
  %354 = vmatprep.subr.mxu0 0.0
  %355 = vmatpush1.msra.mxu0 0.0
  %356 = vmatprep.subr.mxu0 0.0
  %357 = vmatpush1.msra.mxu0 0.0
  %358 = vmatprep.subr.mxu0 0.0
  %359 = vmatpush1.msra.mxu0 0.0
  %360 = vmatprep.subr.mxu0 0.0
  %361 = vmatpush1.msra.mxu0 0.0
  %362 = vmatprep.subr.mxu0 0.0
  %363 = vmatpush1.msra.mxu0 0.0
  %364 = vmatprep.subr.mxu0 0.0
  %365 = vmatpush1.msra.mxu0 0.0
  %366 = vmatprep.subr.mxu0 0.0
  %367 = vmatpush1.msra.mxu0 0.0
  %368 = vmatprep.subr.mxu0 0.0
  %369 = vmatpush1.msra.mxu0 0.0
  %370 = vmatprep.subr.mxu0 0.0
  %371 = vmatpush1.msra.mxu0 0.0
  %372 = vmatprep.subr.mxu0 0.0
  %373 = vmatpush1.msra.mxu0 0.0
  %374 = vmatprep.subr.mxu0 0.0
  %375 = vmatpush1.msra.mxu0 0.0
  %376 = vmatprep.subr.mxu0 0.0
  %377 = vmatpush1.msra.mxu0 0.0
  %378 = vmatprep.subr.mxu0 0.0
  %379 = vmatpush1.msra.mxu0 0.0
  %380 = vmatprep.subr.mxu0 0.0
  %381 = vmatpush1.msra.mxu0 0.0
  %382 = vmatprep.subr.mxu0 0.0
  %383 = vmatpush1.msra.mxu0 0.0
  %384 = vmatprep.subr.mxu0 0.0
  %385 = vmatpush1.msra.mxu0 0.0
  %386 = vmatprep.mubr.f32.mxu0 0.0
  %387 = vmatmul.mubr.f32.gmra.mrb[0].mxu0 %v318
  %v388 = vpop.f32.mrb[0].mxu0
  %v389 = vadd.f32 %v82, %v388
  %v390 = vpop.f32.mrb[0].mxu0
  %391 = vmatprep.mubr.f32.mxu0 0.0
  %392 = vmatmul.mubr.f32.gmra.mrb[0].mxu0 %v320
  %v393 = vpop.f32.mrb[0].mxu0
  %v394 = vadd.f32 %v82, %v393
  %v395 = vpop.f32.mrb[0].mxu0
  %396 = vdwg.mxu0
  %v397 = vtanh.pop %v389
  %v398 = vtanh.pop %v394
  %v399 = vmul.f32 %v240, 9.9
  %v400 = vmul.f32 %v242, 9.9
  %v401 = vadd.f32 %v399, 0.1
  %v402 = vadd.f32 %v400, 0.1
  %v403 = vadd.f32 %v401, 1e-06
  %v404 = vadd.f32 %v402, 1e-06
  %v405 = vsub.f32 1.0, %v240
  %v406 = vsub.f32 1.0, %v242
  %v407 = vrcp.pop %v403
  %v408 = vrcp.pop %v404
  %v409 = vmul.f32 %v84, %v407
  %v410 = vmul.f32 %v85, %v408
  %413 = vrot.lane.b32.xlu0 %v409, 32
  %v414 = vpop.permute.xlu0 %413
  %415 = vrot.lane.b32.xlu0 %v410, 32
  %v416 = vpop.permute.xlu0 %415
  %v419 = vmul.f32 %v405, %v414
  %v420 = vmul.f32 %v406, %v416
  %423 = vrot.lane.b32.xlu0 %v397, 32
  %v424 = vpop.permute.xlu0 %423
  %425 = vrot.lane.b32.xlu0 %v398, 32
  %v426 = vpop.permute.xlu0 %425
  %v429 = vmul.f32 %v240, %v424
  %v430 = vmul.f32 %v242, %v426
  %v431 = vadd.f32 %v419, %v429
  %v432 = vadd.f32 %v420, %v430
  %v433 = vmul.f32 %v431, %v431
  %v434 = vmul.f32 %v432, %v432
  %437 = vrot.lane.b32.xlu0 %v433, 96
  %v438 = vpop.permute.xlu0 %437
  %439 = vrot.lane.b32.xlu0 %v434, 96
  %v440 = vpop.permute.xlu0 %439
  %v443 = vsel %vm96, %v438, 0.0
  %444 = vadd.xlane.f32.xlu0 %v443
  %v445 = vpop.xlane.xlu0 %444
  %v446 = vsel %vm96, %v440, 0.0
  %447 = vadd.xlane.f32.xlu0 %v446
  %v448 = vpop.xlane.xlu0 %447
  %v449 = vmul.f32 %v84, %v84
  %v450 = vmul.f32 %v85, %v85
  %v451 = vsel %vm96, %v449, 0.0
  %452 = vadd.xlane.f32.xlu0 %v451
  %v453 = vpop.xlane.xlu0 %452
  %v454 = vsel %vm96, %v450, 0.0
  %455 = vadd.xlane.f32.xlu0 %v454
  %v456 = vpop.xlane.xlu0 %455
  %vm457 = vcmp.ne.f32.partialorder %v445, %v445
  %vm458 = vcmp.ne.f32.partialorder %v448, %v448
  %v459 = vand.u32 2147483647, %v445
  %v460 = vand.u32 2147483647, %v448
  %vm461 = vcmp.eq.f32.partialorder %v459, inf
  %vm462 = vcmp.eq.f32.partialorder %v460, inf
  %vm463 = vmor %vm457, %vm461
  %vm464 = vmor %vm458, %vm462
  %v465 = vmax.f32 %v453, 1e-12
  %v466 = vmax.f32 %v456, 1e-12
  %v467 = vrsqrt.pop %v465
  %v468 = vmul.f32 %v465, %v467
  %vm469 = vcmp.eq.f32.partialorder %v465, inf
  %v470 = vsel %vm469, %v465, %v468
  %vm471 = vcmp.eq.f32.partialorder %v465, 0.0
  %v472 = vand.u32 %v465, 2147483648
  %v473 = vsel %vm471, %v472, %v470
  %v474 = vrsqrt.pop %v466
  %v475 = vmul.f32 %v466, %v474
  %vm476 = vcmp.eq.f32.partialorder %v466, inf
  %v477 = vsel %vm476, %v466, %v475
  %vm478 = vcmp.eq.f32.partialorder %v466, 0.0
  %v479 = vand.u32 %v466, 2147483648
  %v480 = vsel %vm478, %v479, %v477
  %v481 = vmax.f32 %v445, 1e-24
  %v482 = vmax.f32 %v448, 1e-24
  %v483 = vrsqrt.pop %v481
  %v484 = vrsqrt.pop %v482
  %v485 = vmul.f32 %v483, %v473
  %v486 = vmul.f32 %v484, %v480
  %v487 = vmul.f32 %v431, %v485
  %v488 = vmul.f32 %v432, %v486
  %v489 = vsel %vm463, 1, 0
  %v490 = vsel %vm464, 1, 0
  %vm491 = vcmp.eq.s32.totalorder %v489, 1
  %vm492 = vcmp.eq.s32.totalorder %v490, 1
  %495 = vrot.lane.b32.xlu0 %v487, 96
  %v496 = vpop.permute.xlu0 %495
  %497 = vrot.lane.b32.xlu0 %v488, 96
  %v498 = vpop.permute.xlu0 %497
  %v501 = vsel %vm491, %v84, %v496
  %v502 = vsel %vm492, %v85, %v498
  %vm503 = vcmp.gt.f32.partialorder %v130, 0.01
  %vm504 = vcmp.gt.f32.partialorder %v149, 0.01
  %v505 = vsub.f32 1.0, %v130
  %v506 = vsub.f32 1.0, %v149
  %508 = vset.pattern.permute.xlu0 0
  %509 = vperm.xlu0 %508, %v505
  %v510 = vpop.permute.xlu0 %509
  %513 = vset.pattern.permute.xlu0 0
  %514 = vperm.xlu0 %513, %v506
  %v515 = vpop.permute.xlu0 %514
  %v517 = vmul.f32 %v84, %v510
  %v518 = vmul.f32 %v85, %v515
  %520 = vset.pattern.permute.xlu0 0
  %521 = vperm.xlu0 %520, %v130
  %v522 = vpop.permute.xlu0 %521
  %525 = vset.pattern.permute.xlu0 0
  %526 = vperm.xlu0 %525, %v149
  %v527 = vpop.permute.xlu0 %526
  %v529 = vmul.f32 %v501, %v522
  %v530 = vmul.f32 %v502, %v527
  %v531 = vadd.f32 %v517, %v529
  %v532 = vadd.f32 %v518, %v530
  %v533 = vsel %vm503, 1, 0
  %v534 = vsel %vm504, 1, 0
  %535 = vset.pattern.permute.xlu0 0
  %536 = vperm.xlu0 %535, %v533
  %v537 = vpop.permute.xlu0 %536
  %538 = vset.pattern.permute.xlu0 0
  %539 = vperm.xlu0 %538, %v534
  %v540 = vpop.permute.xlu0 %539
  %vm541 = vcmp.eq.s32.totalorder %v537, 1
  %vm542 = vcmp.eq.s32.totalorder %v540, 1
  %v543 = vsel %vm541, %v531, %v84
  %v544 = vsel %vm542, %v532, %v85
  %v545 = vsel %vm503, %v130, 0.0
  %v546 = vsel %vm504, %v149, 0.0
  %v547 = vadd.f32 %v86, %v545
  %v548 = vadd.f32 %v87, %v546
  %v549 = vmul.f32 %v547, 0.99
  %v550 = vmul.f32 %v548, 0.99
  %v551 = vmul.f32 %v88, 0.98
  %v552 = vmul.f32 %v89, 0.98
  %v553 = vadd.f32 %v551, 1.0
  %v554 = vadd.f32 %v552, 1.0
  %v555 = vld [vmem:[%s0 + $0x2] ss:$0 sm:$0xff]
  %v556 = vld [vmem:[%s0 + $0x3] ss:$0 sm:$0xff]
  %v557 = vld [vmem:[%s1 + $0x2] ss:$0 sm:$0xff]
  %v558 = vld [vmem:[%s1 + $0x3] ss:$0 sm:$0xff]
  %v559 = vmul.f32 %v543, %v555
  %v560 = vmul.f32 %v544, %v556
  %v561 = vsel %vm96, %v559, 0.0
  %562 = vadd.xlane.f32.xlu0 %v561
  %v563 = vpop.xlane.xlu0 %562
  %v564 = vsel %vm96, %v560, 0.0
  %565 = vadd.xlane.f32.xlu0 %v564
  %v566 = vpop.xlane.xlu0 %565
  %v567 = vmul.f32 %v553, 0.1
  %v568 = vmul.f32 %v554, 0.1
  %v569 = vsub.f32 %v563, %v567
  %v570 = vsub.f32 %v566, %v568
  %v571 = vmul.f32 %v549, 0.2
  %v572 = vmul.f32 %v550, 0.2
  %v573 = vsub.f32 %v569, %v571
  %v574 = vsub.f32 %v570, %v572
  %v575 = vsel %vm111, %v573, -inf
  %v576 = vrot.slane %v575, 4
  %v577 = vmax.f32 %v575, %v576
  %v578 = vrot.slane %v577, 2
  %v579 = vmax.f32 %v577, %v578
  %v580 = vrot.slane %v579, 1
  %v581 = vmax.f32 %v579, %v580
  %v582 = vsub.f32 %v573, %v581
  %v583 = vmul.f32 %v582, 1.442695
  %v584 = vpow.pop %v583
  %v585 = vsel %vm111, %v584, 0.0
  %v586 = vrot.slane %v585, 4
  %v587 = vadd.f32 %v585, %v586
  %v588 = vrot.slane %v587, 2
  %v589 = vadd.f32 %v587, %v588
  %v590 = vrot.slane %v589, 1
  %v591 = vadd.f32 %v589, %v590
  %v592 = vrcp.pop %v591
  %v593 = vmul.f32 %v584, %v592
  %v594 = vsel %vm111, %v574, -inf
  %v595 = vrot.slane %v594, 4
  %v596 = vmax.f32 %v594, %v595
  %v597 = vrot.slane %v596, 2
  %v598 = vmax.f32 %v596, %v597
  %v599 = vrot.slane %v598, 1
  %v600 = vmax.f32 %v598, %v599
  %v601 = vsub.f32 %v574, %v600
  %v602 = vmul.f32 %v601, 1.442695
  %v603 = vpow.pop %v602
  %v604 = vsel %vm111, %v603, 0.0
  %v605 = vrot.slane %v604, 4
  %v606 = vadd.f32 %v604, %v605
  %v607 = vrot.slane %v606, 2
  %v608 = vadd.f32 %v606, %v607
  %v609 = vrot.slane %v608, 1
  %v610 = vadd.f32 %v608, %v609
  %v611 = vrcp.pop %v610
  %v612 = vmul.f32 %v603, %v611
  %v614 = vsel %vm96, %v543, 0
  %v617 = vsel %vm96, %v544, 0
  %619 = vmatprep.subr.mxu0 0.0
  %620 = vmatpush1.msra.mxu0 %v53
  %621 = vmatprep.subr.mxu0 0.0
  %622 = vmatpush1.msra.mxu0 %v54
  %623 = vmatprep.subr.mxu0 0.0
  %624 = vmatpush1.msra.mxu0 %v55
  %625 = vmatprep.subr.mxu0 0.0
  %626 = vmatpush1.msra.mxu0 %v56
  %627 = vmatprep.subr.mxu0 0.0
  %628 = vmatpush1.msra.mxu0 0.0
  %629 = vmatprep.subr.mxu0 0.0
  %630 = vmatpush1.msra.mxu0 0.0
  %631 = vmatprep.subr.mxu0 0.0
  %632 = vmatpush1.msra.mxu0 0.0
  %633 = vmatprep.subr.mxu0 0.0
  %634 = vmatpush1.msra.mxu0 0.0
  %635 = vmatprep.subr.mxu0 0.0
  %636 = vmatpush1.msra.mxu0 0.0
  %637 = vmatprep.subr.mxu0 0.0
  %638 = vmatpush1.msra.mxu0 0.0
  %639 = vmatprep.subr.mxu0 0.0
  %640 = vmatpush1.msra.mxu0 0.0
  %641 = vmatprep.subr.mxu0 0.0
  %642 = vmatpush1.msra.mxu0 0.0
  %643 = vmatprep.subr.mxu0 0.0
  %644 = vmatpush1.msra.mxu0 0.0
  %645 = vmatprep.subr.mxu0 0.0
  %646 = vmatpush1.msra.mxu0 0.0
  %647 = vmatprep.subr.mxu0 0.0
  %648 = vmatpush1.msra.mxu0 0.0
  %649 = vmatprep.subr.mxu0 0.0
  %650 = vmatpush1.msra.mxu0 0.0
  %651 = vmatprep.subr.mxu0 0.0
  %652 = vmatpush1.msra.mxu0 0.0
  %653 = vmatprep.subr.mxu0 0.0
  %654 = vmatpush1.msra.mxu0 0.0
  %655 = vmatprep.subr.mxu0 0.0
  %656 = vmatpush1.msra.mxu0 0.0
  %657 = vmatprep.subr.mxu0 0.0
  %658 = vmatpush1.msra.mxu0 0.0
  %659 = vmatprep.subr.mxu0 0.0
  %660 = vmatpush1.msra.mxu0 0.0
  %661 = vmatprep.subr.mxu0 0.0
  %662 = vmatpush1.msra.mxu0 0.0
  %663 = vmatprep.subr.mxu0 0.0
  %664 = vmatpush1.msra.mxu0 0.0
  %665 = vmatprep.subr.mxu0 0.0
  %666 = vmatpush1.msra.mxu0 0.0
  %667 = vmatprep.subr.mxu0 0.0
  %668 = vmatpush1.msra.mxu0 0.0
  %669 = vmatprep.subr.mxu0 0.0
  %670 = vmatpush1.msra.mxu0 0.0
  %671 = vmatprep.subr.mxu0 0.0
  %672 = vmatpush1.msra.mxu0 0.0
  %673 = vmatprep.subr.mxu0 0.0
  %674 = vmatpush1.msra.mxu0 0.0
  %675 = vmatprep.subr.mxu0 0.0
  %676 = vmatpush1.msra.mxu0 0.0
  %677 = vmatprep.subr.mxu0 0.0
  %678 = vmatpush1.msra.mxu0 0.0
  %679 = vmatprep.subr.mxu0 0.0
  %680 = vmatpush1.msra.mxu0 0.0
  %681 = vmatprep.subr.mxu0 0.0
  %682 = vmatpush1.msra.mxu0 0.0
  %683 = vmatprep.mubr.f32.mxu0 0.0
  %684 = vmatmul.mubr.f32.gmra.mrb[0].mxu0 %v614
  %v685 = vpop.f32.mrb[0].mxu0
  %v686 = vadd.f32 %v557, %v685
  %v687 = vpop.f32.mrb[0].mxu0
  %688 = vmatprep.mubr.f32.mxu0 0.0
  %689 = vmatmul.mubr.f32.gmra.mrb[0].mxu0 %v617
  %v690 = vpop.f32.mrb[0].mxu0
  %v691 = vadd.f32 %v558, %v690
  %v692 = vpop.f32.mrb[0].mxu0
  %693 = vdwg.mxu0
  %v694 = vxor.u32 %v686, 2147483648
  %v695 = vxor.u32 %v691, 2147483648
  %v696 = vmul.f32 %v694, 1.442695
  %v697 = vpow.pop %v696
  %v698 = vmul.f32 %v695, 1.442695
  %v699 = vpow.pop %v698
  %v700 = vadd.f32 %v697, 1.0
  %v701 = vadd.f32 %v699, 1.0
  %v702 = vrcp.pop %v700
  %v703 = vmul.f32 1.0, %v702
  %v704 = vrcp.pop %v701
  %v705 = vmul.f32 1.0, %v704
  %708 = vrot.lane.b32.xlu0 %v686, 64
  %v709 = vpop.permute.xlu0 %708
  %710 = vrot.lane.b32.xlu0 %v691, 64
  %v711 = vpop.permute.xlu0 %710
  %v714 = vsel %vm251, %v709, 0.0
  %715 = vadd.xlane.f32.xlu0 %v714
  %v716 = vpop.xlane.xlu0 %715
  %v717 = vsel %vm251, %v711, 0.0
  %718 = vadd.xlane.f32.xlu0 %v717
  %v719 = vpop.xlane.xlu0 %718
  %v720 = vmul.f32 %v686, %v686
  %v721 = vmul.f32 %v691, %v691
  %724 = vrot.lane.b32.xlu0 %v720, 64
  %v725 = vpop.permute.xlu0 %724
  %726 = vrot.lane.b32.xlu0 %v721, 64
  %v727 = vpop.permute.xlu0 %726
  %v730 = vsel %vm251, %v725, 0.0
  %731 = vadd.xlane.f32.xlu0 %v730
  %v732 = vpop.xlane.xlu0 %731
  %v733 = vsel %vm251, %v727, 0.0
  %734 = vadd.xlane.f32.xlu0 %v733
  %v735 = vpop.xlane.xlu0 %734
  %v736 = vmul.f32 %v716, 0.015625
  %v737 = vmul.f32 %v719, 0.015625
  %v738 = vmul.f32 %v732, 0.015625
  %v739 = vmul.f32 %v735, 0.015625
  %v740 = vmul.f32 %v736, %v736
  %v741 = vmul.f32 %v737, %v737
  %v742 = vsub.f32 %v738, %v740
  %v743 = vsub.f32 %v739, %v741
  %v744 = vmax.f32 %v742, 0.0
  %v745 = vmax.f32 %v743, 0.0
  %v746 = vsub.f32 %v686, %v736
  %v747 = vsub.f32 %v691, %v737
  %v748 = vadd.f32 %v744, 1e-05
  %v749 = vadd.f32 %v745, 1e-05
  %v750 = vrsqrt.pop %v748
  %v751 = vrsqrt.pop %v749
  %v752 = vmul.f32 %v746, %v750
  %v753 = vmul.f32 %v747, %v751
  %v754 = vmul.f32 %v752, %v293
  %v755 = vmul.f32 %v753, %v293
  %v756 = vadd.f32 %v754, %v298
  %v757 = vadd.f32 %v755, %v298
  %v758 = vmul.f32 %v756, 0.5
  %v759 = vmul.f32 %v757, 0.5
  %v760 = vmul.f32 %v756, 0.70710677
  %v761 = vmul.f32 %v757, 0.70710677
  %v762 = verf.f32.pop %v760
  %v763 = verf.f32.pop %v761
  %v764 = vadd.f32 %v762, 1.0
  %v765 = vadd.f32 %v763, 1.0
  %v766 = vmul.f32 %v758, %v764
  %v767 = vmul.f32 %v759, %v765
  %770 = vrot.lane.b32.xlu0 %v766, 64
  %v771 = vpop.permute.xlu0 %770
  %772 = vrot.lane.b32.xlu0 %v767, 64
  %v773 = vpop.permute.xlu0 %772
  %v774 = vsel %vm251, %v771, 0
  %v776 = vsel %vm251, %v773, 0
  %778 = vmatprep.subr.mxu0 0.0
  %779 = vmatpush1.msra.mxu0 %v57
  %780 = vmatprep.subr.mxu0 0.0
  %781 = vmatpush1.msra.mxu0 %v58
  %782 = vmatprep.subr.mxu0 0.0
  %783 = vmatpush1.msra.mxu0 %v59
  %784 = vmatprep.subr.mxu0 0.0
  %785 = vmatpush1.msra.mxu0 %v60
  %786 = vmatprep.subr.mxu0 0.0
  %787 = vmatpush1.msra.mxu0 %v61
  %788 = vmatprep.subr.mxu0 0.0
  %789 = vmatpush1.msra.mxu0 %v62
  %790 = vmatprep.subr.mxu0 0.0
  %791 = vmatpush1.msra.mxu0 %v63
  %792 = vmatprep.subr.mxu0 0.0
  %793 = vmatpush1.msra.mxu0 %v64
  %794 = vmatprep.subr.mxu0 0.0
  %795 = vmatpush1.msra.mxu0 0.0
  %796 = vmatprep.subr.mxu0 0.0
  %797 = vmatpush1.msra.mxu0 0.0
  %798 = vmatprep.subr.mxu0 0.0
  %799 = vmatpush1.msra.mxu0 0.0
  %800 = vmatprep.subr.mxu0 0.0
  %801 = vmatpush1.msra.mxu0 0.0
  %802 = vmatprep.subr.mxu0 0.0
  %803 = vmatpush1.msra.mxu0 0.0
  %804 = vmatprep.subr.mxu0 0.0
  %805 = vmatpush1.msra.mxu0 0.0
  %806 = vmatprep.subr.mxu0 0.0
  %807 = vmatpush1.msra.mxu0 0.0
  %808 = vmatprep.subr.mxu0 0.0
  %809 = vmatpush1.msra.mxu0 0.0
  %810 = vmatprep.subr.mxu0 0.0
  %811 = vmatpush1.msra.mxu0 0.0
  %812 = vmatprep.subr.mxu0 0.0
  %813 = vmatpush1.msra.mxu0 0.0
  %814 = vmatprep.subr.mxu0 0.0
  %815 = vmatpush1.msra.mxu0 0.0
  %816 = vmatprep.subr.mxu0 0.0
  %817 = vmatpush1.msra.mxu0 0.0
  %818 = vmatprep.subr.mxu0 0.0
  %819 = vmatpush1.msra.mxu0 0.0
  %820 = vmatprep.subr.mxu0 0.0
  %821 = vmatpush1.msra.mxu0 0.0
  %822 = vmatprep.subr.mxu0 0.0
  %823 = vmatpush1.msra.mxu0 0.0
  %824 = vmatprep.subr.mxu0 0.0
  %825 = vmatpush1.msra.mxu0 0.0
  %826 = vmatprep.subr.mxu0 0.0
  %827 = vmatpush1.msra.mxu0 0.0
  %828 = vmatprep.subr.mxu0 0.0
  %829 = vmatpush1.msra.mxu0 0.0
  %830 = vmatprep.subr.mxu0 0.0
  %831 = vmatpush1.msra.mxu0 0.0
  %832 = vmatprep.subr.mxu0 0.0
  %833 = vmatpush1.msra.mxu0 0.0
  %834 = vmatprep.subr.mxu0 0.0
  %835 = vmatpush1.msra.mxu0 0.0
  %836 = vmatprep.subr.mxu0 0.0
  %837 = vmatpush1.msra.mxu0 0.0
  %838 = vmatprep.subr.mxu0 0.0
  %839 = vmatpush1.msra.mxu0 0.0
  %840 = vmatprep.subr.mxu0 0.0
  %841 = vmatpush1.msra.mxu0 0.0
  %842 = vmatprep.mubr.f32.mxu0 0.0
  %843 = vmatmul.mubr.f32.gmra.mrb[0].mxu0 %v774
  %v844 = vpop.f32.mrb[0].mxu0
  %v845 = vadd.f32 %v82, %v844
  %v846 = vpop.f32.mrb[0].mxu0
  %847 = vmatprep.mubr.f32.mxu0 0.0
  %848 = vmatmul.mubr.f32.gmra.mrb[0].mxu0 %v776
  %v849 = vpop.f32.mrb[0].mxu0
  %v850 = vadd.f32 %v82, %v849
  %v851 = vpop.f32.mrb[0].mxu0
  %852 = vdwg.mxu0
  %v853 = vtanh.pop %v845
  %v854 = vtanh.pop %v850
  %v855 = vmul.f32 %v703, 9.9
  %v856 = vmul.f32 %v705, 9.9
  %v857 = vadd.f32 %v855, 0.1
  %v858 = vadd.f32 %v856, 0.1
  %v859 = vadd.f32 %v857, 1e-06
  %v860 = vadd.f32 %v858, 1e-06
  %v861 = vsub.f32 1.0, %v703
  %v862 = vsub.f32 1.0, %v705
  %v863 = vrcp.pop %v859
  %v864 = vrcp.pop %v860
  %v865 = vmul.f32 %v543, %v863
  %v866 = vmul.f32 %v544, %v864
  %869 = vrot.lane.b32.xlu0 %v865, 32
  %v870 = vpop.permute.xlu0 %869
  %871 = vrot.lane.b32.xlu0 %v866, 32
  %v872 = vpop.permute.xlu0 %871
  %v875 = vmul.f32 %v861, %v870
  %v876 = vmul.f32 %v862, %v872
  %879 = vrot.lane.b32.xlu0 %v853, 32
  %v880 = vpop.permute.xlu0 %879
  %881 = vrot.lane.b32.xlu0 %v854, 32
  %v882 = vpop.permute.xlu0 %881
  %v885 = vmul.f32 %v703, %v880
  %v886 = vmul.f32 %v705, %v882
  %v887 = vadd.f32 %v875, %v885
  %v888 = vadd.f32 %v876, %v886
  %v889 = vmul.f32 %v887, %v887
  %v890 = vmul.f32 %v888, %v888
  %893 = vrot.lane.b32.xlu0 %v889, 96
  %v894 = vpop.permute.xlu0 %893
  %895 = vrot.lane.b32.xlu0 %v890, 96
  %v896 = vpop.permute.xlu0 %895
  %v899 = vsel %vm96, %v894, 0.0
  %900 = vadd.xlane.f32.xlu0 %v899
  %v901 = vpop.xlane.xlu0 %900
  %v902 = vsel %vm96, %v896, 0.0
  %903 = vadd.xlane.f32.xlu0 %v902
  %v904 = vpop.xlane.xlu0 %903
  %v905 = vmul.f32 %v543, %v543
  %v906 = vmul.f32 %v544, %v544
  %v907 = vsel %vm96, %v905, 0.0
  %908 = vadd.xlane.f32.xlu0 %v907
  %v909 = vpop.xlane.xlu0 %908
  %v910 = vsel %vm96, %v906, 0.0
  %911 = vadd.xlane.f32.xlu0 %v910
  %v912 = vpop.xlane.xlu0 %911
  %vm913 = vcmp.ne.f32.partialorder %v901, %v901
  %vm914 = vcmp.ne.f32.partialorder %v904, %v904
  %v915 = vand.u32 2147483647, %v901
  %v916 = vand.u32 2147483647, %v904
  %vm917 = vcmp.eq.f32.partialorder %v915, inf
  %vm918 = vcmp.eq.f32.partialorder %v916, inf
  %vm919 = vmor %vm913, %vm917
  %vm920 = vmor %vm914, %vm918
  %v921 = vmax.f32 %v909, 1e-12
  %v922 = vmax.f32 %v912, 1e-12
  %v923 = vrsqrt.pop %v921
  %v924 = vmul.f32 %v921, %v923
  %vm925 = vcmp.eq.f32.partialorder %v921, inf
  %v926 = vsel %vm925, %v921, %v924
  %vm927 = vcmp.eq.f32.partialorder %v921, 0.0
  %v928 = vand.u32 %v921, 2147483648
  %v929 = vsel %vm927, %v928, %v926
  %v930 = vrsqrt.pop %v922
  %v931 = vmul.f32 %v922, %v930
  %vm932 = vcmp.eq.f32.partialorder %v922, inf
  %v933 = vsel %vm932, %v922, %v931
  %vm934 = vcmp.eq.f32.partialorder %v922, 0.0
  %v935 = vand.u32 %v922, 2147483648
  %v936 = vsel %vm934, %v935, %v933
  %v937 = vmax.f32 %v901, 1e-24
  %v938 = vmax.f32 %v904, 1e-24
  %v939 = vrsqrt.pop %v937
  %v940 = vrsqrt.pop %v938
  %v941 = vmul.f32 %v939, %v929
  %v942 = vmul.f32 %v940, %v936
  %v943 = vmul.f32 %v887, %v941
  %v944 = vmul.f32 %v888, %v942
  %v945 = vsel %vm919, 1, 0
  %v946 = vsel %vm920, 1, 0
  %vm947 = vcmp.eq.s32.totalorder %v945, 1
  %vm948 = vcmp.eq.s32.totalorder %v946, 1
  %951 = vrot.lane.b32.xlu0 %v943, 96
  %v952 = vpop.permute.xlu0 %951
  %953 = vrot.lane.b32.xlu0 %v944, 96
  %v954 = vpop.permute.xlu0 %953
  %v957 = vsel %vm947, %v543, %v952
  %v958 = vsel %vm948, %v544, %v954
  %vm959 = vcmp.gt.f32.partialorder %v593, 0.01
  %vm960 = vcmp.gt.f32.partialorder %v612, 0.01
  %v961 = vsub.f32 1.0, %v593
  %v962 = vsub.f32 1.0, %v612
  %964 = vset.pattern.permute.xlu0 0
  %965 = vperm.xlu0 %964, %v961
  %v966 = vpop.permute.xlu0 %965
  %969 = vset.pattern.permute.xlu0 0
  %970 = vperm.xlu0 %969, %v962
  %v971 = vpop.permute.xlu0 %970
  %v973 = vmul.f32 %v543, %v966
  %v974 = vmul.f32 %v544, %v971
  %976 = vset.pattern.permute.xlu0 0
  %977 = vperm.xlu0 %976, %v593
  %v978 = vpop.permute.xlu0 %977
  %981 = vset.pattern.permute.xlu0 0
  %982 = vperm.xlu0 %981, %v612
  %v983 = vpop.permute.xlu0 %982
  %v985 = vmul.f32 %v957, %v978
  %v986 = vmul.f32 %v958, %v983
  %v987 = vadd.f32 %v973, %v985
  %v988 = vadd.f32 %v974, %v986
  %v989 = vsel %vm959, 1, 0
  %v990 = vsel %vm960, 1, 0
  %991 = vset.pattern.permute.xlu0 0
  %992 = vperm.xlu0 %991, %v989
  %v993 = vpop.permute.xlu0 %992
  %994 = vset.pattern.permute.xlu0 0
  %995 = vperm.xlu0 %994, %v990
  %v996 = vpop.permute.xlu0 %995
  %vm997 = vcmp.eq.s32.totalorder %v993, 1
  %vm998 = vcmp.eq.s32.totalorder %v996, 1
  %v999 = vsel %vm997, %v987, %v543
  %v1000 = vsel %vm998, %v988, %v544
  %v1001 = vsel %vm959, %v593, 0.0
  %v1002 = vsel %vm960, %v612, 0.0
  %v1003 = vadd.f32 %v549, %v1001
  %v1004 = vadd.f32 %v550, %v1002
  %v1005 = vmul.f32 %v1003, 0.99
  %v1006 = vmul.f32 %v1004, 0.99
  %v1007 = vmul.f32 %v553, 0.98
  %v1008 = vmul.f32 %v554, 0.98
  %v1009 = vadd.f32 %v1007, 1.0
  %v1010 = vadd.f32 %v1008, 1.0
  %v1011 = vld [vmem:[%s0 + $0x4] ss:$0 sm:$0xff]
  %v1012 = vld [vmem:[%s0 + $0x5] ss:$0 sm:$0xff]
  %v1013 = vld [vmem:[%s1 + $0x4] ss:$0 sm:$0xff]
  %v1014 = vld [vmem:[%s1 + $0x5] ss:$0 sm:$0xff]
  %v1015 = vmul.f32 %v999, %v1011
  %v1016 = vmul.f32 %v1000, %v1012
  %v1017 = vsel %vm96, %v1015, 0.0
  %1018 = vadd.xlane.f32.xlu0 %v1017
  %v1019 = vpop.xlane.xlu0 %1018
  %v1020 = vsel %vm96, %v1016, 0.0
  %1021 = vadd.xlane.f32.xlu0 %v1020
  %v1022 = vpop.xlane.xlu0 %1021
  %v1023 = vmul.f32 %v1009, 0.1
  %v1024 = vmul.f32 %v1010, 0.1
  %v1025 = vsub.f32 %v1019, %v1023
  %v1026 = vsub.f32 %v1022, %v1024
  %v1027 = vmul.f32 %v1005, 0.2
  %v1028 = vmul.f32 %v1006, 0.2
  %v1029 = vsub.f32 %v1025, %v1027
  %v1030 = vsub.f32 %v1026, %v1028
  %v1031 = vsel %vm111, %v1029, -inf
  %v1032 = vrot.slane %v1031, 4
  %v1033 = vmax.f32 %v1031, %v1032
  %v1034 = vrot.slane %v1033, 2
  %v1035 = vmax.f32 %v1033, %v1034
  %v1036 = vrot.slane %v1035, 1
  %v1037 = vmax.f32 %v1035, %v1036
  %v1038 = vsub.f32 %v1029, %v1037
  %v1039 = vmul.f32 %v1038, 1.442695
  %v1040 = vpow.pop %v1039
  %v1041 = vsel %vm111, %v1040, 0.0
  %v1042 = vrot.slane %v1041, 4
  %v1043 = vadd.f32 %v1041, %v1042
  %v1044 = vrot.slane %v1043, 2
  %v1045 = vadd.f32 %v1043, %v1044
  %v1046 = vrot.slane %v1045, 1
  %v1047 = vadd.f32 %v1045, %v1046
  %v1048 = vrcp.pop %v1047
  %v1049 = vmul.f32 %v1040, %v1048
  %v1050 = vsel %vm111, %v1030, -inf
  %v1051 = vrot.slane %v1050, 4
  %v1052 = vmax.f32 %v1050, %v1051
  %v1053 = vrot.slane %v1052, 2
  %v1054 = vmax.f32 %v1052, %v1053
  %v1055 = vrot.slane %v1054, 1
  %v1056 = vmax.f32 %v1054, %v1055
  %v1057 = vsub.f32 %v1030, %v1056
  %v1058 = vmul.f32 %v1057, 1.442695
  %v1059 = vpow.pop %v1058
  %v1060 = vsel %vm111, %v1059, 0.0
  %v1061 = vrot.slane %v1060, 4
  %v1062 = vadd.f32 %v1060, %v1061
  %v1063 = vrot.slane %v1062, 2
  %v1064 = vadd.f32 %v1062, %v1063
  %v1065 = vrot.slane %v1064, 1
  %v1066 = vadd.f32 %v1064, %v1065
  %v1067 = vrcp.pop %v1066
  %v1068 = vmul.f32 %v1059, %v1067
  %v1070 = vsel %vm96, %v999, 0
  %v1073 = vsel %vm96, %v1000, 0
  %1075 = vmatprep.subr.mxu0 0.0
  %1076 = vmatpush1.msra.mxu0 %v53
  %1077 = vmatprep.subr.mxu0 0.0
  %1078 = vmatpush1.msra.mxu0 %v54
  %1079 = vmatprep.subr.mxu0 0.0
  %1080 = vmatpush1.msra.mxu0 %v55
  %1081 = vmatprep.subr.mxu0 0.0
  %1082 = vmatpush1.msra.mxu0 %v56
  %1083 = vmatprep.subr.mxu0 0.0
  %1084 = vmatpush1.msra.mxu0 0.0
  %1085 = vmatprep.subr.mxu0 0.0
  %1086 = vmatpush1.msra.mxu0 0.0
  %1087 = vmatprep.subr.mxu0 0.0
  %1088 = vmatpush1.msra.mxu0 0.0
  %1089 = vmatprep.subr.mxu0 0.0
  %1090 = vmatpush1.msra.mxu0 0.0
  %1091 = vmatprep.subr.mxu0 0.0
  %1092 = vmatpush1.msra.mxu0 0.0
  %1093 = vmatprep.subr.mxu0 0.0
  %1094 = vmatpush1.msra.mxu0 0.0
  %1095 = vmatprep.subr.mxu0 0.0
  %1096 = vmatpush1.msra.mxu0 0.0
  %1097 = vmatprep.subr.mxu0 0.0
  %1098 = vmatpush1.msra.mxu0 0.0
  %1099 = vmatprep.subr.mxu0 0.0
  %1100 = vmatpush1.msra.mxu0 0.0
  %1101 = vmatprep.subr.mxu0 0.0
  %1102 = vmatpush1.msra.mxu0 0.0
  %1103 = vmatprep.subr.mxu0 0.0
  %1104 = vmatpush1.msra.mxu0 0.0
  %1105 = vmatprep.subr.mxu0 0.0
  %1106 = vmatpush1.msra.mxu0 0.0
  %1107 = vmatprep.subr.mxu0 0.0
  %1108 = vmatpush1.msra.mxu0 0.0
  %1109 = vmatprep.subr.mxu0 0.0
  %1110 = vmatpush1.msra.mxu0 0.0
  %1111 = vmatprep.subr.mxu0 0.0
  %1112 = vmatpush1.msra.mxu0 0.0
  %1113 = vmatprep.subr.mxu0 0.0
  %1114 = vmatpush1.msra.mxu0 0.0
  %1115 = vmatprep.subr.mxu0 0.0
  %1116 = vmatpush1.msra.mxu0 0.0
  %1117 = vmatprep.subr.mxu0 0.0
  %1118 = vmatpush1.msra.mxu0 0.0
  %1119 = vmatprep.subr.mxu0 0.0
  %1120 = vmatpush1.msra.mxu0 0.0
  %1121 = vmatprep.subr.mxu0 0.0
  %1122 = vmatpush1.msra.mxu0 0.0
  %1123 = vmatprep.subr.mxu0 0.0
  %1124 = vmatpush1.msra.mxu0 0.0
  %1125 = vmatprep.subr.mxu0 0.0
  %1126 = vmatpush1.msra.mxu0 0.0
  %1127 = vmatprep.subr.mxu0 0.0
  %1128 = vmatpush1.msra.mxu0 0.0
  %1129 = vmatprep.subr.mxu0 0.0
  %1130 = vmatpush1.msra.mxu0 0.0
  %1131 = vmatprep.subr.mxu0 0.0
  %1132 = vmatpush1.msra.mxu0 0.0
  %1133 = vmatprep.subr.mxu0 0.0
  %1134 = vmatpush1.msra.mxu0 0.0
  %1135 = vmatprep.subr.mxu0 0.0
  %1136 = vmatpush1.msra.mxu0 0.0
  %1137 = vmatprep.subr.mxu0 0.0
  %1138 = vmatpush1.msra.mxu0 0.0
  %1139 = vmatprep.mubr.f32.mxu0 0.0
  %1140 = vmatmul.mubr.f32.gmra.mrb[0].mxu0 %v1070
  %v1141 = vpop.f32.mrb[0].mxu0
  %v1142 = vadd.f32 %v1013, %v1141
  %v1143 = vpop.f32.mrb[0].mxu0
  %1144 = vmatprep.mubr.f32.mxu0 0.0
  %1145 = vmatmul.mubr.f32.gmra.mrb[0].mxu0 %v1073
  %v1146 = vpop.f32.mrb[0].mxu0
  %v1147 = vadd.f32 %v1014, %v1146
  %v1148 = vpop.f32.mrb[0].mxu0
  %1149 = vdwg.mxu0
  %v1150 = vxor.u32 %v1142, 2147483648
  %v1151 = vxor.u32 %v1147, 2147483648
  %v1152 = vmul.f32 %v1150, 1.442695
  %v1153 = vpow.pop %v1152
  %v1154 = vmul.f32 %v1151, 1.442695
  %v1155 = vpow.pop %v1154
  %v1156 = vadd.f32 %v1153, 1.0
  %v1157 = vadd.f32 %v1155, 1.0
  %v1158 = vrcp.pop %v1156
  %v1159 = vmul.f32 1.0, %v1158
  %v1160 = vrcp.pop %v1157
  %v1161 = vmul.f32 1.0, %v1160
  %1164 = vrot.lane.b32.xlu0 %v1142, 64
  %v1165 = vpop.permute.xlu0 %1164
  %1166 = vrot.lane.b32.xlu0 %v1147, 64
  %v1167 = vpop.permute.xlu0 %1166
  %v1170 = vsel %vm251, %v1165, 0.0
  %1171 = vadd.xlane.f32.xlu0 %v1170
  %v1172 = vpop.xlane.xlu0 %1171
  %v1173 = vsel %vm251, %v1167, 0.0
  %1174 = vadd.xlane.f32.xlu0 %v1173
  %v1175 = vpop.xlane.xlu0 %1174
  %v1176 = vmul.f32 %v1142, %v1142
  %v1177 = vmul.f32 %v1147, %v1147
  %1180 = vrot.lane.b32.xlu0 %v1176, 64
  %v1181 = vpop.permute.xlu0 %1180
  %1182 = vrot.lane.b32.xlu0 %v1177, 64
  %v1183 = vpop.permute.xlu0 %1182
  %v1186 = vsel %vm251, %v1181, 0.0
  %1187 = vadd.xlane.f32.xlu0 %v1186
  %v1188 = vpop.xlane.xlu0 %1187
  %v1189 = vsel %vm251, %v1183, 0.0
  %1190 = vadd.xlane.f32.xlu0 %v1189
  %v1191 = vpop.xlane.xlu0 %1190
  %v1192 = vmul.f32 %v1172, 0.015625
  %v1193 = vmul.f32 %v1175, 0.015625
  %v1194 = vmul.f32 %v1188, 0.015625
  %v1195 = vmul.f32 %v1191, 0.015625
  %v1196 = vmul.f32 %v1192, %v1192
  %v1197 = vmul.f32 %v1193, %v1193
  %v1198 = vsub.f32 %v1194, %v1196
  %v1199 = vsub.f32 %v1195, %v1197
  %v1200 = vmax.f32 %v1198, 0.0
  %v1201 = vmax.f32 %v1199, 0.0
  %v1202 = vsub.f32 %v1142, %v1192
  %v1203 = vsub.f32 %v1147, %v1193
  %v1204 = vadd.f32 %v1200, 1e-05
  %v1205 = vadd.f32 %v1201, 1e-05
  %v1206 = vrsqrt.pop %v1204
  %v1207 = vrsqrt.pop %v1205
  %v1208 = vmul.f32 %v1202, %v1206
  %v1209 = vmul.f32 %v1203, %v1207
  %v1210 = vmul.f32 %v1208, %v293
  %v1211 = vmul.f32 %v1209, %v293
  %v1212 = vadd.f32 %v1210, %v298
  %v1213 = vadd.f32 %v1211, %v298
  %v1214 = vmul.f32 %v1212, 0.5
  %v1215 = vmul.f32 %v1213, 0.5
  %v1216 = vmul.f32 %v1212, 0.70710677
  %v1217 = vmul.f32 %v1213, 0.70710677
  %v1218 = verf.f32.pop %v1216
  %v1219 = verf.f32.pop %v1217
  %v1220 = vadd.f32 %v1218, 1.0
  %v1221 = vadd.f32 %v1219, 1.0
  %v1222 = vmul.f32 %v1214, %v1220
  %v1223 = vmul.f32 %v1215, %v1221
  %1226 = vrot.lane.b32.xlu0 %v1222, 64
  %v1227 = vpop.permute.xlu0 %1226
  %1228 = vrot.lane.b32.xlu0 %v1223, 64
  %v1229 = vpop.permute.xlu0 %1228
  %v1230 = vsel %vm251, %v1227, 0
  %v1232 = vsel %vm251, %v1229, 0
  %1234 = vmatprep.subr.mxu0 0.0
  %1235 = vmatpush1.msra.mxu0 %v57
  %1236 = vmatprep.subr.mxu0 0.0
  %1237 = vmatpush1.msra.mxu0 %v58
  %1238 = vmatprep.subr.mxu0 0.0
  %1239 = vmatpush1.msra.mxu0 %v59
  %1240 = vmatprep.subr.mxu0 0.0
  %1241 = vmatpush1.msra.mxu0 %v60
  %1242 = vmatprep.subr.mxu0 0.0
  %1243 = vmatpush1.msra.mxu0 %v61
  %1244 = vmatprep.subr.mxu0 0.0
  %1245 = vmatpush1.msra.mxu0 %v62
  %1246 = vmatprep.subr.mxu0 0.0
  %1247 = vmatpush1.msra.mxu0 %v63
  %1248 = vmatprep.subr.mxu0 0.0
  %1249 = vmatpush1.msra.mxu0 %v64
  %1250 = vmatprep.subr.mxu0 0.0
  %1251 = vmatpush1.msra.mxu0 0.0
  %1252 = vmatprep.subr.mxu0 0.0
  %1253 = vmatpush1.msra.mxu0 0.0
  %1254 = vmatprep.subr.mxu0 0.0
  %1255 = vmatpush1.msra.mxu0 0.0
  %1256 = vmatprep.subr.mxu0 0.0
  %1257 = vmatpush1.msra.mxu0 0.0
  %1258 = vmatprep.subr.mxu0 0.0
  %1259 = vmatpush1.msra.mxu0 0.0
  %1260 = vmatprep.subr.mxu0 0.0
  %1261 = vmatpush1.msra.mxu0 0.0
  %1262 = vmatprep.subr.mxu0 0.0
  %1263 = vmatpush1.msra.mxu0 0.0
  %1264 = vmatprep.subr.mxu0 0.0
  %1265 = vmatpush1.msra.mxu0 0.0
  %1266 = vmatprep.subr.mxu0 0.0
  %1267 = vmatpush1.msra.mxu0 0.0
  %1268 = vmatprep.subr.mxu0 0.0
  %1269 = vmatpush1.msra.mxu0 0.0
  %1270 = vmatprep.subr.mxu0 0.0
  %1271 = vmatpush1.msra.mxu0 0.0
  %1272 = vmatprep.subr.mxu0 0.0
  %1273 = vmatpush1.msra.mxu0 0.0
  %1274 = vmatprep.subr.mxu0 0.0
  %1275 = vmatpush1.msra.mxu0 0.0
  %1276 = vmatprep.subr.mxu0 0.0
  %1277 = vmatpush1.msra.mxu0 0.0
  %1278 = vmatprep.subr.mxu0 0.0
  %1279 = vmatpush1.msra.mxu0 0.0
  %1280 = vmatprep.subr.mxu0 0.0
  %1281 = vmatpush1.msra.mxu0 0.0
  %1282 = vmatprep.subr.mxu0 0.0
  %1283 = vmatpush1.msra.mxu0 0.0
  %1284 = vmatprep.subr.mxu0 0.0
  %1285 = vmatpush1.msra.mxu0 0.0
  %1286 = vmatprep.subr.mxu0 0.0
  %1287 = vmatpush1.msra.mxu0 0.0
  %1288 = vmatprep.subr.mxu0 0.0
  %1289 = vmatpush1.msra.mxu0 0.0
  %1290 = vmatprep.subr.mxu0 0.0
  %1291 = vmatpush1.msra.mxu0 0.0
  %1292 = vmatprep.subr.mxu0 0.0
  %1293 = vmatpush1.msra.mxu0 0.0
  %1294 = vmatprep.subr.mxu0 0.0
  %1295 = vmatpush1.msra.mxu0 0.0
  %1296 = vmatprep.subr.mxu0 0.0
  %1297 = vmatpush1.msra.mxu0 0.0
  %1298 = vmatprep.mubr.f32.mxu0 0.0
  %1299 = vmatmul.mubr.f32.gmra.mrb[0].mxu0 %v1230
  %v1300 = vpop.f32.mrb[0].mxu0
  %v1301 = vadd.f32 %v82, %v1300
  %v1302 = vpop.f32.mrb[0].mxu0
  %1303 = vmatprep.mubr.f32.mxu0 0.0
  %1304 = vmatmul.mubr.f32.gmra.mrb[0].mxu0 %v1232
  %v1305 = vpop.f32.mrb[0].mxu0
  %v1306 = vadd.f32 %v82, %v1305
  %v1307 = vpop.f32.mrb[0].mxu0
  %1308 = vdwg.mxu0
  %v1309 = vtanh.pop %v1301
  %v1310 = vtanh.pop %v1306
  %v1311 = vmul.f32 %v1159, 9.9
  %v1312 = vmul.f32 %v1161, 9.9
  %v1313 = vadd.f32 %v1311, 0.1
  %v1314 = vadd.f32 %v1312, 0.1
  %v1315 = vadd.f32 %v1313, 1e-06
  %v1316 = vadd.f32 %v1314, 1e-06
  %v1317 = vsub.f32 1.0, %v1159
  %v1318 = vsub.f32 1.0, %v1161
  %v1319 = vrcp.pop %v1315
  %v1320 = vrcp.pop %v1316
  %v1321 = vmul.f32 %v999, %v1319
  %v1322 = vmul.f32 %v1000, %v1320
  %1325 = vrot.lane.b32.xlu0 %v1321, 32
  %v1326 = vpop.permute.xlu0 %1325
  %1327 = vrot.lane.b32.xlu0 %v1322, 32
  %v1328 = vpop.permute.xlu0 %1327
  %v1331 = vmul.f32 %v1317, %v1326
  %v1332 = vmul.f32 %v1318, %v1328
  %1335 = vrot.lane.b32.xlu0 %v1309, 32
  %v1336 = vpop.permute.xlu0 %1335
  %1337 = vrot.lane.b32.xlu0 %v1310, 32
  %v1338 = vpop.permute.xlu0 %1337
  %v1341 = vmul.f32 %v1159, %v1336
  %v1342 = vmul.f32 %v1161, %v1338
  %v1343 = vadd.f32 %v1331, %v1341
  %v1344 = vadd.f32 %v1332, %v1342
  %v1345 = vmul.f32 %v1343, %v1343
  %v1346 = vmul.f32 %v1344, %v1344
  %1349 = vrot.lane.b32.xlu0 %v1345, 96
  %v1350 = vpop.permute.xlu0 %1349
  %1351 = vrot.lane.b32.xlu0 %v1346, 96
  %v1352 = vpop.permute.xlu0 %1351
  %v1355 = vsel %vm96, %v1350, 0.0
  %1356 = vadd.xlane.f32.xlu0 %v1355
  %v1357 = vpop.xlane.xlu0 %1356
  %v1358 = vsel %vm96, %v1352, 0.0
  %1359 = vadd.xlane.f32.xlu0 %v1358
  %v1360 = vpop.xlane.xlu0 %1359
  %v1361 = vmul.f32 %v999, %v999
  %v1362 = vmul.f32 %v1000, %v1000
  %v1363 = vsel %vm96, %v1361, 0.0
  %1364 = vadd.xlane.f32.xlu0 %v1363
  %v1365 = vpop.xlane.xlu0 %1364
  %v1366 = vsel %vm96, %v1362, 0.0
  %1367 = vadd.xlane.f32.xlu0 %v1366
  %v1368 = vpop.xlane.xlu0 %1367
  %vm1369 = vcmp.ne.f32.partialorder %v1357, %v1357
  %vm1370 = vcmp.ne.f32.partialorder %v1360, %v1360
  %v1371 = vand.u32 2147483647, %v1357
  %v1372 = vand.u32 2147483647, %v1360
  %vm1373 = vcmp.eq.f32.partialorder %v1371, inf
  %vm1374 = vcmp.eq.f32.partialorder %v1372, inf
  %vm1375 = vmor %vm1369, %vm1373
  %vm1376 = vmor %vm1370, %vm1374
  %v1377 = vmax.f32 %v1365, 1e-12
  %v1378 = vmax.f32 %v1368, 1e-12
  %v1379 = vrsqrt.pop %v1377
  %v1380 = vmul.f32 %v1377, %v1379
  %vm1381 = vcmp.eq.f32.partialorder %v1377, inf
  %v1382 = vsel %vm1381, %v1377, %v1380
  %vm1383 = vcmp.eq.f32.partialorder %v1377, 0.0
  %v1384 = vand.u32 %v1377, 2147483648
  %v1385 = vsel %vm1383, %v1384, %v1382
  %v1386 = vrsqrt.pop %v1378
  %v1387 = vmul.f32 %v1378, %v1386
  %vm1388 = vcmp.eq.f32.partialorder %v1378, inf
  %v1389 = vsel %vm1388, %v1378, %v1387
  %vm1390 = vcmp.eq.f32.partialorder %v1378, 0.0
  %v1391 = vand.u32 %v1378, 2147483648
  %v1392 = vsel %vm1390, %v1391, %v1389
  %v1393 = vmax.f32 %v1357, 1e-24
  %v1394 = vmax.f32 %v1360, 1e-24
  %v1395 = vrsqrt.pop %v1393
  %v1396 = vrsqrt.pop %v1394
  %v1397 = vmul.f32 %v1395, %v1385
  %v1398 = vmul.f32 %v1396, %v1392
  %v1399 = vmul.f32 %v1343, %v1397
  %v1400 = vmul.f32 %v1344, %v1398
  %v1401 = vsel %vm1375, 1, 0
  %v1402 = vsel %vm1376, 1, 0
  %vm1403 = vcmp.eq.s32.totalorder %v1401, 1
  %vm1404 = vcmp.eq.s32.totalorder %v1402, 1
  %1407 = vrot.lane.b32.xlu0 %v1399, 96
  %v1408 = vpop.permute.xlu0 %1407
  %1409 = vrot.lane.b32.xlu0 %v1400, 96
  %v1410 = vpop.permute.xlu0 %1409
  %v1413 = vsel %vm1403, %v999, %v1408
  %v1414 = vsel %vm1404, %v1000, %v1410
  %vm1415 = vcmp.gt.f32.partialorder %v1049, 0.01
  %vm1416 = vcmp.gt.f32.partialorder %v1068, 0.01
  %v1417 = vsub.f32 1.0, %v1049
  %v1418 = vsub.f32 1.0, %v1068
  %1420 = vset.pattern.permute.xlu0 0
  %1421 = vperm.xlu0 %1420, %v1417
  %v1422 = vpop.permute.xlu0 %1421
  %1425 = vset.pattern.permute.xlu0 0
  %1426 = vperm.xlu0 %1425, %v1418
  %v1427 = vpop.permute.xlu0 %1426
  %v1429 = vmul.f32 %v999, %v1422
  %v1430 = vmul.f32 %v1000, %v1427
  %1432 = vset.pattern.permute.xlu0 0
  %1433 = vperm.xlu0 %1432, %v1049
  %v1434 = vpop.permute.xlu0 %1433
  %1437 = vset.pattern.permute.xlu0 0
  %1438 = vperm.xlu0 %1437, %v1068
  %v1439 = vpop.permute.xlu0 %1438
  %v1441 = vmul.f32 %v1413, %v1434
  %v1442 = vmul.f32 %v1414, %v1439
  %v1443 = vadd.f32 %v1429, %v1441
  %v1444 = vadd.f32 %v1430, %v1442
  %v1445 = vsel %vm1415, 1, 0
  %v1446 = vsel %vm1416, 1, 0
  %1447 = vset.pattern.permute.xlu0 0
  %1448 = vperm.xlu0 %1447, %v1445
  %v1449 = vpop.permute.xlu0 %1448
  %1450 = vset.pattern.permute.xlu0 0
  %1451 = vperm.xlu0 %1450, %v1446
  %v1452 = vpop.permute.xlu0 %1451
  %vm1453 = vcmp.eq.s32.totalorder %v1449, 1
  %vm1454 = vcmp.eq.s32.totalorder %v1452, 1
  %v1455 = vsel %vm1453, %v1443, %v999
  %v1456 = vsel %vm1454, %v1444, %v1000
  %v1457 = vsel %vm1415, %v1049, 0.0
  %v1458 = vsel %vm1416, %v1068, 0.0
  %v1459 = vadd.f32 %v1005, %v1457
  %v1460 = vadd.f32 %v1006, %v1458
  %v1461 = vmul.f32 %v1459, 0.99
  %v1462 = vmul.f32 %v1460, 0.99
  %v1463 = vmul.f32 %v1009, 0.98
  %v1464 = vmul.f32 %v1010, 0.98
  %v1465 = vadd.f32 %v1463, 1.0
  %v1466 = vadd.f32 %v1464, 1.0
  %v1467 = vld [vmem:[%s0 + $0x6] ss:$0 sm:$0xff]
  %v1468 = vld [vmem:[%s0 + $0x7] ss:$0 sm:$0xff]
  %v1469 = vld [vmem:[%s1 + $0x6] ss:$0 sm:$0xff]
  %v1470 = vld [vmem:[%s1 + $0x7] ss:$0 sm:$0xff]
  %v1471 = vmul.f32 %v1455, %v1467
  %v1472 = vmul.f32 %v1456, %v1468
  %v1473 = vsel %vm96, %v1471, 0.0
  %1474 = vadd.xlane.f32.xlu0 %v1473
  %v1475 = vpop.xlane.xlu0 %1474
  %v1476 = vsel %vm96, %v1472, 0.0
  %1477 = vadd.xlane.f32.xlu0 %v1476
  %v1478 = vpop.xlane.xlu0 %1477
  %v1479 = vmul.f32 %v1465, 0.1
  %v1480 = vmul.f32 %v1466, 0.1
  %v1481 = vsub.f32 %v1475, %v1479
  %v1482 = vsub.f32 %v1478, %v1480
  %v1483 = vmul.f32 %v1461, 0.2
  %v1484 = vmul.f32 %v1462, 0.2
  %v1485 = vsub.f32 %v1481, %v1483
  %v1486 = vsub.f32 %v1482, %v1484
  %v1487 = vsel %vm111, %v1485, -inf
  %v1488 = vrot.slane %v1487, 4
  %v1489 = vmax.f32 %v1487, %v1488
  %v1490 = vrot.slane %v1489, 2
  %v1491 = vmax.f32 %v1489, %v1490
  %v1492 = vrot.slane %v1491, 1
  %v1493 = vmax.f32 %v1491, %v1492
  %v1494 = vsub.f32 %v1485, %v1493
  %v1495 = vmul.f32 %v1494, 1.442695
  %v1496 = vpow.pop %v1495
  %v1497 = vsel %vm111, %v1496, 0.0
  %v1498 = vrot.slane %v1497, 4
  %v1499 = vadd.f32 %v1497, %v1498
  %v1500 = vrot.slane %v1499, 2
  %v1501 = vadd.f32 %v1499, %v1500
  %v1502 = vrot.slane %v1501, 1
  %v1503 = vadd.f32 %v1501, %v1502
  %v1504 = vrcp.pop %v1503
  %v1505 = vmul.f32 %v1496, %v1504
  %v1506 = vsel %vm111, %v1486, -inf
  %v1507 = vrot.slane %v1506, 4
  %v1508 = vmax.f32 %v1506, %v1507
  %v1509 = vrot.slane %v1508, 2
  %v1510 = vmax.f32 %v1508, %v1509
  %v1511 = vrot.slane %v1510, 1
  %v1512 = vmax.f32 %v1510, %v1511
  %v1513 = vsub.f32 %v1486, %v1512
  %v1514 = vmul.f32 %v1513, 1.442695
  %v1515 = vpow.pop %v1514
  %v1516 = vsel %vm111, %v1515, 0.0
  %v1517 = vrot.slane %v1516, 4
  %v1518 = vadd.f32 %v1516, %v1517
  %v1519 = vrot.slane %v1518, 2
  %v1520 = vadd.f32 %v1518, %v1519
  %v1521 = vrot.slane %v1520, 1
  %v1522 = vadd.f32 %v1520, %v1521
  %v1523 = vrcp.pop %v1522
  %v1524 = vmul.f32 %v1515, %v1523
  %v1526 = vsel %vm96, %v1455, 0
  %v1529 = vsel %vm96, %v1456, 0
  %1531 = vmatprep.subr.mxu0 0.0
  %1532 = vmatpush1.msra.mxu0 %v53
  %1533 = vmatprep.subr.mxu0 0.0
  %1534 = vmatpush1.msra.mxu0 %v54
  %1535 = vmatprep.subr.mxu0 0.0
  %1536 = vmatpush1.msra.mxu0 %v55
  %1537 = vmatprep.subr.mxu0 0.0
  %1538 = vmatpush1.msra.mxu0 %v56
  %1539 = vmatprep.subr.mxu0 0.0
  %1540 = vmatpush1.msra.mxu0 0.0
  %1541 = vmatprep.subr.mxu0 0.0
  %1542 = vmatpush1.msra.mxu0 0.0
  %1543 = vmatprep.subr.mxu0 0.0
  %1544 = vmatpush1.msra.mxu0 0.0
  %1545 = vmatprep.subr.mxu0 0.0
  %1546 = vmatpush1.msra.mxu0 0.0
  %1547 = vmatprep.subr.mxu0 0.0
  %1548 = vmatpush1.msra.mxu0 0.0
  %1549 = vmatprep.subr.mxu0 0.0
  %1550 = vmatpush1.msra.mxu0 0.0
  %1551 = vmatprep.subr.mxu0 0.0
  %1552 = vmatpush1.msra.mxu0 0.0
  %1553 = vmatprep.subr.mxu0 0.0
  %1554 = vmatpush1.msra.mxu0 0.0
  %1555 = vmatprep.subr.mxu0 0.0
  %1556 = vmatpush1.msra.mxu0 0.0
  %1557 = vmatprep.subr.mxu0 0.0
  %1558 = vmatpush1.msra.mxu0 0.0
  %1559 = vmatprep.subr.mxu0 0.0
  %1560 = vmatpush1.msra.mxu0 0.0
  %1561 = vmatprep.subr.mxu0 0.0
  %1562 = vmatpush1.msra.mxu0 0.0
  %1563 = vmatprep.subr.mxu0 0.0
  %1564 = vmatpush1.msra.mxu0 0.0
  %1565 = vmatprep.subr.mxu0 0.0
  %1566 = vmatpush1.msra.mxu0 0.0
  %1567 = vmatprep.subr.mxu0 0.0
  %1568 = vmatpush1.msra.mxu0 0.0
  %1569 = vmatprep.subr.mxu0 0.0
  %1570 = vmatpush1.msra.mxu0 0.0
  %1571 = vmatprep.subr.mxu0 0.0
  %1572 = vmatpush1.msra.mxu0 0.0
  %1573 = vmatprep.subr.mxu0 0.0
  %1574 = vmatpush1.msra.mxu0 0.0
  %1575 = vmatprep.subr.mxu0 0.0
  %1576 = vmatpush1.msra.mxu0 0.0
  %1577 = vmatprep.subr.mxu0 0.0
  %1578 = vmatpush1.msra.mxu0 0.0
  %1579 = vmatprep.subr.mxu0 0.0
  %1580 = vmatpush1.msra.mxu0 0.0
  %1581 = vmatprep.subr.mxu0 0.0
  %1582 = vmatpush1.msra.mxu0 0.0
  %1583 = vmatprep.subr.mxu0 0.0
  %1584 = vmatpush1.msra.mxu0 0.0
  %1585 = vmatprep.subr.mxu0 0.0
  %1586 = vmatpush1.msra.mxu0 0.0
  %1587 = vmatprep.subr.mxu0 0.0
  %1588 = vmatpush1.msra.mxu0 0.0
  %1589 = vmatprep.subr.mxu0 0.0
  %1590 = vmatpush1.msra.mxu0 0.0
  %1591 = vmatprep.subr.mxu0 0.0
  %1592 = vmatpush1.msra.mxu0 0.0
  %1593 = vmatprep.subr.mxu0 0.0
  %1594 = vmatpush1.msra.mxu0 0.0
  %1595 = vmatprep.mubr.f32.mxu0 0.0
  %1596 = vmatmul.mubr.f32.gmra.mrb[0].mxu0 %v1526
  %v1597 = vpop.f32.mrb[0].mxu0
  %v1598 = vadd.f32 %v1469, %v1597
  %v1599 = vpop.f32.mrb[0].mxu0
  %1600 = vmatprep.mubr.f32.mxu0 0.0
  %1601 = vmatmul.mubr.f32.gmra.mrb[0].mxu0 %v1529
  %v1602 = vpop.f32.mrb[0].mxu0
  %v1603 = vadd.f32 %v1470, %v1602
  %v1604 = vpop.f32.mrb[0].mxu0
  %1605 = vdwg.mxu0
  %v1606 = vxor.u32 %v1598, 2147483648
  %v1607 = vxor.u32 %v1603, 2147483648
  %v1608 = vmul.f32 %v1606, 1.442695
  %v1609 = vpow.pop %v1608
  %v1610 = vmul.f32 %v1607, 1.442695
  %v1611 = vpow.pop %v1610
  %v1612 = vadd.f32 %v1609, 1.0
  %v1613 = vadd.f32 %v1611, 1.0
  %v1614 = vrcp.pop %v1612
  %v1615 = vmul.f32 1.0, %v1614
  %v1616 = vrcp.pop %v1613
  %v1617 = vmul.f32 1.0, %v1616
  %1620 = vrot.lane.b32.xlu0 %v1598, 64
  %v1621 = vpop.permute.xlu0 %1620
  %1622 = vrot.lane.b32.xlu0 %v1603, 64
  %v1623 = vpop.permute.xlu0 %1622
  %v1626 = vsel %vm251, %v1621, 0.0
  %1627 = vadd.xlane.f32.xlu0 %v1626
  %v1628 = vpop.xlane.xlu0 %1627
  %v1629 = vsel %vm251, %v1623, 0.0
  %1630 = vadd.xlane.f32.xlu0 %v1629
  %v1631 = vpop.xlane.xlu0 %1630
  %v1632 = vmul.f32 %v1598, %v1598
  %v1633 = vmul.f32 %v1603, %v1603
  %1636 = vrot.lane.b32.xlu0 %v1632, 64
  %v1637 = vpop.permute.xlu0 %1636
  %1638 = vrot.lane.b32.xlu0 %v1633, 64
  %v1639 = vpop.permute.xlu0 %1638
  %v1642 = vsel %vm251, %v1637, 0.0
  %1643 = vadd.xlane.f32.xlu0 %v1642
  %v1644 = vpop.xlane.xlu0 %1643
  %v1645 = vsel %vm251, %v1639, 0.0
  %1646 = vadd.xlane.f32.xlu0 %v1645
  %v1647 = vpop.xlane.xlu0 %1646
  %v1648 = vmul.f32 %v1628, 0.015625
  %v1649 = vmul.f32 %v1631, 0.015625
  %v1650 = vmul.f32 %v1644, 0.015625
  %v1651 = vmul.f32 %v1647, 0.015625
  %v1652 = vmul.f32 %v1648, %v1648
  %v1653 = vmul.f32 %v1649, %v1649
  %v1654 = vsub.f32 %v1650, %v1652
  %v1655 = vsub.f32 %v1651, %v1653
  %v1656 = vmax.f32 %v1654, 0.0
  %v1657 = vmax.f32 %v1655, 0.0
  %v1658 = vsub.f32 %v1598, %v1648
  %v1659 = vsub.f32 %v1603, %v1649
  %v1660 = vadd.f32 %v1656, 1e-05
  %v1661 = vadd.f32 %v1657, 1e-05
  %v1662 = vrsqrt.pop %v1660
  %v1663 = vrsqrt.pop %v1661
  %v1664 = vmul.f32 %v1658, %v1662
  %v1665 = vmul.f32 %v1659, %v1663
  %v1666 = vmul.f32 %v1664, %v293
  %v1667 = vmul.f32 %v1665, %v293
  %v1668 = vadd.f32 %v1666, %v298
  %v1669 = vadd.f32 %v1667, %v298
  %v1670 = vmul.f32 %v1668, 0.5
  %v1671 = vmul.f32 %v1669, 0.5
  %v1672 = vmul.f32 %v1668, 0.70710677
  %v1673 = vmul.f32 %v1669, 0.70710677
  %v1674 = verf.f32.pop %v1672
  %v1675 = verf.f32.pop %v1673
  %v1676 = vadd.f32 %v1674, 1.0
  %v1677 = vadd.f32 %v1675, 1.0
  %v1678 = vmul.f32 %v1670, %v1676
  %v1679 = vmul.f32 %v1671, %v1677
  %1682 = vrot.lane.b32.xlu0 %v1678, 64
  %v1683 = vpop.permute.xlu0 %1682
  %1684 = vrot.lane.b32.xlu0 %v1679, 64
  %v1685 = vpop.permute.xlu0 %1684
  %v1686 = vsel %vm251, %v1683, 0
  %v1688 = vsel %vm251, %v1685, 0
  %1690 = vmatprep.subr.mxu0 0.0
  %1691 = vmatpush1.msra.mxu0 %v57
  %1692 = vmatprep.subr.mxu0 0.0
  %1693 = vmatpush1.msra.mxu0 %v58
  %1694 = vmatprep.subr.mxu0 0.0
  %1695 = vmatpush1.msra.mxu0 %v59
  %1696 = vmatprep.subr.mxu0 0.0
  %1697 = vmatpush1.msra.mxu0 %v60
  %1698 = vmatprep.subr.mxu0 0.0
  %1699 = vmatpush1.msra.mxu0 %v61
  %1700 = vmatprep.subr.mxu0 0.0
  %1701 = vmatpush1.msra.mxu0 %v62
  %1702 = vmatprep.subr.mxu0 0.0
  %1703 = vmatpush1.msra.mxu0 %v63
  %1704 = vmatprep.subr.mxu0 0.0
  %1705 = vmatpush1.msra.mxu0 %v64
  %1706 = vmatprep.subr.mxu0 0.0
  %1707 = vmatpush1.msra.mxu0 0.0
  %1708 = vmatprep.subr.mxu0 0.0
  %1709 = vmatpush1.msra.mxu0 0.0
  %1710 = vmatprep.subr.mxu0 0.0
  %1711 = vmatpush1.msra.mxu0 0.0
  %1712 = vmatprep.subr.mxu0 0.0
  %1713 = vmatpush1.msra.mxu0 0.0
  %1714 = vmatprep.subr.mxu0 0.0
  %1715 = vmatpush1.msra.mxu0 0.0
  %1716 = vmatprep.subr.mxu0 0.0
  %1717 = vmatpush1.msra.mxu0 0.0
  %1718 = vmatprep.subr.mxu0 0.0
  %1719 = vmatpush1.msra.mxu0 0.0
  %1720 = vmatprep.subr.mxu0 0.0
  %1721 = vmatpush1.msra.mxu0 0.0
  %1722 = vmatprep.subr.mxu0 0.0
  %1723 = vmatpush1.msra.mxu0 0.0
  %1724 = vmatprep.subr.mxu0 0.0
  %1725 = vmatpush1.msra.mxu0 0.0
  %1726 = vmatprep.subr.mxu0 0.0
  %1727 = vmatpush1.msra.mxu0 0.0
  %1728 = vmatprep.subr.mxu0 0.0
  %1729 = vmatpush1.msra.mxu0 0.0
  %1730 = vmatprep.subr.mxu0 0.0
  %1731 = vmatpush1.msra.mxu0 0.0
  %1732 = vmatprep.subr.mxu0 0.0
  %1733 = vmatpush1.msra.mxu0 0.0
  %1734 = vmatprep.subr.mxu0 0.0
  %1735 = vmatpush1.msra.mxu0 0.0
  %1736 = vmatprep.subr.mxu0 0.0
  %1737 = vmatpush1.msra.mxu0 0.0
  %1738 = vmatprep.subr.mxu0 0.0
  %1739 = vmatpush1.msra.mxu0 0.0
  %1740 = vmatprep.subr.mxu0 0.0
  %1741 = vmatpush1.msra.mxu0 0.0
  %1742 = vmatprep.subr.mxu0 0.0
  %1743 = vmatpush1.msra.mxu0 0.0
  %1744 = vmatprep.subr.mxu0 0.0
  %1745 = vmatpush1.msra.mxu0 0.0
  %1746 = vmatprep.subr.mxu0 0.0
  %1747 = vmatpush1.msra.mxu0 0.0
  %1748 = vmatprep.subr.mxu0 0.0
  %1749 = vmatpush1.msra.mxu0 0.0
  %1750 = vmatprep.subr.mxu0 0.0
  %1751 = vmatpush1.msra.mxu0 0.0
  %1752 = vmatprep.subr.mxu0 0.0
  %1753 = vmatpush1.msra.mxu0 0.0
  %1754 = vmatprep.mubr.f32.mxu0 0.0
  %1755 = vmatmul.mubr.f32.gmra.mrb[0].mxu0 %v1686
  %v1756 = vpop.f32.mrb[0].mxu0
  %v1757 = vadd.f32 %v82, %v1756
  %v1758 = vpop.f32.mrb[0].mxu0
  %1759 = vmatprep.mubr.f32.mxu0 0.0
  %1760 = vmatmul.mubr.f32.gmra.mrb[0].mxu0 %v1688
  %v1761 = vpop.f32.mrb[0].mxu0
  %v1762 = vadd.f32 %v82, %v1761
  %v1763 = vpop.f32.mrb[0].mxu0
  %1764 = vdwg.mxu0
  %v1765 = vtanh.pop %v1757
  %v1766 = vtanh.pop %v1762
  %v1767 = vmul.f32 %v1615, 9.9
  %v1768 = vmul.f32 %v1617, 9.9
  %v1769 = vadd.f32 %v1767, 0.1
  %v1770 = vadd.f32 %v1768, 0.1
  %v1771 = vadd.f32 %v1769, 1e-06
  %v1772 = vadd.f32 %v1770, 1e-06
  %v1773 = vsub.f32 1.0, %v1615
  %v1774 = vsub.f32 1.0, %v1617
  %v1775 = vrcp.pop %v1771
  %v1776 = vrcp.pop %v1772
  %v1777 = vmul.f32 %v1455, %v1775
  %v1778 = vmul.f32 %v1456, %v1776
  %1781 = vrot.lane.b32.xlu0 %v1777, 32
  %v1782 = vpop.permute.xlu0 %1781
  %1783 = vrot.lane.b32.xlu0 %v1778, 32
  %v1784 = vpop.permute.xlu0 %1783
  %v1787 = vmul.f32 %v1773, %v1782
  %v1788 = vmul.f32 %v1774, %v1784
  %1791 = vrot.lane.b32.xlu0 %v1765, 32
  %v1792 = vpop.permute.xlu0 %1791
  %1793 = vrot.lane.b32.xlu0 %v1766, 32
  %v1794 = vpop.permute.xlu0 %1793
  %v1797 = vmul.f32 %v1615, %v1792
  %v1798 = vmul.f32 %v1617, %v1794
  %v1799 = vadd.f32 %v1787, %v1797
  %v1800 = vadd.f32 %v1788, %v1798
  %v1801 = vmul.f32 %v1799, %v1799
  %v1802 = vmul.f32 %v1800, %v1800
  %1805 = vrot.lane.b32.xlu0 %v1801, 96
  %v1806 = vpop.permute.xlu0 %1805
  %1807 = vrot.lane.b32.xlu0 %v1802, 96
  %v1808 = vpop.permute.xlu0 %1807
  %v1811 = vsel %vm96, %v1806, 0.0
  %1812 = vadd.xlane.f32.xlu0 %v1811
  %v1813 = vpop.xlane.xlu0 %1812
  %v1814 = vsel %vm96, %v1808, 0.0
  %1815 = vadd.xlane.f32.xlu0 %v1814
  %v1816 = vpop.xlane.xlu0 %1815
  %v1817 = vmul.f32 %v1455, %v1455
  %v1818 = vmul.f32 %v1456, %v1456
  %v1819 = vsel %vm96, %v1817, 0.0
  %1820 = vadd.xlane.f32.xlu0 %v1819
  %v1821 = vpop.xlane.xlu0 %1820
  %v1822 = vsel %vm96, %v1818, 0.0
  %1823 = vadd.xlane.f32.xlu0 %v1822
  %v1824 = vpop.xlane.xlu0 %1823
  %vm1825 = vcmp.ne.f32.partialorder %v1813, %v1813
  %vm1826 = vcmp.ne.f32.partialorder %v1816, %v1816
  %v1827 = vand.u32 2147483647, %v1813
  %v1828 = vand.u32 2147483647, %v1816
  %vm1829 = vcmp.eq.f32.partialorder %v1827, inf
  %vm1830 = vcmp.eq.f32.partialorder %v1828, inf
  %vm1831 = vmor %vm1825, %vm1829
  %vm1832 = vmor %vm1826, %vm1830
  %v1833 = vmax.f32 %v1821, 1e-12
  %v1834 = vmax.f32 %v1824, 1e-12
  %v1835 = vrsqrt.pop %v1833
  %v1836 = vmul.f32 %v1833, %v1835
  %vm1837 = vcmp.eq.f32.partialorder %v1833, inf
  %v1838 = vsel %vm1837, %v1833, %v1836
  %vm1839 = vcmp.eq.f32.partialorder %v1833, 0.0
  %v1840 = vand.u32 %v1833, 2147483648
  %v1841 = vsel %vm1839, %v1840, %v1838
  %v1842 = vrsqrt.pop %v1834
  %v1843 = vmul.f32 %v1834, %v1842
  %vm1844 = vcmp.eq.f32.partialorder %v1834, inf
  %v1845 = vsel %vm1844, %v1834, %v1843
  %vm1846 = vcmp.eq.f32.partialorder %v1834, 0.0
  %v1847 = vand.u32 %v1834, 2147483648
  %v1848 = vsel %vm1846, %v1847, %v1845
  %v1849 = vmax.f32 %v1813, 1e-24
  %v1850 = vmax.f32 %v1816, 1e-24
  %v1851 = vrsqrt.pop %v1849
  %v1852 = vrsqrt.pop %v1850
  %v1853 = vmul.f32 %v1851, %v1841
  %v1854 = vmul.f32 %v1852, %v1848
  %v1855 = vmul.f32 %v1799, %v1853
  %v1856 = vmul.f32 %v1800, %v1854
  %v1857 = vsel %vm1831, 1, 0
  %v1858 = vsel %vm1832, 1, 0
  %vm1859 = vcmp.eq.s32.totalorder %v1857, 1
  %vm1860 = vcmp.eq.s32.totalorder %v1858, 1
  %1863 = vrot.lane.b32.xlu0 %v1855, 96
  %v1864 = vpop.permute.xlu0 %1863
  %1865 = vrot.lane.b32.xlu0 %v1856, 96
  %v1866 = vpop.permute.xlu0 %1865
  %v1869 = vsel %vm1859, %v1455, %v1864
  %v1870 = vsel %vm1860, %v1456, %v1866
  %vm1871 = vcmp.gt.f32.partialorder %v1505, 0.01
  %vm1872 = vcmp.gt.f32.partialorder %v1524, 0.01
  %v1873 = vsub.f32 1.0, %v1505
  %v1874 = vsub.f32 1.0, %v1524
  %1876 = vset.pattern.permute.xlu0 0
  %1877 = vperm.xlu0 %1876, %v1873
  %v1878 = vpop.permute.xlu0 %1877
  %1881 = vset.pattern.permute.xlu0 0
  %1882 = vperm.xlu0 %1881, %v1874
  %v1883 = vpop.permute.xlu0 %1882
  %v1885 = vmul.f32 %v1455, %v1878
  %v1886 = vmul.f32 %v1456, %v1883
  %1888 = vset.pattern.permute.xlu0 0
  %1889 = vperm.xlu0 %1888, %v1505
  %v1890 = vpop.permute.xlu0 %1889
  %1893 = vset.pattern.permute.xlu0 0
  %1894 = vperm.xlu0 %1893, %v1524
  %v1895 = vpop.permute.xlu0 %1894
  %v1897 = vmul.f32 %v1869, %v1890
  %v1898 = vmul.f32 %v1870, %v1895
  %v1899 = vadd.f32 %v1885, %v1897
  %v1900 = vadd.f32 %v1886, %v1898
  %v1901 = vsel %vm1871, 1, 0
  %v1902 = vsel %vm1872, 1, 0
  %1903 = vset.pattern.permute.xlu0 0
  %1904 = vperm.xlu0 %1903, %v1901
  %v1905 = vpop.permute.xlu0 %1904
  %1906 = vset.pattern.permute.xlu0 0
  %1907 = vperm.xlu0 %1906, %v1902
  %v1908 = vpop.permute.xlu0 %1907
  %vm1909 = vcmp.eq.s32.totalorder %v1905, 1
  %vm1910 = vcmp.eq.s32.totalorder %v1908, 1
  %v1911 = vsel %vm1909, %v1899, %v1455
  %v1912 = vsel %vm1910, %v1900, %v1456
  %v1913 = vsel %vm1871, %v1505, 0.0
  %v1914 = vsel %vm1872, %v1524, 0.0
  %v1915 = vadd.f32 %v1461, %v1913
  %v1916 = vadd.f32 %v1462, %v1914
  %v1917 = vmul.f32 %v1915, 0.99
  %v1918 = vmul.f32 %v1916, 0.99
  %v1919 = vmul.f32 %v1465, 0.98
  %v1920 = vmul.f32 %v1466, 0.98
  %v1921 = vadd.f32 %v1919, 1.0
  %v1922 = vadd.f32 %v1920, 1.0
  %v1923 = vld [vmem:[%s0 + $0x8] ss:$0 sm:$0xff]
  %v1924 = vld [vmem:[%s0 + $0x9] ss:$0 sm:$0xff]
  %v1925 = vld [vmem:[%s1 + $0x8] ss:$0 sm:$0xff]
  %v1926 = vld [vmem:[%s1 + $0x9] ss:$0 sm:$0xff]
  %v1927 = vmul.f32 %v1911, %v1923
  %v1928 = vmul.f32 %v1912, %v1924
  %v1929 = vsel %vm96, %v1927, 0.0
  %1930 = vadd.xlane.f32.xlu0 %v1929
  %v1931 = vpop.xlane.xlu0 %1930
  %v1932 = vsel %vm96, %v1928, 0.0
  %1933 = vadd.xlane.f32.xlu0 %v1932
  %v1934 = vpop.xlane.xlu0 %1933
  %v1935 = vmul.f32 %v1921, 0.1
  %v1936 = vmul.f32 %v1922, 0.1
  %v1937 = vsub.f32 %v1931, %v1935
  %v1938 = vsub.f32 %v1934, %v1936
  %v1939 = vmul.f32 %v1917, 0.2
  %v1940 = vmul.f32 %v1918, 0.2
  %v1941 = vsub.f32 %v1937, %v1939
  %v1942 = vsub.f32 %v1938, %v1940
  %v1943 = vsel %vm111, %v1941, -inf
  %v1944 = vrot.slane %v1943, 4
  %v1945 = vmax.f32 %v1943, %v1944
  %v1946 = vrot.slane %v1945, 2
  %v1947 = vmax.f32 %v1945, %v1946
  %v1948 = vrot.slane %v1947, 1
  %v1949 = vmax.f32 %v1947, %v1948
  %v1950 = vsub.f32 %v1941, %v1949
  %v1951 = vmul.f32 %v1950, 1.442695
  %v1952 = vpow.pop %v1951
  %v1953 = vsel %vm111, %v1952, 0.0
  %v1954 = vrot.slane %v1953, 4
  %v1955 = vadd.f32 %v1953, %v1954
  %v1956 = vrot.slane %v1955, 2
  %v1957 = vadd.f32 %v1955, %v1956
  %v1958 = vrot.slane %v1957, 1
  %v1959 = vadd.f32 %v1957, %v1958
  %v1960 = vrcp.pop %v1959
  %v1961 = vmul.f32 %v1952, %v1960
  %v1962 = vsel %vm111, %v1942, -inf
  %v1963 = vrot.slane %v1962, 4
  %v1964 = vmax.f32 %v1962, %v1963
  %v1965 = vrot.slane %v1964, 2
  %v1966 = vmax.f32 %v1964, %v1965
  %v1967 = vrot.slane %v1966, 1
  %v1968 = vmax.f32 %v1966, %v1967
  %v1969 = vsub.f32 %v1942, %v1968
  %v1970 = vmul.f32 %v1969, 1.442695
  %v1971 = vpow.pop %v1970
  %v1972 = vsel %vm111, %v1971, 0.0
  %v1973 = vrot.slane %v1972, 4
  %v1974 = vadd.f32 %v1972, %v1973
  %v1975 = vrot.slane %v1974, 2
  %v1976 = vadd.f32 %v1974, %v1975
  %v1977 = vrot.slane %v1976, 1
  %v1978 = vadd.f32 %v1976, %v1977
  %v1979 = vrcp.pop %v1978
  %v1980 = vmul.f32 %v1971, %v1979
  %v1982 = vsel %vm96, %v1911, 0
  %v1985 = vsel %vm96, %v1912, 0
  %1987 = vmatprep.subr.mxu0 0.0
  %1988 = vmatpush1.msra.mxu0 %v53
  %1989 = vmatprep.subr.mxu0 0.0
  %1990 = vmatpush1.msra.mxu0 %v54
  %1991 = vmatprep.subr.mxu0 0.0
  %1992 = vmatpush1.msra.mxu0 %v55
  %1993 = vmatprep.subr.mxu0 0.0
  %1994 = vmatpush1.msra.mxu0 %v56
  %1995 = vmatprep.subr.mxu0 0.0
  %1996 = vmatpush1.msra.mxu0 0.0
  %1997 = vmatprep.subr.mxu0 0.0
  %1998 = vmatpush1.msra.mxu0 0.0
  %1999 = vmatprep.subr.mxu0 0.0
  %2000 = vmatpush1.msra.mxu0 0.0
  %2001 = vmatprep.subr.mxu0 0.0
  %2002 = vmatpush1.msra.mxu0 0.0
  %2003 = vmatprep.subr.mxu0 0.0
  %2004 = vmatpush1.msra.mxu0 0.0
  %2005 = vmatprep.subr.mxu0 0.0
  %2006 = vmatpush1.msra.mxu0 0.0
  %2007 = vmatprep.subr.mxu0 0.0
  %2008 = vmatpush1.msra.mxu0 0.0
  %2009 = vmatprep.subr.mxu0 0.0
  %2010 = vmatpush1.msra.mxu0 0.0
  %2011 = vmatprep.subr.mxu0 0.0
  %2012 = vmatpush1.msra.mxu0 0.0
  %2013 = vmatprep.subr.mxu0 0.0
  %2014 = vmatpush1.msra.mxu0 0.0
  %2015 = vmatprep.subr.mxu0 0.0
  %2016 = vmatpush1.msra.mxu0 0.0
  %2017 = vmatprep.subr.mxu0 0.0
  %2018 = vmatpush1.msra.mxu0 0.0
  %2019 = vmatprep.subr.mxu0 0.0
  %2020 = vmatpush1.msra.mxu0 0.0
  %2021 = vmatprep.subr.mxu0 0.0
  %2022 = vmatpush1.msra.mxu0 0.0
  %2023 = vmatprep.subr.mxu0 0.0
  %2024 = vmatpush1.msra.mxu0 0.0
  %2025 = vmatprep.subr.mxu0 0.0
  %2026 = vmatpush1.msra.mxu0 0.0
  %2027 = vmatprep.subr.mxu0 0.0
  %2028 = vmatpush1.msra.mxu0 0.0
  %2029 = vmatprep.subr.mxu0 0.0
  %2030 = vmatpush1.msra.mxu0 0.0
  %2031 = vmatprep.subr.mxu0 0.0
  %2032 = vmatpush1.msra.mxu0 0.0
  %2033 = vmatprep.subr.mxu0 0.0
  %2034 = vmatpush1.msra.mxu0 0.0
  %2035 = vmatprep.subr.mxu0 0.0
  %2036 = vmatpush1.msra.mxu0 0.0
  %2037 = vmatprep.subr.mxu0 0.0
  %2038 = vmatpush1.msra.mxu0 0.0
  %2039 = vmatprep.subr.mxu0 0.0
  %2040 = vmatpush1.msra.mxu0 0.0
  %2041 = vmatprep.subr.mxu0 0.0
  %2042 = vmatpush1.msra.mxu0 0.0
  %2043 = vmatprep.subr.mxu0 0.0
  %2044 = vmatpush1.msra.mxu0 0.0
  %2045 = vmatprep.subr.mxu0 0.0
  %2046 = vmatpush1.msra.mxu0 0.0
  %2047 = vmatprep.subr.mxu0 0.0
  %2048 = vmatpush1.msra.mxu0 0.0
  %2049 = vmatprep.subr.mxu0 0.0
  %2050 = vmatpush1.msra.mxu0 0.0
  %2051 = vmatprep.mubr.f32.mxu0 0.0
  %2052 = vmatmul.mubr.f32.gmra.mrb[0].mxu0 %v1982
  %v2053 = vpop.f32.mrb[0].mxu0
  %v2054 = vadd.f32 %v1925, %v2053
  %v2055 = vpop.f32.mrb[0].mxu0
  %2056 = vmatprep.mubr.f32.mxu0 0.0
  %2057 = vmatmul.mubr.f32.gmra.mrb[0].mxu0 %v1985
  %v2058 = vpop.f32.mrb[0].mxu0
  %v2059 = vadd.f32 %v1926, %v2058
  %v2060 = vpop.f32.mrb[0].mxu0
  %2061 = vdwg.mxu0
  %v2062 = vxor.u32 %v2054, 2147483648
  %v2063 = vxor.u32 %v2059, 2147483648
  %v2064 = vmul.f32 %v2062, 1.442695
  %v2065 = vpow.pop %v2064
  %v2066 = vmul.f32 %v2063, 1.442695
  %v2067 = vpow.pop %v2066
  %v2068 = vadd.f32 %v2065, 1.0
  %v2069 = vadd.f32 %v2067, 1.0
  %v2070 = vrcp.pop %v2068
  %v2071 = vmul.f32 1.0, %v2070
  %v2072 = vrcp.pop %v2069
  %v2073 = vmul.f32 1.0, %v2072
  %2076 = vrot.lane.b32.xlu0 %v2054, 64
  %v2077 = vpop.permute.xlu0 %2076
  %2078 = vrot.lane.b32.xlu0 %v2059, 64
  %v2079 = vpop.permute.xlu0 %2078
  %v2082 = vsel %vm251, %v2077, 0.0
  %2083 = vadd.xlane.f32.xlu0 %v2082
  %v2084 = vpop.xlane.xlu0 %2083
  %v2085 = vsel %vm251, %v2079, 0.0
  %2086 = vadd.xlane.f32.xlu0 %v2085
  %v2087 = vpop.xlane.xlu0 %2086
  %v2088 = vmul.f32 %v2054, %v2054
  %v2089 = vmul.f32 %v2059, %v2059
  %2092 = vrot.lane.b32.xlu0 %v2088, 64
  %v2093 = vpop.permute.xlu0 %2092
  %2094 = vrot.lane.b32.xlu0 %v2089, 64
  %v2095 = vpop.permute.xlu0 %2094
  %v2098 = vsel %vm251, %v2093, 0.0
  %2099 = vadd.xlane.f32.xlu0 %v2098
  %v2100 = vpop.xlane.xlu0 %2099
  %v2101 = vsel %vm251, %v2095, 0.0
  %2102 = vadd.xlane.f32.xlu0 %v2101
  %v2103 = vpop.xlane.xlu0 %2102
  %v2104 = vmul.f32 %v2084, 0.015625
  %v2105 = vmul.f32 %v2087, 0.015625
  %v2106 = vmul.f32 %v2100, 0.015625
  %v2107 = vmul.f32 %v2103, 0.015625
  %v2108 = vmul.f32 %v2104, %v2104
  %v2109 = vmul.f32 %v2105, %v2105
  %v2110 = vsub.f32 %v2106, %v2108
  %v2111 = vsub.f32 %v2107, %v2109
  %v2112 = vmax.f32 %v2110, 0.0
  %v2113 = vmax.f32 %v2111, 0.0
  %v2114 = vsub.f32 %v2054, %v2104
  %v2115 = vsub.f32 %v2059, %v2105
  %v2116 = vadd.f32 %v2112, 1e-05
  %v2117 = vadd.f32 %v2113, 1e-05
  %v2118 = vrsqrt.pop %v2116
  %v2119 = vrsqrt.pop %v2117
  %v2120 = vmul.f32 %v2114, %v2118
  %v2121 = vmul.f32 %v2115, %v2119
  %v2122 = vmul.f32 %v2120, %v293
  %v2123 = vmul.f32 %v2121, %v293
  %v2124 = vadd.f32 %v2122, %v298
  %v2125 = vadd.f32 %v2123, %v298
  %v2126 = vmul.f32 %v2124, 0.5
  %v2127 = vmul.f32 %v2125, 0.5
  %v2128 = vmul.f32 %v2124, 0.70710677
  %v2129 = vmul.f32 %v2125, 0.70710677
  %v2130 = verf.f32.pop %v2128
  %v2131 = verf.f32.pop %v2129
  %v2132 = vadd.f32 %v2130, 1.0
  %v2133 = vadd.f32 %v2131, 1.0
  %v2134 = vmul.f32 %v2126, %v2132
  %v2135 = vmul.f32 %v2127, %v2133
  %2138 = vrot.lane.b32.xlu0 %v2134, 64
  %v2139 = vpop.permute.xlu0 %2138
  %2140 = vrot.lane.b32.xlu0 %v2135, 64
  %v2141 = vpop.permute.xlu0 %2140
  %v2142 = vsel %vm251, %v2139, 0
  %v2144 = vsel %vm251, %v2141, 0
  %2146 = vmatprep.subr.mxu0 0.0
  %2147 = vmatpush1.msra.mxu0 %v57
  %2148 = vmatprep.subr.mxu0 0.0
  %2149 = vmatpush1.msra.mxu0 %v58
  %2150 = vmatprep.subr.mxu0 0.0
  %2151 = vmatpush1.msra.mxu0 %v59
  %2152 = vmatprep.subr.mxu0 0.0
  %2153 = vmatpush1.msra.mxu0 %v60
  %2154 = vmatprep.subr.mxu0 0.0
  %2155 = vmatpush1.msra.mxu0 %v61
  %2156 = vmatprep.subr.mxu0 0.0
  %2157 = vmatpush1.msra.mxu0 %v62
  %2158 = vmatprep.subr.mxu0 0.0
  %2159 = vmatpush1.msra.mxu0 %v63
  %2160 = vmatprep.subr.mxu0 0.0
  %2161 = vmatpush1.msra.mxu0 %v64
  %2162 = vmatprep.subr.mxu0 0.0
  %2163 = vmatpush1.msra.mxu0 0.0
  %2164 = vmatprep.subr.mxu0 0.0
  %2165 = vmatpush1.msra.mxu0 0.0
  %2166 = vmatprep.subr.mxu0 0.0
  %2167 = vmatpush1.msra.mxu0 0.0
  %2168 = vmatprep.subr.mxu0 0.0
  %2169 = vmatpush1.msra.mxu0 0.0
  %2170 = vmatprep.subr.mxu0 0.0
  %2171 = vmatpush1.msra.mxu0 0.0
  %2172 = vmatprep.subr.mxu0 0.0
  %2173 = vmatpush1.msra.mxu0 0.0
  %2174 = vmatprep.subr.mxu0 0.0
  %2175 = vmatpush1.msra.mxu0 0.0
  %2176 = vmatprep.subr.mxu0 0.0
  %2177 = vmatpush1.msra.mxu0 0.0
  %2178 = vmatprep.subr.mxu0 0.0
  %2179 = vmatpush1.msra.mxu0 0.0
  %2180 = vmatprep.subr.mxu0 0.0
  %2181 = vmatpush1.msra.mxu0 0.0
  %2182 = vmatprep.subr.mxu0 0.0
  %2183 = vmatpush1.msra.mxu0 0.0
  %2184 = vmatprep.subr.mxu0 0.0
  %2185 = vmatpush1.msra.mxu0 0.0
  %2186 = vmatprep.subr.mxu0 0.0
  %2187 = vmatpush1.msra.mxu0 0.0
  %2188 = vmatprep.subr.mxu0 0.0
  %2189 = vmatpush1.msra.mxu0 0.0
  %2190 = vmatprep.subr.mxu0 0.0
  %2191 = vmatpush1.msra.mxu0 0.0
  %2192 = vmatprep.subr.mxu0 0.0
  %2193 = vmatpush1.msra.mxu0 0.0
  %2194 = vmatprep.subr.mxu0 0.0
  %2195 = vmatpush1.msra.mxu0 0.0
  %2196 = vmatprep.subr.mxu0 0.0
  %2197 = vmatpush1.msra.mxu0 0.0
  %2198 = vmatprep.subr.mxu0 0.0
  %2199 = vmatpush1.msra.mxu0 0.0
  %2200 = vmatprep.subr.mxu0 0.0
  %2201 = vmatpush1.msra.mxu0 0.0
  %2202 = vmatprep.subr.mxu0 0.0
  %2203 = vmatpush1.msra.mxu0 0.0
  %2204 = vmatprep.subr.mxu0 0.0
  %2205 = vmatpush1.msra.mxu0 0.0
  %2206 = vmatprep.subr.mxu0 0.0
  %2207 = vmatpush1.msra.mxu0 0.0
  %2208 = vmatprep.subr.mxu0 0.0
  %2209 = vmatpush1.msra.mxu0 0.0
  %2210 = vmatprep.mubr.f32.mxu0 0.0
  %2211 = vmatmul.mubr.f32.gmra.mrb[0].mxu0 %v2142
  %v2212 = vpop.f32.mrb[0].mxu0
  %v2213 = vadd.f32 %v82, %v2212
  %v2214 = vpop.f32.mrb[0].mxu0
  %2215 = vmatprep.mubr.f32.mxu0 0.0
  %2216 = vmatmul.mubr.f32.gmra.mrb[0].mxu0 %v2144
  %v2217 = vpop.f32.mrb[0].mxu0
  %v2218 = vadd.f32 %v82, %v2217
  %v2219 = vpop.f32.mrb[0].mxu0
  %2220 = vdwg.mxu0
  %v2221 = vtanh.pop %v2213
  %v2222 = vtanh.pop %v2218
  %v2223 = vmul.f32 %v2071, 9.9
  %v2224 = vmul.f32 %v2073, 9.9
  %v2225 = vadd.f32 %v2223, 0.1
  %v2226 = vadd.f32 %v2224, 0.1
  %v2227 = vadd.f32 %v2225, 1e-06
  %v2228 = vadd.f32 %v2226, 1e-06
  %v2229 = vsub.f32 1.0, %v2071
  %v2230 = vsub.f32 1.0, %v2073
  %v2231 = vrcp.pop %v2227
  %v2232 = vrcp.pop %v2228
  %v2233 = vmul.f32 %v1911, %v2231
  %v2234 = vmul.f32 %v1912, %v2232
  %2237 = vrot.lane.b32.xlu0 %v2233, 32
  %v2238 = vpop.permute.xlu0 %2237
  %2239 = vrot.lane.b32.xlu0 %v2234, 32
  %v2240 = vpop.permute.xlu0 %2239
  %v2243 = vmul.f32 %v2229, %v2238
  %v2244 = vmul.f32 %v2230, %v2240
  %2247 = vrot.lane.b32.xlu0 %v2221, 32
  %v2248 = vpop.permute.xlu0 %2247
  %2249 = vrot.lane.b32.xlu0 %v2222, 32
  %v2250 = vpop.permute.xlu0 %2249
  %v2253 = vmul.f32 %v2071, %v2248
  %v2254 = vmul.f32 %v2073, %v2250
  %v2255 = vadd.f32 %v2243, %v2253
  %v2256 = vadd.f32 %v2244, %v2254
  %v2257 = vmul.f32 %v2255, %v2255
  %v2258 = vmul.f32 %v2256, %v2256
  %2261 = vrot.lane.b32.xlu0 %v2257, 96
  %v2262 = vpop.permute.xlu0 %2261
  %2263 = vrot.lane.b32.xlu0 %v2258, 96
  %v2264 = vpop.permute.xlu0 %2263
  %v2267 = vsel %vm96, %v2262, 0.0
  %2268 = vadd.xlane.f32.xlu0 %v2267
  %v2269 = vpop.xlane.xlu0 %2268
  %v2270 = vsel %vm96, %v2264, 0.0
  %2271 = vadd.xlane.f32.xlu0 %v2270
  %v2272 = vpop.xlane.xlu0 %2271
  %v2273 = vmul.f32 %v1911, %v1911
  %v2274 = vmul.f32 %v1912, %v1912
  %v2275 = vsel %vm96, %v2273, 0.0
  %2276 = vadd.xlane.f32.xlu0 %v2275
  %v2277 = vpop.xlane.xlu0 %2276
  %v2278 = vsel %vm96, %v2274, 0.0
  %2279 = vadd.xlane.f32.xlu0 %v2278
  %v2280 = vpop.xlane.xlu0 %2279
  %vm2281 = vcmp.ne.f32.partialorder %v2269, %v2269
  %vm2282 = vcmp.ne.f32.partialorder %v2272, %v2272
  %v2283 = vand.u32 2147483647, %v2269
  %v2284 = vand.u32 2147483647, %v2272
  %vm2285 = vcmp.eq.f32.partialorder %v2283, inf
  %vm2286 = vcmp.eq.f32.partialorder %v2284, inf
  %vm2287 = vmor %vm2281, %vm2285
  %vm2288 = vmor %vm2282, %vm2286
  %v2289 = vmax.f32 %v2277, 1e-12
  %v2290 = vmax.f32 %v2280, 1e-12
  %v2291 = vrsqrt.pop %v2289
  %v2292 = vmul.f32 %v2289, %v2291
  %vm2293 = vcmp.eq.f32.partialorder %v2289, inf
  %v2294 = vsel %vm2293, %v2289, %v2292
  %vm2295 = vcmp.eq.f32.partialorder %v2289, 0.0
  %v2296 = vand.u32 %v2289, 2147483648
  %v2297 = vsel %vm2295, %v2296, %v2294
  %v2298 = vrsqrt.pop %v2290
  %v2299 = vmul.f32 %v2290, %v2298
  %vm2300 = vcmp.eq.f32.partialorder %v2290, inf
  %v2301 = vsel %vm2300, %v2290, %v2299
  %vm2302 = vcmp.eq.f32.partialorder %v2290, 0.0
  %v2303 = vand.u32 %v2290, 2147483648
  %v2304 = vsel %vm2302, %v2303, %v2301
  %v2305 = vmax.f32 %v2269, 1e-24
  %v2306 = vmax.f32 %v2272, 1e-24
  %v2307 = vrsqrt.pop %v2305
  %v2308 = vrsqrt.pop %v2306
  %v2309 = vmul.f32 %v2307, %v2297
  %v2310 = vmul.f32 %v2308, %v2304
  %v2311 = vmul.f32 %v2255, %v2309
  %v2312 = vmul.f32 %v2256, %v2310
  %v2313 = vsel %vm2287, 1, 0
  %v2314 = vsel %vm2288, 1, 0
  %vm2315 = vcmp.eq.s32.totalorder %v2313, 1
  %vm2316 = vcmp.eq.s32.totalorder %v2314, 1
  %2319 = vrot.lane.b32.xlu0 %v2311, 96
  %v2320 = vpop.permute.xlu0 %2319
  %2321 = vrot.lane.b32.xlu0 %v2312, 96
  %v2322 = vpop.permute.xlu0 %2321
  %v2325 = vsel %vm2315, %v1911, %v2320
  %v2326 = vsel %vm2316, %v1912, %v2322
  %vm2327 = vcmp.gt.f32.partialorder %v1961, 0.01
  %vm2328 = vcmp.gt.f32.partialorder %v1980, 0.01
  %v2329 = vsub.f32 1.0, %v1961
  %v2330 = vsub.f32 1.0, %v1980
  %2332 = vset.pattern.permute.xlu0 0
  %2333 = vperm.xlu0 %2332, %v2329
  %v2334 = vpop.permute.xlu0 %2333
  %2337 = vset.pattern.permute.xlu0 0
  %2338 = vperm.xlu0 %2337, %v2330
  %v2339 = vpop.permute.xlu0 %2338
  %v2341 = vmul.f32 %v1911, %v2334
  %v2342 = vmul.f32 %v1912, %v2339
  %2344 = vset.pattern.permute.xlu0 0
  %2345 = vperm.xlu0 %2344, %v1961
  %v2346 = vpop.permute.xlu0 %2345
  %2349 = vset.pattern.permute.xlu0 0
  %2350 = vperm.xlu0 %2349, %v1980
  %v2351 = vpop.permute.xlu0 %2350
  %v2353 = vmul.f32 %v2325, %v2346
  %v2354 = vmul.f32 %v2326, %v2351
  %v2355 = vadd.f32 %v2341, %v2353
  %v2356 = vadd.f32 %v2342, %v2354
  %v2357 = vsel %vm2327, 1, 0
  %v2358 = vsel %vm2328, 1, 0
  %2359 = vset.pattern.permute.xlu0 0
  %2360 = vperm.xlu0 %2359, %v2357
  %v2361 = vpop.permute.xlu0 %2360
  %2362 = vset.pattern.permute.xlu0 0
  %2363 = vperm.xlu0 %2362, %v2358
  %v2364 = vpop.permute.xlu0 %2363
  %vm2365 = vcmp.eq.s32.totalorder %v2361, 1
  %vm2366 = vcmp.eq.s32.totalorder %v2364, 1
  %v2367 = vsel %vm2365, %v2355, %v1911
  %v2368 = vsel %vm2366, %v2356, %v1912
  %v2369 = vsel %vm2327, %v1961, 0.0
  %v2370 = vsel %vm2328, %v1980, 0.0
  %v2371 = vadd.f32 %v1917, %v2369
  %v2372 = vadd.f32 %v1918, %v2370
  %v2373 = vmul.f32 %v2371, 0.99
  %v2374 = vmul.f32 %v2372, 0.99
  %v2375 = vmul.f32 %v1921, 0.98
  %v2376 = vmul.f32 %v1922, 0.98
  %v2377 = vadd.f32 %v2375, 1.0
  %v2378 = vadd.f32 %v2376, 1.0
  %v2379 = vld [vmem:[%s0 + $0xa] ss:$0 sm:$0xff]
  %v2380 = vld [vmem:[%s0 + $0xb] ss:$0 sm:$0xff]
  %v2381 = vld [vmem:[%s1 + $0xa] ss:$0 sm:$0xff]
  %v2382 = vld [vmem:[%s1 + $0xb] ss:$0 sm:$0xff]
  %v2383 = vmul.f32 %v2367, %v2379
  %v2384 = vmul.f32 %v2368, %v2380
  %v2385 = vsel %vm96, %v2383, 0.0
  %2386 = vadd.xlane.f32.xlu0 %v2385
  %v2387 = vpop.xlane.xlu0 %2386
  %v2388 = vsel %vm96, %v2384, 0.0
  %2389 = vadd.xlane.f32.xlu0 %v2388
  %v2390 = vpop.xlane.xlu0 %2389
  %v2391 = vmul.f32 %v2377, 0.1
  %v2392 = vmul.f32 %v2378, 0.1
  %v2393 = vsub.f32 %v2387, %v2391
  %v2394 = vsub.f32 %v2390, %v2392
  %v2395 = vmul.f32 %v2373, 0.2
  %v2396 = vmul.f32 %v2374, 0.2
  %v2397 = vsub.f32 %v2393, %v2395
  %v2398 = vsub.f32 %v2394, %v2396
  %v2399 = vsel %vm111, %v2397, -inf
  %v2400 = vrot.slane %v2399, 4
  %v2401 = vmax.f32 %v2399, %v2400
  %v2402 = vrot.slane %v2401, 2
  %v2403 = vmax.f32 %v2401, %v2402
  %v2404 = vrot.slane %v2403, 1
  %v2405 = vmax.f32 %v2403, %v2404
  %v2406 = vsub.f32 %v2397, %v2405
  %v2407 = vmul.f32 %v2406, 1.442695
  %v2408 = vpow.pop %v2407
  %v2409 = vsel %vm111, %v2408, 0.0
  %v2410 = vrot.slane %v2409, 4
  %v2411 = vadd.f32 %v2409, %v2410
  %v2412 = vrot.slane %v2411, 2
  %v2413 = vadd.f32 %v2411, %v2412
  %v2414 = vrot.slane %v2413, 1
  %v2415 = vadd.f32 %v2413, %v2414
  %v2416 = vrcp.pop %v2415
  %v2417 = vmul.f32 %v2408, %v2416
  %v2418 = vsel %vm111, %v2398, -inf
  %v2419 = vrot.slane %v2418, 4
  %v2420 = vmax.f32 %v2418, %v2419
  %v2421 = vrot.slane %v2420, 2
  %v2422 = vmax.f32 %v2420, %v2421
  %v2423 = vrot.slane %v2422, 1
  %v2424 = vmax.f32 %v2422, %v2423
  %v2425 = vsub.f32 %v2398, %v2424
  %v2426 = vmul.f32 %v2425, 1.442695
  %v2427 = vpow.pop %v2426
  %v2428 = vsel %vm111, %v2427, 0.0
  %v2429 = vrot.slane %v2428, 4
  %v2430 = vadd.f32 %v2428, %v2429
  %v2431 = vrot.slane %v2430, 2
  %v2432 = vadd.f32 %v2430, %v2431
  %v2433 = vrot.slane %v2432, 1
  %v2434 = vadd.f32 %v2432, %v2433
  %v2435 = vrcp.pop %v2434
  %v2436 = vmul.f32 %v2427, %v2435
  %v2438 = vsel %vm96, %v2367, 0
  %v2441 = vsel %vm96, %v2368, 0
  %2443 = vmatprep.subr.mxu0 0.0
  %2444 = vmatpush1.msra.mxu0 %v53
  %2445 = vmatprep.subr.mxu0 0.0
  %2446 = vmatpush1.msra.mxu0 %v54
  %2447 = vmatprep.subr.mxu0 0.0
  %2448 = vmatpush1.msra.mxu0 %v55
  %2449 = vmatprep.subr.mxu0 0.0
  %2450 = vmatpush1.msra.mxu0 %v56
  %2451 = vmatprep.subr.mxu0 0.0
  %2452 = vmatpush1.msra.mxu0 0.0
  %2453 = vmatprep.subr.mxu0 0.0
  %2454 = vmatpush1.msra.mxu0 0.0
  %2455 = vmatprep.subr.mxu0 0.0
  %2456 = vmatpush1.msra.mxu0 0.0
  %2457 = vmatprep.subr.mxu0 0.0
  %2458 = vmatpush1.msra.mxu0 0.0
  %2459 = vmatprep.subr.mxu0 0.0
  %2460 = vmatpush1.msra.mxu0 0.0
  %2461 = vmatprep.subr.mxu0 0.0
  %2462 = vmatpush1.msra.mxu0 0.0
  %2463 = vmatprep.subr.mxu0 0.0
  %2464 = vmatpush1.msra.mxu0 0.0
  %2465 = vmatprep.subr.mxu0 0.0
  %2466 = vmatpush1.msra.mxu0 0.0
  %2467 = vmatprep.subr.mxu0 0.0
  %2468 = vmatpush1.msra.mxu0 0.0
  %2469 = vmatprep.subr.mxu0 0.0
  %2470 = vmatpush1.msra.mxu0 0.0
  %2471 = vmatprep.subr.mxu0 0.0
  %2472 = vmatpush1.msra.mxu0 0.0
  %2473 = vmatprep.subr.mxu0 0.0
  %2474 = vmatpush1.msra.mxu0 0.0
  %2475 = vmatprep.subr.mxu0 0.0
  %2476 = vmatpush1.msra.mxu0 0.0
  %2477 = vmatprep.subr.mxu0 0.0
  %2478 = vmatpush1.msra.mxu0 0.0
  %2479 = vmatprep.subr.mxu0 0.0
  %2480 = vmatpush1.msra.mxu0 0.0
  %2481 = vmatprep.subr.mxu0 0.0
  %2482 = vmatpush1.msra.mxu0 0.0
  %2483 = vmatprep.subr.mxu0 0.0
  %2484 = vmatpush1.msra.mxu0 0.0
  %2485 = vmatprep.subr.mxu0 0.0
  %2486 = vmatpush1.msra.mxu0 0.0
  %2487 = vmatprep.subr.mxu0 0.0
  %2488 = vmatpush1.msra.mxu0 0.0
  %2489 = vmatprep.subr.mxu0 0.0
  %2490 = vmatpush1.msra.mxu0 0.0
  %2491 = vmatprep.subr.mxu0 0.0
  %2492 = vmatpush1.msra.mxu0 0.0
  %2493 = vmatprep.subr.mxu0 0.0
  %2494 = vmatpush1.msra.mxu0 0.0
  %2495 = vmatprep.subr.mxu0 0.0
  %2496 = vmatpush1.msra.mxu0 0.0
  %2497 = vmatprep.subr.mxu0 0.0
  %2498 = vmatpush1.msra.mxu0 0.0
  %2499 = vmatprep.subr.mxu0 0.0
  %2500 = vmatpush1.msra.mxu0 0.0
  %2501 = vmatprep.subr.mxu0 0.0
  %2502 = vmatpush1.msra.mxu0 0.0
  %2503 = vmatprep.subr.mxu0 0.0
  %2504 = vmatpush1.msra.mxu0 0.0
  %2505 = vmatprep.subr.mxu0 0.0
  %2506 = vmatpush1.msra.mxu0 0.0
  %2507 = vmatprep.mubr.f32.mxu0 0.0
  %2508 = vmatmul.mubr.f32.gmra.mrb[0].mxu0 %v2438
  %v2509 = vpop.f32.mrb[0].mxu0
  %v2510 = vadd.f32 %v2381, %v2509
  %v2511 = vpop.f32.mrb[0].mxu0
  %2512 = vmatprep.mubr.f32.mxu0 0.0
  %2513 = vmatmul.mubr.f32.gmra.mrb[0].mxu0 %v2441
  %v2514 = vpop.f32.mrb[0].mxu0
  %v2515 = vadd.f32 %v2382, %v2514
  %v2516 = vpop.f32.mrb[0].mxu0
  %2517 = vdwg.mxu0
  %v2518 = vxor.u32 %v2510, 2147483648
  %v2519 = vxor.u32 %v2515, 2147483648
  %v2520 = vmul.f32 %v2518, 1.442695
  %v2521 = vpow.pop %v2520
  %v2522 = vmul.f32 %v2519, 1.442695
  %v2523 = vpow.pop %v2522
  %v2524 = vadd.f32 %v2521, 1.0
  %v2525 = vadd.f32 %v2523, 1.0
  %v2526 = vrcp.pop %v2524
  %v2527 = vmul.f32 1.0, %v2526
  %v2528 = vrcp.pop %v2525
  %v2529 = vmul.f32 1.0, %v2528
  %2532 = vrot.lane.b32.xlu0 %v2510, 64
  %v2533 = vpop.permute.xlu0 %2532
  %2534 = vrot.lane.b32.xlu0 %v2515, 64
  %v2535 = vpop.permute.xlu0 %2534
  %v2538 = vsel %vm251, %v2533, 0.0
  %2539 = vadd.xlane.f32.xlu0 %v2538
  %v2540 = vpop.xlane.xlu0 %2539
  %v2541 = vsel %vm251, %v2535, 0.0
  %2542 = vadd.xlane.f32.xlu0 %v2541
  %v2543 = vpop.xlane.xlu0 %2542
  %v2544 = vmul.f32 %v2510, %v2510
  %v2545 = vmul.f32 %v2515, %v2515
  %2548 = vrot.lane.b32.xlu0 %v2544, 64
  %v2549 = vpop.permute.xlu0 %2548
  %2550 = vrot.lane.b32.xlu0 %v2545, 64
  %v2551 = vpop.permute.xlu0 %2550
  %v2554 = vsel %vm251, %v2549, 0.0
  %2555 = vadd.xlane.f32.xlu0 %v2554
  %v2556 = vpop.xlane.xlu0 %2555
  %v2557 = vsel %vm251, %v2551, 0.0
  %2558 = vadd.xlane.f32.xlu0 %v2557
  %v2559 = vpop.xlane.xlu0 %2558
  %v2560 = vmul.f32 %v2540, 0.015625
  %v2561 = vmul.f32 %v2543, 0.015625
  %v2562 = vmul.f32 %v2556, 0.015625
  %v2563 = vmul.f32 %v2559, 0.015625
  %v2564 = vmul.f32 %v2560, %v2560
  %v2565 = vmul.f32 %v2561, %v2561
  %v2566 = vsub.f32 %v2562, %v2564
  %v2567 = vsub.f32 %v2563, %v2565
  %v2568 = vmax.f32 %v2566, 0.0
  %v2569 = vmax.f32 %v2567, 0.0
  %v2570 = vsub.f32 %v2510, %v2560
  %v2571 = vsub.f32 %v2515, %v2561
  %v2572 = vadd.f32 %v2568, 1e-05
  %v2573 = vadd.f32 %v2569, 1e-05
  %v2574 = vrsqrt.pop %v2572
  %v2575 = vrsqrt.pop %v2573
  %v2576 = vmul.f32 %v2570, %v2574
  %v2577 = vmul.f32 %v2571, %v2575
  %v2578 = vmul.f32 %v2576, %v293
  %v2579 = vmul.f32 %v2577, %v293
  %v2580 = vadd.f32 %v2578, %v298
  %v2581 = vadd.f32 %v2579, %v298
  %v2582 = vmul.f32 %v2580, 0.5
  %v2583 = vmul.f32 %v2581, 0.5
  %v2584 = vmul.f32 %v2580, 0.70710677
  %v2585 = vmul.f32 %v2581, 0.70710677
  %v2586 = verf.f32.pop %v2584
  %v2587 = verf.f32.pop %v2585
  %v2588 = vadd.f32 %v2586, 1.0
  %v2589 = vadd.f32 %v2587, 1.0
  %v2590 = vmul.f32 %v2582, %v2588
  %v2591 = vmul.f32 %v2583, %v2589
  %2594 = vrot.lane.b32.xlu0 %v2590, 64
  %v2595 = vpop.permute.xlu0 %2594
  %2596 = vrot.lane.b32.xlu0 %v2591, 64
  %v2597 = vpop.permute.xlu0 %2596
  %v2598 = vsel %vm251, %v2595, 0
  %v2600 = vsel %vm251, %v2597, 0
  %2602 = vmatprep.subr.mxu0 0.0
  %2603 = vmatpush1.msra.mxu0 %v57
  %2604 = vmatprep.subr.mxu0 0.0
  %2605 = vmatpush1.msra.mxu0 %v58
  %2606 = vmatprep.subr.mxu0 0.0
  %2607 = vmatpush1.msra.mxu0 %v59
  %2608 = vmatprep.subr.mxu0 0.0
  %2609 = vmatpush1.msra.mxu0 %v60
  %2610 = vmatprep.subr.mxu0 0.0
  %2611 = vmatpush1.msra.mxu0 %v61
  %2612 = vmatprep.subr.mxu0 0.0
  %2613 = vmatpush1.msra.mxu0 %v62
  %2614 = vmatprep.subr.mxu0 0.0
  %2615 = vmatpush1.msra.mxu0 %v63
  %2616 = vmatprep.subr.mxu0 0.0
  %2617 = vmatpush1.msra.mxu0 %v64
  %2618 = vmatprep.subr.mxu0 0.0
  %2619 = vmatpush1.msra.mxu0 0.0
  %2620 = vmatprep.subr.mxu0 0.0
  %2621 = vmatpush1.msra.mxu0 0.0
  %2622 = vmatprep.subr.mxu0 0.0
  %2623 = vmatpush1.msra.mxu0 0.0
  %2624 = vmatprep.subr.mxu0 0.0
  %2625 = vmatpush1.msra.mxu0 0.0
  %2626 = vmatprep.subr.mxu0 0.0
  %2627 = vmatpush1.msra.mxu0 0.0
  %2628 = vmatprep.subr.mxu0 0.0
  %2629 = vmatpush1.msra.mxu0 0.0
  %2630 = vmatprep.subr.mxu0 0.0
  %2631 = vmatpush1.msra.mxu0 0.0
  %2632 = vmatprep.subr.mxu0 0.0
  %2633 = vmatpush1.msra.mxu0 0.0
  %2634 = vmatprep.subr.mxu0 0.0
  %2635 = vmatpush1.msra.mxu0 0.0
  %2636 = vmatprep.subr.mxu0 0.0
  %2637 = vmatpush1.msra.mxu0 0.0
  %2638 = vmatprep.subr.mxu0 0.0
  %2639 = vmatpush1.msra.mxu0 0.0
  %2640 = vmatprep.subr.mxu0 0.0
  %2641 = vmatpush1.msra.mxu0 0.0
  %2642 = vmatprep.subr.mxu0 0.0
  %2643 = vmatpush1.msra.mxu0 0.0
  %2644 = vmatprep.subr.mxu0 0.0
  %2645 = vmatpush1.msra.mxu0 0.0
  %2646 = vmatprep.subr.mxu0 0.0
  %2647 = vmatpush1.msra.mxu0 0.0
  %2648 = vmatprep.subr.mxu0 0.0
  %2649 = vmatpush1.msra.mxu0 0.0
  %2650 = vmatprep.subr.mxu0 0.0
  %2651 = vmatpush1.msra.mxu0 0.0
  %2652 = vmatprep.subr.mxu0 0.0
  %2653 = vmatpush1.msra.mxu0 0.0
  %2654 = vmatprep.subr.mxu0 0.0
  %2655 = vmatpush1.msra.mxu0 0.0
  %2656 = vmatprep.subr.mxu0 0.0
  %2657 = vmatpush1.msra.mxu0 0.0
  %2658 = vmatprep.subr.mxu0 0.0
  %2659 = vmatpush1.msra.mxu0 0.0
  %2660 = vmatprep.subr.mxu0 0.0
  %2661 = vmatpush1.msra.mxu0 0.0
  %2662 = vmatprep.subr.mxu0 0.0
  %2663 = vmatpush1.msra.mxu0 0.0
  %2664 = vmatprep.subr.mxu0 0.0
  %2665 = vmatpush1.msra.mxu0 0.0
  %2666 = vmatprep.mubr.f32.mxu0 0.0
  %2667 = vmatmul.mubr.f32.gmra.mrb[0].mxu0 %v2598
  %v2668 = vpop.f32.mrb[0].mxu0
  %v2669 = vadd.f32 %v82, %v2668
  %v2670 = vpop.f32.mrb[0].mxu0
  %2671 = vmatprep.mubr.f32.mxu0 0.0
  %2672 = vmatmul.mubr.f32.gmra.mrb[0].mxu0 %v2600
  %v2673 = vpop.f32.mrb[0].mxu0
  %v2674 = vadd.f32 %v82, %v2673
  %v2675 = vpop.f32.mrb[0].mxu0
  %2676 = vdwg.mxu0
  %v2677 = vtanh.pop %v2669
  %v2678 = vtanh.pop %v2674
  %v2679 = vmul.f32 %v2527, 9.9
  %v2680 = vmul.f32 %v2529, 9.9
  %v2681 = vadd.f32 %v2679, 0.1
  %v2682 = vadd.f32 %v2680, 0.1
  %v2683 = vadd.f32 %v2681, 1e-06
  %v2684 = vadd.f32 %v2682, 1e-06
  %v2685 = vsub.f32 1.0, %v2527
  %v2686 = vsub.f32 1.0, %v2529
  %v2687 = vrcp.pop %v2683
  %v2688 = vrcp.pop %v2684
  %v2689 = vmul.f32 %v2367, %v2687
  %v2690 = vmul.f32 %v2368, %v2688
  %2693 = vrot.lane.b32.xlu0 %v2689, 32
  %v2694 = vpop.permute.xlu0 %2693
  %2695 = vrot.lane.b32.xlu0 %v2690, 32
  %v2696 = vpop.permute.xlu0 %2695
  %v2699 = vmul.f32 %v2685, %v2694
  %v2700 = vmul.f32 %v2686, %v2696
  %2703 = vrot.lane.b32.xlu0 %v2677, 32
  %v2704 = vpop.permute.xlu0 %2703
  %2705 = vrot.lane.b32.xlu0 %v2678, 32
  %v2706 = vpop.permute.xlu0 %2705
  %v2709 = vmul.f32 %v2527, %v2704
  %v2710 = vmul.f32 %v2529, %v2706
  %v2711 = vadd.f32 %v2699, %v2709
  %v2712 = vadd.f32 %v2700, %v2710
  %v2713 = vmul.f32 %v2711, %v2711
  %v2714 = vmul.f32 %v2712, %v2712
  %2717 = vrot.lane.b32.xlu0 %v2713, 96
  %v2718 = vpop.permute.xlu0 %2717
  %2719 = vrot.lane.b32.xlu0 %v2714, 96
  %v2720 = vpop.permute.xlu0 %2719
  %v2723 = vsel %vm96, %v2718, 0.0
  %2724 = vadd.xlane.f32.xlu0 %v2723
  %v2725 = vpop.xlane.xlu0 %2724
  %v2726 = vsel %vm96, %v2720, 0.0
  %2727 = vadd.xlane.f32.xlu0 %v2726
  %v2728 = vpop.xlane.xlu0 %2727
  %v2729 = vmul.f32 %v2367, %v2367
  %v2730 = vmul.f32 %v2368, %v2368
  %v2731 = vsel %vm96, %v2729, 0.0
  %2732 = vadd.xlane.f32.xlu0 %v2731
  %v2733 = vpop.xlane.xlu0 %2732
  %v2734 = vsel %vm96, %v2730, 0.0
  %2735 = vadd.xlane.f32.xlu0 %v2734
  %v2736 = vpop.xlane.xlu0 %2735
  %vm2737 = vcmp.ne.f32.partialorder %v2725, %v2725
  %vm2738 = vcmp.ne.f32.partialorder %v2728, %v2728
  %v2739 = vand.u32 2147483647, %v2725
  %v2740 = vand.u32 2147483647, %v2728
  %vm2741 = vcmp.eq.f32.partialorder %v2739, inf
  %vm2742 = vcmp.eq.f32.partialorder %v2740, inf
  %vm2743 = vmor %vm2737, %vm2741
  %vm2744 = vmor %vm2738, %vm2742
  %v2745 = vmax.f32 %v2733, 1e-12
  %v2746 = vmax.f32 %v2736, 1e-12
  %v2747 = vrsqrt.pop %v2745
  %v2748 = vmul.f32 %v2745, %v2747
  %vm2749 = vcmp.eq.f32.partialorder %v2745, inf
  %v2750 = vsel %vm2749, %v2745, %v2748
  %vm2751 = vcmp.eq.f32.partialorder %v2745, 0.0
  %v2752 = vand.u32 %v2745, 2147483648
  %v2753 = vsel %vm2751, %v2752, %v2750
  %v2754 = vrsqrt.pop %v2746
  %v2755 = vmul.f32 %v2746, %v2754
  %vm2756 = vcmp.eq.f32.partialorder %v2746, inf
  %v2757 = vsel %vm2756, %v2746, %v2755
  %vm2758 = vcmp.eq.f32.partialorder %v2746, 0.0
  %v2759 = vand.u32 %v2746, 2147483648
  %v2760 = vsel %vm2758, %v2759, %v2757
  %v2761 = vmax.f32 %v2725, 1e-24
  %v2762 = vmax.f32 %v2728, 1e-24
  %v2763 = vrsqrt.pop %v2761
  %v2764 = vrsqrt.pop %v2762
  %v2765 = vmul.f32 %v2763, %v2753
  %v2766 = vmul.f32 %v2764, %v2760
  %v2767 = vmul.f32 %v2711, %v2765
  %v2768 = vmul.f32 %v2712, %v2766
  %v2769 = vsel %vm2743, 1, 0
  %v2770 = vsel %vm2744, 1, 0
  %vm2771 = vcmp.eq.s32.totalorder %v2769, 1
  %vm2772 = vcmp.eq.s32.totalorder %v2770, 1
  %2775 = vrot.lane.b32.xlu0 %v2767, 96
  %v2776 = vpop.permute.xlu0 %2775
  %2777 = vrot.lane.b32.xlu0 %v2768, 96
  %v2778 = vpop.permute.xlu0 %2777
  %v2781 = vsel %vm2771, %v2367, %v2776
  %v2782 = vsel %vm2772, %v2368, %v2778
  %vm2783 = vcmp.gt.f32.partialorder %v2417, 0.01
  %vm2784 = vcmp.gt.f32.partialorder %v2436, 0.01
  %v2785 = vsub.f32 1.0, %v2417
  %v2786 = vsub.f32 1.0, %v2436
  %2788 = vset.pattern.permute.xlu0 0
  %2789 = vperm.xlu0 %2788, %v2785
  %v2790 = vpop.permute.xlu0 %2789
  %2793 = vset.pattern.permute.xlu0 0
  %2794 = vperm.xlu0 %2793, %v2786
  %v2795 = vpop.permute.xlu0 %2794
  %v2797 = vmul.f32 %v2367, %v2790
  %v2798 = vmul.f32 %v2368, %v2795
  %2800 = vset.pattern.permute.xlu0 0
  %2801 = vperm.xlu0 %2800, %v2417
  %v2802 = vpop.permute.xlu0 %2801
  %2805 = vset.pattern.permute.xlu0 0
  %2806 = vperm.xlu0 %2805, %v2436
  %v2807 = vpop.permute.xlu0 %2806
  %v2809 = vmul.f32 %v2781, %v2802
  %v2810 = vmul.f32 %v2782, %v2807
  %v2811 = vadd.f32 %v2797, %v2809
  %v2812 = vadd.f32 %v2798, %v2810
  %v2813 = vsel %vm2783, 1, 0
  %v2814 = vsel %vm2784, 1, 0
  %2815 = vset.pattern.permute.xlu0 0
  %2816 = vperm.xlu0 %2815, %v2813
  %v2817 = vpop.permute.xlu0 %2816
  %2818 = vset.pattern.permute.xlu0 0
  %2819 = vperm.xlu0 %2818, %v2814
  %v2820 = vpop.permute.xlu0 %2819
  %vm2821 = vcmp.eq.s32.totalorder %v2817, 1
  %vm2822 = vcmp.eq.s32.totalorder %v2820, 1
  %v2823 = vsel %vm2821, %v2811, %v2367
  %v2824 = vsel %vm2822, %v2812, %v2368
  %v2825 = vsel %vm2783, %v2417, 0.0
  %v2826 = vsel %vm2784, %v2436, 0.0
  %v2827 = vadd.f32 %v2373, %v2825
  %v2828 = vadd.f32 %v2374, %v2826
  %v2829 = vmul.f32 %v2827, 0.99
  %v2830 = vmul.f32 %v2828, 0.99
  %v2831 = vmul.f32 %v2377, 0.98
  %v2832 = vmul.f32 %v2378, 0.98
  %v2833 = vadd.f32 %v2831, 1.0
  %v2834 = vadd.f32 %v2832, 1.0
  %v2835 = vld [vmem:[%s0 + $0xc] ss:$0 sm:$0xff]
  %v2836 = vld [vmem:[%s0 + $0xd] ss:$0 sm:$0xff]
  %v2837 = vld [vmem:[%s1 + $0xc] ss:$0 sm:$0xff]
  %v2838 = vld [vmem:[%s1 + $0xd] ss:$0 sm:$0xff]
  %v2839 = vmul.f32 %v2823, %v2835
  %v2840 = vmul.f32 %v2824, %v2836
  %v2841 = vsel %vm96, %v2839, 0.0
  %2842 = vadd.xlane.f32.xlu0 %v2841
  %v2843 = vpop.xlane.xlu0 %2842
  %v2844 = vsel %vm96, %v2840, 0.0
  %2845 = vadd.xlane.f32.xlu0 %v2844
  %v2846 = vpop.xlane.xlu0 %2845
  %v2847 = vmul.f32 %v2833, 0.1
  %v2848 = vmul.f32 %v2834, 0.1
  %v2849 = vsub.f32 %v2843, %v2847
  %v2850 = vsub.f32 %v2846, %v2848
  %v2851 = vmul.f32 %v2829, 0.2
  %v2852 = vmul.f32 %v2830, 0.2
  %v2853 = vsub.f32 %v2849, %v2851
  %v2854 = vsub.f32 %v2850, %v2852
  %v2855 = vsel %vm111, %v2853, -inf
  %v2856 = vrot.slane %v2855, 4
  %v2857 = vmax.f32 %v2855, %v2856
  %v2858 = vrot.slane %v2857, 2
  %v2859 = vmax.f32 %v2857, %v2858
  %v2860 = vrot.slane %v2859, 1
  %v2861 = vmax.f32 %v2859, %v2860
  %v2862 = vsub.f32 %v2853, %v2861
  %v2863 = vmul.f32 %v2862, 1.442695
  %v2864 = vpow.pop %v2863
  %v2865 = vsel %vm111, %v2864, 0.0
  %v2866 = vrot.slane %v2865, 4
  %v2867 = vadd.f32 %v2865, %v2866
  %v2868 = vrot.slane %v2867, 2
  %v2869 = vadd.f32 %v2867, %v2868
  %v2870 = vrot.slane %v2869, 1
  %v2871 = vadd.f32 %v2869, %v2870
  %v2872 = vrcp.pop %v2871
  %v2873 = vmul.f32 %v2864, %v2872
  %v2874 = vsel %vm111, %v2854, -inf
  %v2875 = vrot.slane %v2874, 4
  %v2876 = vmax.f32 %v2874, %v2875
  %v2877 = vrot.slane %v2876, 2
  %v2878 = vmax.f32 %v2876, %v2877
  %v2879 = vrot.slane %v2878, 1
  %v2880 = vmax.f32 %v2878, %v2879
  %v2881 = vsub.f32 %v2854, %v2880
  %v2882 = vmul.f32 %v2881, 1.442695
  %v2883 = vpow.pop %v2882
  %v2884 = vsel %vm111, %v2883, 0.0
  %v2885 = vrot.slane %v2884, 4
  %v2886 = vadd.f32 %v2884, %v2885
  %v2887 = vrot.slane %v2886, 2
  %v2888 = vadd.f32 %v2886, %v2887
  %v2889 = vrot.slane %v2888, 1
  %v2890 = vadd.f32 %v2888, %v2889
  %v2891 = vrcp.pop %v2890
  %v2892 = vmul.f32 %v2883, %v2891
  %v2894 = vsel %vm96, %v2823, 0
  %v2897 = vsel %vm96, %v2824, 0
  %2899 = vmatprep.subr.mxu0 0.0
  %2900 = vmatpush1.msra.mxu0 %v53
  %2901 = vmatprep.subr.mxu0 0.0
  %2902 = vmatpush1.msra.mxu0 %v54
  %2903 = vmatprep.subr.mxu0 0.0
  %2904 = vmatpush1.msra.mxu0 %v55
  %2905 = vmatprep.subr.mxu0 0.0
  %2906 = vmatpush1.msra.mxu0 %v56
  %2907 = vmatprep.subr.mxu0 0.0
  %2908 = vmatpush1.msra.mxu0 0.0
  %2909 = vmatprep.subr.mxu0 0.0
  %2910 = vmatpush1.msra.mxu0 0.0
  %2911 = vmatprep.subr.mxu0 0.0
  %2912 = vmatpush1.msra.mxu0 0.0
  %2913 = vmatprep.subr.mxu0 0.0
  %2914 = vmatpush1.msra.mxu0 0.0
  %2915 = vmatprep.subr.mxu0 0.0
  %2916 = vmatpush1.msra.mxu0 0.0
  %2917 = vmatprep.subr.mxu0 0.0
  %2918 = vmatpush1.msra.mxu0 0.0
  %2919 = vmatprep.subr.mxu0 0.0
  %2920 = vmatpush1.msra.mxu0 0.0
  %2921 = vmatprep.subr.mxu0 0.0
  %2922 = vmatpush1.msra.mxu0 0.0
  %2923 = vmatprep.subr.mxu0 0.0
  %2924 = vmatpush1.msra.mxu0 0.0
  %2925 = vmatprep.subr.mxu0 0.0
  %2926 = vmatpush1.msra.mxu0 0.0
  %2927 = vmatprep.subr.mxu0 0.0
  %2928 = vmatpush1.msra.mxu0 0.0
  %2929 = vmatprep.subr.mxu0 0.0
  %2930 = vmatpush1.msra.mxu0 0.0
  %2931 = vmatprep.subr.mxu0 0.0
  %2932 = vmatpush1.msra.mxu0 0.0
  %2933 = vmatprep.subr.mxu0 0.0
  %2934 = vmatpush1.msra.mxu0 0.0
  %2935 = vmatprep.subr.mxu0 0.0
  %2936 = vmatpush1.msra.mxu0 0.0
  %2937 = vmatprep.subr.mxu0 0.0
  %2938 = vmatpush1.msra.mxu0 0.0
  %2939 = vmatprep.subr.mxu0 0.0
  %2940 = vmatpush1.msra.mxu0 0.0
  %2941 = vmatprep.subr.mxu0 0.0
  %2942 = vmatpush1.msra.mxu0 0.0
  %2943 = vmatprep.subr.mxu0 0.0
  %2944 = vmatpush1.msra.mxu0 0.0
  %2945 = vmatprep.subr.mxu0 0.0
  %2946 = vmatpush1.msra.mxu0 0.0
  %2947 = vmatprep.subr.mxu0 0.0
  %2948 = vmatpush1.msra.mxu0 0.0
  %2949 = vmatprep.subr.mxu0 0.0
  %2950 = vmatpush1.msra.mxu0 0.0
  %2951 = vmatprep.subr.mxu0 0.0
  %2952 = vmatpush1.msra.mxu0 0.0
  %2953 = vmatprep.subr.mxu0 0.0
  %2954 = vmatpush1.msra.mxu0 0.0
  %2955 = vmatprep.subr.mxu0 0.0
  %2956 = vmatpush1.msra.mxu0 0.0
  %2957 = vmatprep.subr.mxu0 0.0
  %2958 = vmatpush1.msra.mxu0 0.0
  %2959 = vmatprep.subr.mxu0 0.0
  %2960 = vmatpush1.msra.mxu0 0.0
  %2961 = vmatprep.subr.mxu0 0.0
  %2962 = vmatpush1.msra.mxu0 0.0
  %2963 = vmatprep.mubr.f32.mxu0 0.0
  %2964 = vmatmul.mubr.f32.gmra.mrb[0].mxu0 %v2894
  %v2965 = vpop.f32.mrb[0].mxu0
  %v2966 = vadd.f32 %v2837, %v2965
  %v2967 = vpop.f32.mrb[0].mxu0
  %2968 = vmatprep.mubr.f32.mxu0 0.0
  %2969 = vmatmul.mubr.f32.gmra.mrb[0].mxu0 %v2897
  %v2970 = vpop.f32.mrb[0].mxu0
  %v2971 = vadd.f32 %v2838, %v2970
  %v2972 = vpop.f32.mrb[0].mxu0
  %2973 = vdwg.mxu0
  %v2974 = vxor.u32 %v2966, 2147483648
  %v2975 = vxor.u32 %v2971, 2147483648
  %v2976 = vmul.f32 %v2974, 1.442695
  %v2977 = vpow.pop %v2976
  %v2978 = vmul.f32 %v2975, 1.442695
  %v2979 = vpow.pop %v2978
  %v2980 = vadd.f32 %v2977, 1.0
  %v2981 = vadd.f32 %v2979, 1.0
  %v2982 = vrcp.pop %v2980
  %v2983 = vmul.f32 1.0, %v2982
  %v2984 = vrcp.pop %v2981
  %v2985 = vmul.f32 1.0, %v2984
  %2988 = vrot.lane.b32.xlu0 %v2966, 64
  %v2989 = vpop.permute.xlu0 %2988
  %2990 = vrot.lane.b32.xlu0 %v2971, 64
  %v2991 = vpop.permute.xlu0 %2990
  %v2994 = vsel %vm251, %v2989, 0.0
  %2995 = vadd.xlane.f32.xlu0 %v2994
  %v2996 = vpop.xlane.xlu0 %2995
  %v2997 = vsel %vm251, %v2991, 0.0
  %2998 = vadd.xlane.f32.xlu0 %v2997
  %v2999 = vpop.xlane.xlu0 %2998
  %v3000 = vmul.f32 %v2966, %v2966
  %v3001 = vmul.f32 %v2971, %v2971
  %3004 = vrot.lane.b32.xlu0 %v3000, 64
  %v3005 = vpop.permute.xlu0 %3004
  %3006 = vrot.lane.b32.xlu0 %v3001, 64
  %v3007 = vpop.permute.xlu0 %3006
  %v3010 = vsel %vm251, %v3005, 0.0
  %3011 = vadd.xlane.f32.xlu0 %v3010
  %v3012 = vpop.xlane.xlu0 %3011
  %v3013 = vsel %vm251, %v3007, 0.0
  %3014 = vadd.xlane.f32.xlu0 %v3013
  %v3015 = vpop.xlane.xlu0 %3014
  %v3016 = vmul.f32 %v2996, 0.015625
  %v3017 = vmul.f32 %v2999, 0.015625
  %v3018 = vmul.f32 %v3012, 0.015625
  %v3019 = vmul.f32 %v3015, 0.015625
  %v3020 = vmul.f32 %v3016, %v3016
  %v3021 = vmul.f32 %v3017, %v3017
  %v3022 = vsub.f32 %v3018, %v3020
  %v3023 = vsub.f32 %v3019, %v3021
  %v3024 = vmax.f32 %v3022, 0.0
  %v3025 = vmax.f32 %v3023, 0.0
  %v3026 = vsub.f32 %v2966, %v3016
  %v3027 = vsub.f32 %v2971, %v3017
  %v3028 = vadd.f32 %v3024, 1e-05
  %v3029 = vadd.f32 %v3025, 1e-05
  %v3030 = vrsqrt.pop %v3028
  %v3031 = vrsqrt.pop %v3029
  %v3032 = vmul.f32 %v3026, %v3030
  %v3033 = vmul.f32 %v3027, %v3031
  %v3034 = vmul.f32 %v3032, %v293
  %v3035 = vmul.f32 %v3033, %v293
  %v3036 = vadd.f32 %v3034, %v298
  %v3037 = vadd.f32 %v3035, %v298
  %v3038 = vmul.f32 %v3036, 0.5
  %v3039 = vmul.f32 %v3037, 0.5
  %v3040 = vmul.f32 %v3036, 0.70710677
  %v3041 = vmul.f32 %v3037, 0.70710677
  %v3042 = verf.f32.pop %v3040
  %v3043 = verf.f32.pop %v3041
  %v3044 = vadd.f32 %v3042, 1.0
  %v3045 = vadd.f32 %v3043, 1.0
  %v3046 = vmul.f32 %v3038, %v3044
  %v3047 = vmul.f32 %v3039, %v3045
  %3050 = vrot.lane.b32.xlu0 %v3046, 64
  %v3051 = vpop.permute.xlu0 %3050
  %3052 = vrot.lane.b32.xlu0 %v3047, 64
  %v3053 = vpop.permute.xlu0 %3052
  %v3054 = vsel %vm251, %v3051, 0
  %v3056 = vsel %vm251, %v3053, 0
  %3058 = vmatprep.subr.mxu0 0.0
  %3059 = vmatpush1.msra.mxu0 %v57
  %3060 = vmatprep.subr.mxu0 0.0
  %3061 = vmatpush1.msra.mxu0 %v58
  %3062 = vmatprep.subr.mxu0 0.0
  %3063 = vmatpush1.msra.mxu0 %v59
  %3064 = vmatprep.subr.mxu0 0.0
  %3065 = vmatpush1.msra.mxu0 %v60
  %3066 = vmatprep.subr.mxu0 0.0
  %3067 = vmatpush1.msra.mxu0 %v61
  %3068 = vmatprep.subr.mxu0 0.0
  %3069 = vmatpush1.msra.mxu0 %v62
  %3070 = vmatprep.subr.mxu0 0.0
  %3071 = vmatpush1.msra.mxu0 %v63
  %3072 = vmatprep.subr.mxu0 0.0
  %3073 = vmatpush1.msra.mxu0 %v64
  %3074 = vmatprep.subr.mxu0 0.0
  %3075 = vmatpush1.msra.mxu0 0.0
  %3076 = vmatprep.subr.mxu0 0.0
  %3077 = vmatpush1.msra.mxu0 0.0
  %3078 = vmatprep.subr.mxu0 0.0
  %3079 = vmatpush1.msra.mxu0 0.0
  %3080 = vmatprep.subr.mxu0 0.0
  %3081 = vmatpush1.msra.mxu0 0.0
  %3082 = vmatprep.subr.mxu0 0.0
  %3083 = vmatpush1.msra.mxu0 0.0
  %3084 = vmatprep.subr.mxu0 0.0
  %3085 = vmatpush1.msra.mxu0 0.0
  %3086 = vmatprep.subr.mxu0 0.0
  %3087 = vmatpush1.msra.mxu0 0.0
  %3088 = vmatprep.subr.mxu0 0.0
  %3089 = vmatpush1.msra.mxu0 0.0
  %3090 = vmatprep.subr.mxu0 0.0
  %3091 = vmatpush1.msra.mxu0 0.0
  %3092 = vmatprep.subr.mxu0 0.0
  %3093 = vmatpush1.msra.mxu0 0.0
  %3094 = vmatprep.subr.mxu0 0.0
  %3095 = vmatpush1.msra.mxu0 0.0
  %3096 = vmatprep.subr.mxu0 0.0
  %3097 = vmatpush1.msra.mxu0 0.0
  %3098 = vmatprep.subr.mxu0 0.0
  %3099 = vmatpush1.msra.mxu0 0.0
  %3100 = vmatprep.subr.mxu0 0.0
  %3101 = vmatpush1.msra.mxu0 0.0
  %3102 = vmatprep.subr.mxu0 0.0
  %3103 = vmatpush1.msra.mxu0 0.0
  %3104 = vmatprep.subr.mxu0 0.0
  %3105 = vmatpush1.msra.mxu0 0.0
  %3106 = vmatprep.subr.mxu0 0.0
  %3107 = vmatpush1.msra.mxu0 0.0
  %3108 = vmatprep.subr.mxu0 0.0
  %3109 = vmatpush1.msra.mxu0 0.0
  %3110 = vmatprep.subr.mxu0 0.0
  %3111 = vmatpush1.msra.mxu0 0.0
  %3112 = vmatprep.subr.mxu0 0.0
  %3113 = vmatpush1.msra.mxu0 0.0
  %3114 = vmatprep.subr.mxu0 0.0
  %3115 = vmatpush1.msra.mxu0 0.0
  %3116 = vmatprep.subr.mxu0 0.0
  %3117 = vmatpush1.msra.mxu0 0.0
  %3118 = vmatprep.subr.mxu0 0.0
  %3119 = vmatpush1.msra.mxu0 0.0
  %3120 = vmatprep.subr.mxu0 0.0
  %3121 = vmatpush1.msra.mxu0 0.0
  %3122 = vmatprep.mubr.f32.mxu0 0.0
  %3123 = vmatmul.mubr.f32.gmra.mrb[0].mxu0 %v3054
  %v3124 = vpop.f32.mrb[0].mxu0
  %v3125 = vadd.f32 %v82, %v3124
  %v3126 = vpop.f32.mrb[0].mxu0
  %3127 = vmatprep.mubr.f32.mxu0 0.0
  %3128 = vmatmul.mubr.f32.gmra.mrb[0].mxu0 %v3056
  %v3129 = vpop.f32.mrb[0].mxu0
  %v3130 = vadd.f32 %v82, %v3129
  %v3131 = vpop.f32.mrb[0].mxu0
  %3132 = vdwg.mxu0
  %v3133 = vtanh.pop %v3125
  %v3134 = vtanh.pop %v3130
  %v3135 = vmul.f32 %v2983, 9.9
  %v3136 = vmul.f32 %v2985, 9.9
  %v3137 = vadd.f32 %v3135, 0.1
  %v3138 = vadd.f32 %v3136, 0.1
  %v3139 = vadd.f32 %v3137, 1e-06
  %v3140 = vadd.f32 %v3138, 1e-06
  %v3141 = vsub.f32 1.0, %v2983
  %v3142 = vsub.f32 1.0, %v2985
  %v3143 = vrcp.pop %v3139
  %v3144 = vrcp.pop %v3140
  %v3145 = vmul.f32 %v2823, %v3143
  %v3146 = vmul.f32 %v2824, %v3144
  %3149 = vrot.lane.b32.xlu0 %v3145, 32
  %v3150 = vpop.permute.xlu0 %3149
  %3151 = vrot.lane.b32.xlu0 %v3146, 32
  %v3152 = vpop.permute.xlu0 %3151
  %v3155 = vmul.f32 %v3141, %v3150
  %v3156 = vmul.f32 %v3142, %v3152
  %3159 = vrot.lane.b32.xlu0 %v3133, 32
  %v3160 = vpop.permute.xlu0 %3159
  %3161 = vrot.lane.b32.xlu0 %v3134, 32
  %v3162 = vpop.permute.xlu0 %3161
  %v3165 = vmul.f32 %v2983, %v3160
  %v3166 = vmul.f32 %v2985, %v3162
  %v3167 = vadd.f32 %v3155, %v3165
  %v3168 = vadd.f32 %v3156, %v3166
  %v3169 = vmul.f32 %v3167, %v3167
  %v3170 = vmul.f32 %v3168, %v3168
  %3173 = vrot.lane.b32.xlu0 %v3169, 96
  %v3174 = vpop.permute.xlu0 %3173
  %3175 = vrot.lane.b32.xlu0 %v3170, 96
  %v3176 = vpop.permute.xlu0 %3175
  %v3179 = vsel %vm96, %v3174, 0.0
  %3180 = vadd.xlane.f32.xlu0 %v3179
  %v3181 = vpop.xlane.xlu0 %3180
  %v3182 = vsel %vm96, %v3176, 0.0
  %3183 = vadd.xlane.f32.xlu0 %v3182
  %v3184 = vpop.xlane.xlu0 %3183
  %v3185 = vmul.f32 %v2823, %v2823
  %v3186 = vmul.f32 %v2824, %v2824
  %v3187 = vsel %vm96, %v3185, 0.0
  %3188 = vadd.xlane.f32.xlu0 %v3187
  %v3189 = vpop.xlane.xlu0 %3188
  %v3190 = vsel %vm96, %v3186, 0.0
  %3191 = vadd.xlane.f32.xlu0 %v3190
  %v3192 = vpop.xlane.xlu0 %3191
  %vm3193 = vcmp.ne.f32.partialorder %v3181, %v3181
  %vm3194 = vcmp.ne.f32.partialorder %v3184, %v3184
  %v3195 = vand.u32 2147483647, %v3181
  %v3196 = vand.u32 2147483647, %v3184
  %vm3197 = vcmp.eq.f32.partialorder %v3195, inf
  %vm3198 = vcmp.eq.f32.partialorder %v3196, inf
  %vm3199 = vmor %vm3193, %vm3197
  %vm3200 = vmor %vm3194, %vm3198
  %v3201 = vmax.f32 %v3189, 1e-12
  %v3202 = vmax.f32 %v3192, 1e-12
  %v3203 = vrsqrt.pop %v3201
  %v3204 = vmul.f32 %v3201, %v3203
  %vm3205 = vcmp.eq.f32.partialorder %v3201, inf
  %v3206 = vsel %vm3205, %v3201, %v3204
  %vm3207 = vcmp.eq.f32.partialorder %v3201, 0.0
  %v3208 = vand.u32 %v3201, 2147483648
  %v3209 = vsel %vm3207, %v3208, %v3206
  %v3210 = vrsqrt.pop %v3202
  %v3211 = vmul.f32 %v3202, %v3210
  %vm3212 = vcmp.eq.f32.partialorder %v3202, inf
  %v3213 = vsel %vm3212, %v3202, %v3211
  %vm3214 = vcmp.eq.f32.partialorder %v3202, 0.0
  %v3215 = vand.u32 %v3202, 2147483648
  %v3216 = vsel %vm3214, %v3215, %v3213
  %v3217 = vmax.f32 %v3181, 1e-24
  %v3218 = vmax.f32 %v3184, 1e-24
  %v3219 = vrsqrt.pop %v3217
  %v3220 = vrsqrt.pop %v3218
  %v3221 = vmul.f32 %v3219, %v3209
  %v3222 = vmul.f32 %v3220, %v3216
  %v3223 = vmul.f32 %v3167, %v3221
  %v3224 = vmul.f32 %v3168, %v3222
  %v3225 = vsel %vm3199, 1, 0
  %v3226 = vsel %vm3200, 1, 0
  %vm3227 = vcmp.eq.s32.totalorder %v3225, 1
  %vm3228 = vcmp.eq.s32.totalorder %v3226, 1
  %3231 = vrot.lane.b32.xlu0 %v3223, 96
  %v3232 = vpop.permute.xlu0 %3231
  %3233 = vrot.lane.b32.xlu0 %v3224, 96
  %v3234 = vpop.permute.xlu0 %3233
  %v3237 = vsel %vm3227, %v2823, %v3232
  %v3238 = vsel %vm3228, %v2824, %v3234
  %vm3239 = vcmp.gt.f32.partialorder %v2873, 0.01
  %vm3240 = vcmp.gt.f32.partialorder %v2892, 0.01
  %v3241 = vsub.f32 1.0, %v2873
  %v3242 = vsub.f32 1.0, %v2892
  %3244 = vset.pattern.permute.xlu0 0
  %3245 = vperm.xlu0 %3244, %v3241
  %v3246 = vpop.permute.xlu0 %3245
  %3249 = vset.pattern.permute.xlu0 0
  %3250 = vperm.xlu0 %3249, %v3242
  %v3251 = vpop.permute.xlu0 %3250
  %v3253 = vmul.f32 %v2823, %v3246
  %v3254 = vmul.f32 %v2824, %v3251
  %3256 = vset.pattern.permute.xlu0 0
  %3257 = vperm.xlu0 %3256, %v2873
  %v3258 = vpop.permute.xlu0 %3257
  %3261 = vset.pattern.permute.xlu0 0
  %3262 = vperm.xlu0 %3261, %v2892
  %v3263 = vpop.permute.xlu0 %3262
  %v3265 = vmul.f32 %v3237, %v3258
  %v3266 = vmul.f32 %v3238, %v3263
  %v3267 = vadd.f32 %v3253, %v3265
  %v3268 = vadd.f32 %v3254, %v3266
  %v3269 = vsel %vm3239, 1, 0
  %v3270 = vsel %vm3240, 1, 0
  %3271 = vset.pattern.permute.xlu0 0
  %3272 = vperm.xlu0 %3271, %v3269
  %v3273 = vpop.permute.xlu0 %3272
  %3274 = vset.pattern.permute.xlu0 0
  %3275 = vperm.xlu0 %3274, %v3270
  %v3276 = vpop.permute.xlu0 %3275
  %vm3277 = vcmp.eq.s32.totalorder %v3273, 1
  %vm3278 = vcmp.eq.s32.totalorder %v3276, 1
  %v3279 = vsel %vm3277, %v3267, %v2823
  %v3280 = vsel %vm3278, %v3268, %v2824
  %v3281 = vsel %vm3239, %v2873, 0.0
  %v3282 = vsel %vm3240, %v2892, 0.0
  %v3283 = vadd.f32 %v2829, %v3281
  %v3284 = vadd.f32 %v2830, %v3282
  %v3285 = vmul.f32 %v3283, 0.99
  %v3286 = vmul.f32 %v3284, 0.99
  %v3287 = vmul.f32 %v2833, 0.98
  %v3288 = vmul.f32 %v2834, 0.98
  %v3289 = vadd.f32 %v3287, 1.0
  %v3290 = vadd.f32 %v3288, 1.0
  %v3291 = vld [vmem:[%s0 + $0xe] ss:$0 sm:$0xff]
  %v3292 = vld [vmem:[%s0 + $0xf] ss:$0 sm:$0xff]
  %v3293 = vld [vmem:[%s1 + $0xe] ss:$0 sm:$0xff]
  %v3294 = vld [vmem:[%s1 + $0xf] ss:$0 sm:$0xff]
  %v3295 = vmul.f32 %v3279, %v3291
  %v3296 = vmul.f32 %v3280, %v3292
  %v3297 = vsel %vm96, %v3295, 0.0
  %3298 = vadd.xlane.f32.xlu0 %v3297
  %v3299 = vpop.xlane.xlu0 %3298
  %v3300 = vsel %vm96, %v3296, 0.0
  %3301 = vadd.xlane.f32.xlu0 %v3300
  %v3302 = vpop.xlane.xlu0 %3301
  %v3303 = vmul.f32 %v3289, 0.1
  %v3304 = vmul.f32 %v3290, 0.1
  %v3305 = vsub.f32 %v3299, %v3303
  %v3306 = vsub.f32 %v3302, %v3304
  %v3307 = vmul.f32 %v3285, 0.2
  %v3308 = vmul.f32 %v3286, 0.2
  %v3309 = vsub.f32 %v3305, %v3307
  %v3310 = vsub.f32 %v3306, %v3308
  %v3311 = vsel %vm111, %v3309, -inf
  %v3312 = vrot.slane %v3311, 4
  %v3313 = vmax.f32 %v3311, %v3312
  %v3314 = vrot.slane %v3313, 2
  %v3315 = vmax.f32 %v3313, %v3314
  %v3316 = vrot.slane %v3315, 1
  %v3317 = vmax.f32 %v3315, %v3316
  %v3318 = vsub.f32 %v3309, %v3317
  %v3319 = vmul.f32 %v3318, 1.442695
  %v3320 = vpow.pop %v3319
  %v3321 = vsel %vm111, %v3320, 0.0
  %v3322 = vrot.slane %v3321, 4
  %v3323 = vadd.f32 %v3321, %v3322
  %v3324 = vrot.slane %v3323, 2
  %v3325 = vadd.f32 %v3323, %v3324
  %v3326 = vrot.slane %v3325, 1
  %v3327 = vadd.f32 %v3325, %v3326
  %v3328 = vrcp.pop %v3327
  %v3329 = vmul.f32 %v3320, %v3328
  %v3330 = vsel %vm111, %v3310, -inf
  %v3331 = vrot.slane %v3330, 4
  %v3332 = vmax.f32 %v3330, %v3331
  %v3333 = vrot.slane %v3332, 2
  %v3334 = vmax.f32 %v3332, %v3333
  %v3335 = vrot.slane %v3334, 1
  %v3336 = vmax.f32 %v3334, %v3335
  %v3337 = vsub.f32 %v3310, %v3336
  %v3338 = vmul.f32 %v3337, 1.442695
  %v3339 = vpow.pop %v3338
  %v3340 = vsel %vm111, %v3339, 0.0
  %v3341 = vrot.slane %v3340, 4
  %v3342 = vadd.f32 %v3340, %v3341
  %v3343 = vrot.slane %v3342, 2
  %v3344 = vadd.f32 %v3342, %v3343
  %v3345 = vrot.slane %v3344, 1
  %v3346 = vadd.f32 %v3344, %v3345
  %v3347 = vrcp.pop %v3346
  %v3348 = vmul.f32 %v3339, %v3347
  %v3350 = vsel %vm96, %v3279, 0
  %v3353 = vsel %vm96, %v3280, 0
  %3355 = vmatprep.subr.mxu0 0.0
  %3356 = vmatpush1.msra.mxu0 %v53
  %3357 = vmatprep.subr.mxu0 0.0
  %3358 = vmatpush1.msra.mxu0 %v54
  %3359 = vmatprep.subr.mxu0 0.0
  %3360 = vmatpush1.msra.mxu0 %v55
  %3361 = vmatprep.subr.mxu0 0.0
  %3362 = vmatpush1.msra.mxu0 %v56
  %3363 = vmatprep.subr.mxu0 0.0
  %3364 = vmatpush1.msra.mxu0 0.0
  %3365 = vmatprep.subr.mxu0 0.0
  %3366 = vmatpush1.msra.mxu0 0.0
  %3367 = vmatprep.subr.mxu0 0.0
  %3368 = vmatpush1.msra.mxu0 0.0
  %3369 = vmatprep.subr.mxu0 0.0
  %3370 = vmatpush1.msra.mxu0 0.0
  %3371 = vmatprep.subr.mxu0 0.0
  %3372 = vmatpush1.msra.mxu0 0.0
  %3373 = vmatprep.subr.mxu0 0.0
  %3374 = vmatpush1.msra.mxu0 0.0
  %3375 = vmatprep.subr.mxu0 0.0
  %3376 = vmatpush1.msra.mxu0 0.0
  %3377 = vmatprep.subr.mxu0 0.0
  %3378 = vmatpush1.msra.mxu0 0.0
  %3379 = vmatprep.subr.mxu0 0.0
  %3380 = vmatpush1.msra.mxu0 0.0
  %3381 = vmatprep.subr.mxu0 0.0
  %3382 = vmatpush1.msra.mxu0 0.0
  %3383 = vmatprep.subr.mxu0 0.0
  %3384 = vmatpush1.msra.mxu0 0.0
  %3385 = vmatprep.subr.mxu0 0.0
  %3386 = vmatpush1.msra.mxu0 0.0
  %3387 = vmatprep.subr.mxu0 0.0
  %3388 = vmatpush1.msra.mxu0 0.0
  %3389 = vmatprep.subr.mxu0 0.0
  %3390 = vmatpush1.msra.mxu0 0.0
  %3391 = vmatprep.subr.mxu0 0.0
  %3392 = vmatpush1.msra.mxu0 0.0
  %3393 = vmatprep.subr.mxu0 0.0
  %3394 = vmatpush1.msra.mxu0 0.0
  %3395 = vmatprep.subr.mxu0 0.0
  %3396 = vmatpush1.msra.mxu0 0.0
  %3397 = vmatprep.subr.mxu0 0.0
  %3398 = vmatpush1.msra.mxu0 0.0
  %3399 = vmatprep.subr.mxu0 0.0
  %3400 = vmatpush1.msra.mxu0 0.0
  %3401 = vmatprep.subr.mxu0 0.0
  %3402 = vmatpush1.msra.mxu0 0.0
  %3403 = vmatprep.subr.mxu0 0.0
  %3404 = vmatpush1.msra.mxu0 0.0
  %3405 = vmatprep.subr.mxu0 0.0
  %3406 = vmatpush1.msra.mxu0 0.0
  %3407 = vmatprep.subr.mxu0 0.0
  %3408 = vmatpush1.msra.mxu0 0.0
  %3409 = vmatprep.subr.mxu0 0.0
  %3410 = vmatpush1.msra.mxu0 0.0
  %3411 = vmatprep.subr.mxu0 0.0
  %3412 = vmatpush1.msra.mxu0 0.0
  %3413 = vmatprep.subr.mxu0 0.0
  %3414 = vmatpush1.msra.mxu0 0.0
  %3415 = vmatprep.subr.mxu0 0.0
  %3416 = vmatpush1.msra.mxu0 0.0
  %3417 = vmatprep.subr.mxu0 0.0
  %3418 = vmatpush1.msra.mxu0 0.0
  %3419 = vmatprep.mubr.f32.mxu0 0.0
  %3420 = vmatmul.mubr.f32.gmra.mrb[0].mxu0 %v3350
  %v3421 = vpop.f32.mrb[0].mxu0
  %v3422 = vadd.f32 %v3293, %v3421
  %v3423 = vpop.f32.mrb[0].mxu0
  %3424 = vmatprep.mubr.f32.mxu0 0.0
  %3425 = vmatmul.mubr.f32.gmra.mrb[0].mxu0 %v3353
  %v3426 = vpop.f32.mrb[0].mxu0
  %v3427 = vadd.f32 %v3294, %v3426
  %v3428 = vpop.f32.mrb[0].mxu0
  %3429 = vdwg.mxu0
  %v3430 = vxor.u32 %v3422, 2147483648
  %v3431 = vxor.u32 %v3427, 2147483648
  %v3432 = vmul.f32 %v3430, 1.442695
  %v3433 = vpow.pop %v3432
  %v3434 = vmul.f32 %v3431, 1.442695
  %v3435 = vpow.pop %v3434
  %v3436 = vadd.f32 %v3433, 1.0
  %v3437 = vadd.f32 %v3435, 1.0
  %v3438 = vrcp.pop %v3436
  %v3439 = vmul.f32 1.0, %v3438
  %v3440 = vrcp.pop %v3437
  %v3441 = vmul.f32 1.0, %v3440
  %3444 = vrot.lane.b32.xlu0 %v3422, 64
  %v3445 = vpop.permute.xlu0 %3444
  %3446 = vrot.lane.b32.xlu0 %v3427, 64
  %v3447 = vpop.permute.xlu0 %3446
  %v3450 = vsel %vm251, %v3445, 0.0
  %3451 = vadd.xlane.f32.xlu0 %v3450
  %v3452 = vpop.xlane.xlu0 %3451
  %v3453 = vsel %vm251, %v3447, 0.0
  %3454 = vadd.xlane.f32.xlu0 %v3453
  %v3455 = vpop.xlane.xlu0 %3454
  %v3456 = vmul.f32 %v3422, %v3422
  %v3457 = vmul.f32 %v3427, %v3427
  %3460 = vrot.lane.b32.xlu0 %v3456, 64
  %v3461 = vpop.permute.xlu0 %3460
  %3462 = vrot.lane.b32.xlu0 %v3457, 64
  %v3463 = vpop.permute.xlu0 %3462
  %v3466 = vsel %vm251, %v3461, 0.0
  %3467 = vadd.xlane.f32.xlu0 %v3466
  %v3468 = vpop.xlane.xlu0 %3467
  %v3469 = vsel %vm251, %v3463, 0.0
  %3470 = vadd.xlane.f32.xlu0 %v3469
  %v3471 = vpop.xlane.xlu0 %3470
  %v3472 = vmul.f32 %v3452, 0.015625
  %v3473 = vmul.f32 %v3455, 0.015625
  %v3474 = vmul.f32 %v3468, 0.015625
  %v3475 = vmul.f32 %v3471, 0.015625
  %v3476 = vmul.f32 %v3472, %v3472
  %v3477 = vmul.f32 %v3473, %v3473
  %v3478 = vsub.f32 %v3474, %v3476
  %v3479 = vsub.f32 %v3475, %v3477
  %v3480 = vmax.f32 %v3478, 0.0
  %v3481 = vmax.f32 %v3479, 0.0
  %v3482 = vsub.f32 %v3422, %v3472
  %v3483 = vsub.f32 %v3427, %v3473
  %v3484 = vadd.f32 %v3480, 1e-05
  %v3485 = vadd.f32 %v3481, 1e-05
  %v3486 = vrsqrt.pop %v3484
  %v3487 = vrsqrt.pop %v3485
  %v3488 = vmul.f32 %v3482, %v3486
  %v3489 = vmul.f32 %v3483, %v3487
  %v3490 = vmul.f32 %v3488, %v293
  %v3491 = vmul.f32 %v3489, %v293
  %v3492 = vadd.f32 %v3490, %v298
  %v3493 = vadd.f32 %v3491, %v298
  %v3494 = vmul.f32 %v3492, 0.5
  %v3495 = vmul.f32 %v3493, 0.5
  %v3496 = vmul.f32 %v3492, 0.70710677
  %v3497 = vmul.f32 %v3493, 0.70710677
  %v3498 = verf.f32.pop %v3496
  %v3499 = verf.f32.pop %v3497
  %v3500 = vadd.f32 %v3498, 1.0
  %v3501 = vadd.f32 %v3499, 1.0
  %v3502 = vmul.f32 %v3494, %v3500
  %v3503 = vmul.f32 %v3495, %v3501
  %3506 = vrot.lane.b32.xlu0 %v3502, 64
  %v3507 = vpop.permute.xlu0 %3506
  %3508 = vrot.lane.b32.xlu0 %v3503, 64
  %v3509 = vpop.permute.xlu0 %3508
  %v3510 = vsel %vm251, %v3507, 0
  %v3512 = vsel %vm251, %v3509, 0
  %3514 = vmatprep.subr.mxu0 0.0
  %3515 = vmatpush1.msra.mxu0 %v57
  %3516 = vmatprep.subr.mxu0 0.0
  %3517 = vmatpush1.msra.mxu0 %v58
  %3518 = vmatprep.subr.mxu0 0.0
  %3519 = vmatpush1.msra.mxu0 %v59
  %3520 = vmatprep.subr.mxu0 0.0
  %3521 = vmatpush1.msra.mxu0 %v60
  %3522 = vmatprep.subr.mxu0 0.0
  %3523 = vmatpush1.msra.mxu0 %v61
  %3524 = vmatprep.subr.mxu0 0.0
  %3525 = vmatpush1.msra.mxu0 %v62
  %3526 = vmatprep.subr.mxu0 0.0
  %3527 = vmatpush1.msra.mxu0 %v63
  %3528 = vmatprep.subr.mxu0 0.0
  %3529 = vmatpush1.msra.mxu0 %v64
  %3530 = vmatprep.subr.mxu0 0.0
  %3531 = vmatpush1.msra.mxu0 0.0
  %3532 = vmatprep.subr.mxu0 0.0
  %3533 = vmatpush1.msra.mxu0 0.0
  %3534 = vmatprep.subr.mxu0 0.0
  %3535 = vmatpush1.msra.mxu0 0.0
  %3536 = vmatprep.subr.mxu0 0.0
  %3537 = vmatpush1.msra.mxu0 0.0
  %3538 = vmatprep.subr.mxu0 0.0
  %3539 = vmatpush1.msra.mxu0 0.0
  %3540 = vmatprep.subr.mxu0 0.0
  %3541 = vmatpush1.msra.mxu0 0.0
  %3542 = vmatprep.subr.mxu0 0.0
  %3543 = vmatpush1.msra.mxu0 0.0
  %3544 = vmatprep.subr.mxu0 0.0
  %3545 = vmatpush1.msra.mxu0 0.0
  %3546 = vmatprep.subr.mxu0 0.0
  %3547 = vmatpush1.msra.mxu0 0.0
  %3548 = vmatprep.subr.mxu0 0.0
  %3549 = vmatpush1.msra.mxu0 0.0
  %3550 = vmatprep.subr.mxu0 0.0
  %3551 = vmatpush1.msra.mxu0 0.0
  %3552 = vmatprep.subr.mxu0 0.0
  %3553 = vmatpush1.msra.mxu0 0.0
  %3554 = vmatprep.subr.mxu0 0.0
  %3555 = vmatpush1.msra.mxu0 0.0
  %3556 = vmatprep.subr.mxu0 0.0
  %3557 = vmatpush1.msra.mxu0 0.0
  %3558 = vmatprep.subr.mxu0 0.0
  %3559 = vmatpush1.msra.mxu0 0.0
  %3560 = vmatprep.subr.mxu0 0.0
  %3561 = vmatpush1.msra.mxu0 0.0
  %3562 = vmatprep.subr.mxu0 0.0
  %3563 = vmatpush1.msra.mxu0 0.0
  %3564 = vmatprep.subr.mxu0 0.0
  %3565 = vmatpush1.msra.mxu0 0.0
  %3566 = vmatprep.subr.mxu0 0.0
  %3567 = vmatpush1.msra.mxu0 0.0
  %3568 = vmatprep.subr.mxu0 0.0
  %3569 = vmatpush1.msra.mxu0 0.0
  %3570 = vmatprep.subr.mxu0 0.0
  %3571 = vmatpush1.msra.mxu0 0.0
  %3572 = vmatprep.subr.mxu0 0.0
  %3573 = vmatpush1.msra.mxu0 0.0
  %3574 = vmatprep.subr.mxu0 0.0
  %3575 = vmatpush1.msra.mxu0 0.0
  %3576 = vmatprep.subr.mxu0 0.0
  %3577 = vmatpush1.msra.mxu0 0.0
  %3578 = vmatprep.mubr.f32.mxu0 0.0
  %3579 = vmatmul.mubr.f32.gmra.mrb[0].mxu0 %v3510
  %v3580 = vpop.f32.mrb[0].mxu0
  %v3581 = vadd.f32 %v82, %v3580
  %v3582 = vpop.f32.mrb[0].mxu0
  %3583 = vmatprep.mubr.f32.mxu0 0.0
  %3584 = vmatmul.mubr.f32.gmra.mrb[0].mxu0 %v3512
  %v3585 = vpop.f32.mrb[0].mxu0
  %v3586 = vadd.f32 %v82, %v3585
  %v3587 = vpop.f32.mrb[0].mxu0
  %3588 = vdwg.mxu0
  %v3589 = vtanh.pop %v3581
  %v3590 = vtanh.pop %v3586
  %v3591 = vmul.f32 %v3439, 9.9
  %v3592 = vmul.f32 %v3441, 9.9
  %v3593 = vadd.f32 %v3591, 0.1
  %v3594 = vadd.f32 %v3592, 0.1
  %v3595 = vadd.f32 %v3593, 1e-06
  %v3596 = vadd.f32 %v3594, 1e-06
  %v3597 = vsub.f32 1.0, %v3439
  %v3598 = vsub.f32 1.0, %v3441
  %v3599 = vrcp.pop %v3595
  %v3600 = vrcp.pop %v3596
  %v3601 = vmul.f32 %v3279, %v3599
  %v3602 = vmul.f32 %v3280, %v3600
  %3605 = vrot.lane.b32.xlu0 %v3601, 32
  %v3606 = vpop.permute.xlu0 %3605
  %3607 = vrot.lane.b32.xlu0 %v3602, 32
  %v3608 = vpop.permute.xlu0 %3607
  %v3611 = vmul.f32 %v3597, %v3606
  %v3612 = vmul.f32 %v3598, %v3608
  %3615 = vrot.lane.b32.xlu0 %v3589, 32
  %v3616 = vpop.permute.xlu0 %3615
  %3617 = vrot.lane.b32.xlu0 %v3590, 32
  %v3618 = vpop.permute.xlu0 %3617
  %v3621 = vmul.f32 %v3439, %v3616
  %v3622 = vmul.f32 %v3441, %v3618
  %v3623 = vadd.f32 %v3611, %v3621
  %v3624 = vadd.f32 %v3612, %v3622
  %v3625 = vmul.f32 %v3623, %v3623
  %v3626 = vmul.f32 %v3624, %v3624
  %3629 = vrot.lane.b32.xlu0 %v3625, 96
  %v3630 = vpop.permute.xlu0 %3629
  %3631 = vrot.lane.b32.xlu0 %v3626, 96
  %v3632 = vpop.permute.xlu0 %3631
  %v3635 = vsel %vm96, %v3630, 0.0
  %3636 = vadd.xlane.f32.xlu0 %v3635
  %v3637 = vpop.xlane.xlu0 %3636
  %v3638 = vsel %vm96, %v3632, 0.0
  %3639 = vadd.xlane.f32.xlu0 %v3638
  %v3640 = vpop.xlane.xlu0 %3639
  %v3641 = vmul.f32 %v3279, %v3279
  %v3642 = vmul.f32 %v3280, %v3280
  %v3643 = vsel %vm96, %v3641, 0.0
  %3644 = vadd.xlane.f32.xlu0 %v3643
  %v3645 = vpop.xlane.xlu0 %3644
  %v3646 = vsel %vm96, %v3642, 0.0
  %3647 = vadd.xlane.f32.xlu0 %v3646
  %v3648 = vpop.xlane.xlu0 %3647
  %vm3649 = vcmp.ne.f32.partialorder %v3637, %v3637
  %vm3650 = vcmp.ne.f32.partialorder %v3640, %v3640
  %v3651 = vand.u32 2147483647, %v3637
  %v3652 = vand.u32 2147483647, %v3640
  %vm3653 = vcmp.eq.f32.partialorder %v3651, inf
  %vm3654 = vcmp.eq.f32.partialorder %v3652, inf
  %vm3655 = vmor %vm3649, %vm3653
  %vm3656 = vmor %vm3650, %vm3654
  %v3657 = vmax.f32 %v3645, 1e-12
  %v3658 = vmax.f32 %v3648, 1e-12
  %v3659 = vrsqrt.pop %v3657
  %v3660 = vmul.f32 %v3657, %v3659
  %vm3661 = vcmp.eq.f32.partialorder %v3657, inf
  %v3662 = vsel %vm3661, %v3657, %v3660
  %vm3663 = vcmp.eq.f32.partialorder %v3657, 0.0
  %v3664 = vand.u32 %v3657, 2147483648
  %v3665 = vsel %vm3663, %v3664, %v3662
  %v3666 = vrsqrt.pop %v3658
  %v3667 = vmul.f32 %v3658, %v3666
  %vm3668 = vcmp.eq.f32.partialorder %v3658, inf
  %v3669 = vsel %vm3668, %v3658, %v3667
  %vm3670 = vcmp.eq.f32.partialorder %v3658, 0.0
  %v3671 = vand.u32 %v3658, 2147483648
  %v3672 = vsel %vm3670, %v3671, %v3669
  %v3673 = vmax.f32 %v3637, 1e-24
  %v3674 = vmax.f32 %v3640, 1e-24
  %v3675 = vrsqrt.pop %v3673
  %v3676 = vrsqrt.pop %v3674
  %v3677 = vmul.f32 %v3675, %v3665
  %v3678 = vmul.f32 %v3676, %v3672
  %v3679 = vmul.f32 %v3623, %v3677
  %v3680 = vmul.f32 %v3624, %v3678
  %v3681 = vsel %vm3655, 1, 0
  %v3682 = vsel %vm3656, 1, 0
  %vm3683 = vcmp.eq.s32.totalorder %v3681, 1
  %vm3684 = vcmp.eq.s32.totalorder %v3682, 1
  %3687 = vrot.lane.b32.xlu0 %v3679, 96
  %v3688 = vpop.permute.xlu0 %3687
  %3689 = vrot.lane.b32.xlu0 %v3680, 96
  %v3690 = vpop.permute.xlu0 %3689
  %v3693 = vsel %vm3683, %v3279, %v3688
  %v3694 = vsel %vm3684, %v3280, %v3690
  %vm3695 = vcmp.gt.f32.partialorder %v3329, 0.01
  %vm3696 = vcmp.gt.f32.partialorder %v3348, 0.01
  %v3697 = vsub.f32 1.0, %v3329
  %v3698 = vsub.f32 1.0, %v3348
  %3700 = vset.pattern.permute.xlu0 0
  %3701 = vperm.xlu0 %3700, %v3697
  %v3702 = vpop.permute.xlu0 %3701
  %3705 = vset.pattern.permute.xlu0 0
  %3706 = vperm.xlu0 %3705, %v3698
  %v3707 = vpop.permute.xlu0 %3706
  %v3709 = vmul.f32 %v3279, %v3702
  %v3710 = vmul.f32 %v3280, %v3707
  %3712 = vset.pattern.permute.xlu0 0
  %3713 = vperm.xlu0 %3712, %v3329
  %v3714 = vpop.permute.xlu0 %3713
  %3717 = vset.pattern.permute.xlu0 0
  %3718 = vperm.xlu0 %3717, %v3348
  %v3719 = vpop.permute.xlu0 %3718
  %v3721 = vmul.f32 %v3693, %v3714
  %v3722 = vmul.f32 %v3694, %v3719
  %v3723 = vadd.f32 %v3709, %v3721
  %v3724 = vadd.f32 %v3710, %v3722
  %v3725 = vsel %vm3695, 1, 0
  %v3726 = vsel %vm3696, 1, 0
  %3727 = vset.pattern.permute.xlu0 0
  %3728 = vperm.xlu0 %3727, %v3725
  %v3729 = vpop.permute.xlu0 %3728
  %3730 = vset.pattern.permute.xlu0 0
  %3731 = vperm.xlu0 %3730, %v3726
  %v3732 = vpop.permute.xlu0 %3731
  %vm3733 = vcmp.eq.s32.totalorder %v3729, 1
  %vm3734 = vcmp.eq.s32.totalorder %v3732, 1
  %v3735 = vsel %vm3733, %v3723, %v3279
  %v3736 = vsel %vm3734, %v3724, %v3280
  %v3737 = vsel %vm3695, %v3329, 0.0
  %v3738 = vsel %vm3696, %v3348, 0.0
  %v3739 = vadd.f32 %v3285, %v3737
  %v3740 = vadd.f32 %v3286, %v3738
  %v3741 = vmul.f32 %v3739, 0.99
  %v3742 = vmul.f32 %v3740, 0.99
  %v3743 = vmul.f32 %v3289, 0.98
  %v3744 = vmul.f32 %v3290, 0.98
  %v3745 = vadd.f32 %v3743, 1.0
  %v3746 = vadd.f32 %v3744, 1.0
  %3747 = vst.msk [vmem:[#allocation2] sm:$0xff] %vm96, %v3735
  %3748 = vst.msk [vmem:[#allocation2 + $0x8] sm:$0xff] %vm96, %v3736
  %3749 = vst.msk [vmem:[#allocation3] sm:$0xff] %vm111, %v3741
  %3750 = vst.msk [vmem:[#allocation3 + $0x8] sm:$0xff] %vm111, %v3742
  %3751 = vst.msk [vmem:[#allocation4] sm:$0xff] %vm111, %v3745
  %3752 = vst.msk [vmem:[#allocation4 + $0x8] sm:$0xff] %vm111, %v3746
  // Predicated region
  $region46: #{_forward.1} parent=0 // pred_check
    %p3753 = pneg %p35
  $region47: #{_forward.1} parent=0 // pred_check_branch
    %3755 = sbr.rel (%p3753) target = $region49
  $region48: #{_forward.1} parent=0 // pred_region
    %3756 = vst.msk [vmem:[%s10] sm:$0xff] %vm96, %v3735
    %3757 = vst.msk [vmem:[%s10 + $0x8] sm:$0xff] %vm96, %v3736
  $region49: #{_forward.1} parent=0 // pred_fallthru
    _
  // Predicated region
  $region50: #{_forward.1} parent=0 // pred_check
    _
  $region51: #{_forward.1} parent=0 // pred_check_branch
    %3759 = sbr.rel (0) target = $region53
  $region52: #{_forward.1} parent=0 // pred_region
    _
  $region53: #{_forward.1} parent=0 // pred_fallthru
    _
  // Predicated region
  $region54: #{_forward.1} parent=0 // pred_check
    _
  $region55: #{_forward.1} parent=0 // pred_check_branch
    %3761 = sbr.rel (0) target = $region57
  $region56: #{_forward.1} parent=0 // pred_region
    _
  $region57: #{_forward.1} parent=0 // pred_fallthru
    _

</llo_original>
